<compile_context>
chip_gen: v5e
topology: v5e:2x2
jax: 0.10.0
libtpu: 0.0.40
codegen_flags: <defaults>
</compile_context>

<pallas_src>
import functools

import jax
import jax.numpy as jnp
from jax import lax
from jax.experimental import pallas as pl
from jax.experimental.pallas import tpu as pltpu


def _deq_neumann_fwd_kernel(x_ref, w_ref, b_ref, o_ref, *, max_iter):
    # x_ref / o_ref: (C, TM)  -- channels on sublanes, pixels on lanes.
    # w_ref: (C, C)  tiny VMEM tile (same block every grid step -> not re-fetched).
    # b_ref: (C, 1)
    c, tm = x_ref.shape
    w = w_ref[...].astype(jnp.float32)                       # (C, C)
    b = b_ref[...].astype(jnp.float32)                       # (C, 1)
    x = x_ref[...].astype(jnp.float32)                       # (C, TM)

    # ---- hoisted loop invariants (broadcasts emitted exactly once) ----------
    xb = x + jnp.broadcast_to(b, (c, tm))                    # input + bias injection
    w_cols = [jnp.broadcast_to(w[:, k:k + 1], (c, tm)) for k in range(c)]

    def f(z):
        # f(z, x) = tanh(W @ z + b + x), as a VPU outer-product accumulation:
        #   acc[k, :] = xb[k, :] + sum_c w[k, c] * z[c, :]
        acc = xb
        for k in range(c):
            acc = acc + w_cols[k] * z[k:k + 1, :]            # (C,TM) * (1,TM) bcast
        return jnp.tanh(acc)

    # solver: max_iter forward iterations from z0 = 0, then forward() applies f once
    # more.  f(0) = tanh(xb), so start there and do max_iter more applications
    # (max_iter + 1 total, bit-identical to the original semantics).
    z = jnp.tanh(xb)
    z = lax.fori_loop(0, max_iter, lambda i, zz: f(zz), z, unroll=True)
    o_ref[...] = z.astype(o_ref.dtype)


def deq_fixed_point_neumann_forward(x_nchw, w, b, *, max_iter=30, tile_hw=None):
    """Forward pass of DEQFixedPointNeumann for f(z, x) = tanh(W @ z + b + x)."""
    n, c, h, wd = x_nchw.shape
    hw = h * wd
    # TODO(synk): pad HW to a multiple of 128 for general shapes; demo requires it.
    assert hw % 128 == 0, "H*W must be a multiple of 128 (lane width) for this demo"

    if tile_hw is None:
        # Cap the pixel tile so the whole 31-step chain stays vreg-resident
        # (z + xb + 8 broadcast weight columns <= ~40 vregs at 512 lanes) and so
        # tiles are far under the scoped-VMEM defaults on all generations.
        tile_hw = hw
        for t in (512, 384, 256, 128):
            if hw % t == 0:
                tile_hw = t
                break
    assert hw % tile_hw == 0 and tile_hw % 128 == 0

    # NCHW is already channel-major per sample: pure reshape, NO transpose.
    x_flat = x_nchw.reshape(n, c, hw)
    b_col = b.reshape(c, 1)

    n_apps = max_iter + 1
    cost = pl.CostEstimate(
        flops=int(n_apps * n * hw * c * 2 * c),          # 2*C MAC flops / elem / app
        transcendentals=int(n_apps * n * hw * c),        # one tanh / elem / app
        bytes_accessed=int(2 * n * c * hw * 4 + c * c * 4 + c * 4),
    )

    out_flat = pl.pallas_call(
        functools.partial(_deq_neumann_fwd_kernel, max_iter=max_iter),
        out_shape=jax.ShapeDtypeStruct((n, c, hw), x_flat.dtype),
        grid=(n, hw // tile_hw),
        in_specs=[
            # leading batch dim squeezed: kernel sees (C, tile_hw), lane-dense.
            pl.BlockSpec((None, c, tile_hw), lambda nb, ib: (nb, 0, ib)),
            pl.BlockSpec((c, c), lambda nb, ib: (0, 0)),     # weights (constant block)
            pl.BlockSpec((c, 1), lambda nb, ib: (0, 0)),     # bias column
        ],
        out_specs=pl.BlockSpec((None, c, tile_hw), lambda nb, ib: (nb, 0, ib)),
        compiler_params=pltpu.CompilerParams(
            dimension_semantics=("parallel", "parallel"),
        ),
        cost_estimate=cost,
    )(x_flat, w, b_col)

    # (N, C, HW) -> NCHW: pure reshape, NO transpose.
    return out_flat.reshape(n, c, h, wd)


if __name__ == "__main__":
    key = jax.random.PRNGKey(0)
    kx, kw, kb = jax.random.split(key, 3)

    N, C, H, W = 2, 8, 16, 16
    MAX_ITER = 30

    x = jax.random.normal(kx, (N, C, H, W), jnp.float32)
    # small weights -> contraction -> the fixed-point iteration converges
    w = 0.1 * jax.random.normal(kw, (C, C), jnp.float32)
    b = 0.05 * jax.random.normal(kb, (C,), jnp.float32)

    out = deq_fixed_point_neumann_forward(x, w, b, max_iter=MAX_ITER)
    out = jax.block_until_ready(out)

    # pure-JAX reference of the same forward semantics (NCHW throughout)
    def f_ref(z, xin):
        return jnp.tanh(
            jnp.einsum("nchw,kc->nkhw", z, w) + b[None, :, None, None] + xin
        )

    z_ref = jnp.zeros_like(x)
    for _ in range(MAX_ITER):          # solver (no-grad fixed-point solve)
        z_ref = f_ref(z_ref, x)
    z_ref = f_ref(z_ref, x)            # extra application in forward()

    err = float(jnp.max(jnp.abs(out - z_ref)))
    assert out.shape == x.shape and out.dtype == x.dtype
    assert jnp.allclose(out, z_ref, atol=1e-5, rtol=1e-5), err
    print("KERNEL_OK")
</pallas_src>

<mosaic_0001>
module attributes {stable_mosaic.version = 11 : i64} {
  func.func @_deq_neumann_fwd_kernel(%arg0: i32, %arg1: i32, %arg2: memref<1x8x256xf32, #tpu.memory_space<vmem>>, %arg3: memref<8x8xf32, #tpu.memory_space<vmem>>, %arg4: memref<8x1xf32, #tpu.memory_space<vmem>>, %arg5: memref<1x8x256xf32, #tpu.memory_space<vmem>>) attributes {dimension_semantics = [#tpu.dimension_semantics<parallel>, #tpu.dimension_semantics<parallel>], iteration_bounds = array<i64: 2, 1>, scalar_prefetch = 0 : i64, scratch_operands = 0 : i64, tpu.core_type = #tpu.core_type<tc>, window_params = [{transform_indices = @transform_0, window_bounds = array<i64: 1, 8, 256>}, {pipeline_mode = #tpu.pipeline_mode<synchronous>, transform_indices = @transform_1, window_bounds = array<i64: 8, 8>}, {pipeline_mode = #tpu.pipeline_mode<synchronous>, transform_indices = @transform_2, window_bounds = array<i64: 8, 1>}, {transform_indices = @transform_3, window_bounds = array<i64: 1, 8, 256>}]} {
    %c0 = arith.constant 0 : index
    %c0_0 = arith.constant 0 : index
    %0 = vector.load %arg3[%c0, %c0_0] : memref<8x8xf32, #tpu.memory_space<vmem>>, vector<8x8xf32>
    %c0_1 = arith.constant 0 : index
    %c0_2 = arith.constant 0 : index
    %1 = vector.load %arg4[%c0_1, %c0_2] : memref<8x1xf32, #tpu.memory_space<vmem>>, vector<8x1xf32>
    %c0_3 = arith.constant 0 : index
    %c0_4 = arith.constant 0 : index
    %c0_5 = arith.constant 0 : index
    %2 = vector.load %arg2[%c0_3, %c0_4, %c0_5] : memref<1x8x256xf32, #tpu.memory_space<vmem>>, vector<1x8x256xf32>
    %3 = vector.shape_cast %2 : vector<1x8x256xf32> to vector<8x256xf32>
    %4 = vector.shape_cast %1 : vector<8x1xf32> to vector<8x1xf32>
    %5 = vector.broadcast %4 : vector<8x1xf32> to vector<8x256xf32>
    %6 = arith.addf %3, %5 : vector<8x256xf32>
    %7 = vector.extract_strided_slice %0 {offsets = [0, 0], sizes = [8, 1], strides = [1, 1]} : vector<8x8xf32> to vector<8x1xf32>
    %8 = vector.shape_cast %7 : vector<8x1xf32> to vector<8x1xf32>
    %9 = vector.broadcast %8 : vector<8x1xf32> to vector<8x256xf32>
    %10 = vector.extract_strided_slice %0 {offsets = [0, 1], sizes = [8, 1], strides = [1, 1]} : vector<8x8xf32> to vector<8x1xf32>
    %11 = vector.shape_cast %10 : vector<8x1xf32> to vector<8x1xf32>
    %12 = vector.broadcast %11 : vector<8x1xf32> to vector<8x256xf32>
    %13 = vector.extract_strided_slice %0 {offsets = [0, 2], sizes = [8, 1], strides = [1, 1]} : vector<8x8xf32> to vector<8x1xf32>
    %14 = vector.shape_cast %13 : vector<8x1xf32> to vector<8x1xf32>
    %15 = vector.broadcast %14 : vector<8x1xf32> to vector<8x256xf32>
    %16 = vector.extract_strided_slice %0 {offsets = [0, 3], sizes = [8, 1], strides = [1, 1]} : vector<8x8xf32> to vector<8x1xf32>
    %17 = vector.shape_cast %16 : vector<8x1xf32> to vector<8x1xf32>
    %18 = vector.broadcast %17 : vector<8x1xf32> to vector<8x256xf32>
    %19 = vector.extract_strided_slice %0 {offsets = [0, 4], sizes = [8, 1], strides = [1, 1]} : vector<8x8xf32> to vector<8x1xf32>
    %20 = vector.shape_cast %19 : vector<8x1xf32> to vector<8x1xf32>
    %21 = vector.broadcast %20 : vector<8x1xf32> to vector<8x256xf32>
    %22 = vector.extract_strided_slice %0 {offsets = [0, 5], sizes = [8, 1], strides = [1, 1]} : vector<8x8xf32> to vector<8x1xf32>
    %23 = vector.shape_cast %22 : vector<8x1xf32> to vector<8x1xf32>
    %24 = vector.broadcast %23 : vector<8x1xf32> to vector<8x256xf32>
    %25 = vector.extract_strided_slice %0 {offsets = [0, 6], sizes = [8, 1], strides = [1, 1]} : vector<8x8xf32> to vector<8x1xf32>
    %26 = vector.shape_cast %25 : vector<8x1xf32> to vector<8x1xf32>
    %27 = vector.broadcast %26 : vector<8x1xf32> to vector<8x256xf32>
    %28 = vector.extract_strided_slice %0 {offsets = [0, 7], sizes = [8, 1], strides = [1, 1]} : vector<8x8xf32> to vector<8x1xf32>
    %29 = vector.shape_cast %28 : vector<8x1xf32> to vector<8x1xf32>
    %30 = vector.broadcast %29 : vector<8x1xf32> to vector<8x256xf32>
    %31 = math.tanh %6 : vector<8x256xf32>
    %c0_i32 = arith.constant 0 : i32
    %32 = vector.extract_strided_slice %31 {offsets = [0, 0], sizes = [1, 256], strides = [1, 1]} : vector<8x256xf32> to vector<1x256xf32>
    %33 = vector.broadcast %32 : vector<1x256xf32> to vector<8x256xf32>
    %34 = arith.mulf %9, %33 : vector<8x256xf32>
    %35 = arith.addf %6, %34 : vector<8x256xf32>
    %36 = vector.extract_strided_slice %31 {offsets = [1, 0], sizes = [1, 256], strides = [1, 1]} : vector<8x256xf32> to vector<1x256xf32>
    %37 = vector.broadcast %36 : vector<1x256xf32> to vector<8x256xf32>
    %38 = arith.mulf %12, %37 : vector<8x256xf32>
    %39 = arith.addf %35, %38 : vector<8x256xf32>
    %40 = vector.extract_strided_slice %31 {offsets = [2, 0], sizes = [1, 256], strides = [1, 1]} : vector<8x256xf32> to vector<1x256xf32>
    %41 = vector.broadcast %40 : vector<1x256xf32> to vector<8x256xf32>
    %42 = arith.mulf %15, %41 : vector<8x256xf32>
    %43 = arith.addf %39, %42 : vector<8x256xf32>
    %44 = vector.extract_strided_slice %31 {offsets = [3, 0], sizes = [1, 256], strides = [1, 1]} : vector<8x256xf32> to vector<1x256xf32>
    %45 = vector.broadcast %44 : vector<1x256xf32> to vector<8x256xf32>
    %46 = arith.mulf %18, %45 : vector<8x256xf32>
    %47 = arith.addf %43, %46 : vector<8x256xf32>
    %48 = vector.extract_strided_slice %31 {offsets = [4, 0], sizes = [1, 256], strides = [1, 1]} : vector<8x256xf32> to vector<1x256xf32>
    %49 = vector.broadcast %48 : vector<1x256xf32> to vector<8x256xf32>
    %50 = arith.mulf %21, %49 : vector<8x256xf32>
    %51 = arith.addf %47, %50 : vector<8x256xf32>
    %52 = vector.extract_strided_slice %31 {offsets = [5, 0], sizes = [1, 256], strides = [1, 1]} : vector<8x256xf32> to vector<1x256xf32>
    %53 = vector.broadcast %52 : vector<1x256xf32> to vector<8x256xf32>
    %54 = arith.mulf %24, %53 : vector<8x256xf32>
    %55 = arith.addf %51, %54 : vector<8x256xf32>
    %56 = vector.extract_strided_slice %31 {offsets = [6, 0], sizes = [1, 256], strides = [1, 1]} : vector<8x256xf32> to vector<1x256xf32>
    %57 = vector.broadcast %56 : vector<1x256xf32> to vector<8x256xf32>
    %58 = arith.mulf %27, %57 : vector<8x256xf32>
    %59 = arith.addf %55, %58 : vector<8x256xf32>
    %60 = vector.extract_strided_slice %31 {offsets = [7, 0], sizes = [1, 256], strides = [1, 1]} : vector<8x256xf32> to vector<1x256xf32>
    %61 = vector.broadcast %60 : vector<1x256xf32> to vector<8x256xf32>
    %62 = arith.mulf %30, %61 : vector<8x256xf32>
    %63 = arith.addf %59, %62 : vector<8x256xf32>
    %64 = math.tanh %63 : vector<8x256xf32>
    %c1_i32 = arith.constant 1 : i32
    %65 = vector.extract_strided_slice %64 {offsets = [0, 0], sizes = [1, 256], strides = [1, 1]} : vector<8x256xf32> to vector<1x256xf32>
    %66 = vector.broadcast %65 : vector<1x256xf32> to vector<8x256xf32>
    %67 = arith.mulf %9, %66 : vector<8x256xf32>
    %68 = arith.addf %6, %67 : vector<8x256xf32>
    %69 = vector.extract_strided_slice %64 {offsets = [1, 0], sizes = [1, 256], strides = [1, 1]} : vector<8x256xf32> to vector<1x256xf32>
    %70 = vector.broadcast %69 : vector<1x256xf32> to vector<8x256xf32>
    %71 = arith.mulf %12, %70 : vector<8x256xf32>
    %72 = arith.addf %68, %71 : vector<8x256xf32>
    %73 = vector.extract_strided_slice %64 {offsets = [2, 0], sizes = [1, 256], strides = [1, 1]} : vector<8x256xf32> to vector<1x256xf32>
    %74 = vector.broadcast %73 : vector<1x256xf32> to vector<8x256xf32>
    %75 = arith.mulf %15, %74 : vector<8x256xf32>
    %76 = arith.addf %72, %75 : vector<8x256xf32>
    %77 = vector.extract_strided_slice %64 {offsets = [3, 0], sizes = [1, 256], strides = [1, 1]} : vector<8x256xf32> to vector<1x256xf32>
    %78 = vector.broadcast %77 : vector<1x256xf32> to vector<8x256xf32>
    %79 = arith.mulf %18, %78 : vector<8x256xf32>
    %80 = arith.addf %76, %79 : vector<8x256xf32>
    %81 = vector.extract_strided_slice %64 {offsets = [4, 0], sizes = [1, 256], strides = [1, 1]} : vector<8x256xf32> to vector<1x256xf32>
    %82 = vector.broadcast %81 : vector<1x256xf32> to vector<8x256xf32>
    %83 = arith.mulf %21, %82 : vector<8x256xf32>
    %84 = arith.addf %80, %83 : vector<8x256xf32>
    %85 = vector.extract_strided_slice %64 {offsets = [5, 0], sizes = [1, 256], strides = [1, 1]} : vector<8x256xf32> to vector<1x256xf32>
    %86 = vector.broadcast %85 : vector<1x256xf32> to vector<8x256xf32>
    %87 = arith.mulf %24, %86 : vector<8x256xf32>
    %88 = arith.addf %84, %87 : vector<8x256xf32>
    %89 = vector.extract_strided_slice %64 {offsets = [6, 0], sizes = [1, 256], strides = [1, 1]} : vector<8x256xf32> to vector<1x256xf32>
    %90 = vector.broadcast %89 : vector<1x256xf32> to vector<8x256xf32>
    %91 = arith.mulf %27, %90 : vector<8x256xf32>
    %92 = arith.addf %88, %91 : vector<8x256xf32>
    %93 = vector.extract_strided_slice %64 {offsets = [7, 0], sizes = [1, 256], strides = [1, 1]} : vector<8x256xf32> to vector<1x256xf32>
    %94 = vector.broadcast %93 : vector<1x256xf32> to vector<8x256xf32>
    %95 = arith.mulf %30, %94 : vector<8x256xf32>
    %96 = arith.addf %92, %95 : vector<8x256xf32>
    %97 = math.tanh %96 : vector<8x256xf32>
    %c2_i32 = arith.constant 2 : i32
    %98 = vector.extract_strided_slice %97 {offsets = [0, 0], sizes = [1, 256], strides = [1, 1]} : vector<8x256xf32> to vector<1x256xf32>
    %99 = vector.broadcast %98 : vector<1x256xf32> to vector<8x256xf32>
    %100 = arith.mulf %9, %99 : vector<8x256xf32>
    %101 = arith.addf %6, %100 : vector<8x256xf32>
    %102 = vector.extract_strided_slice %97 {offsets = [1, 0], sizes = [1, 256], strides = [1, 1]} : vector<8x256xf32> to vector<1x256xf32>
    %103 = vector.broadcast %102 : vector<1x256xf32> to vector<8x256xf32>
    %104 = arith.mulf %12, %103 : vector<8x256xf32>
    %105 = arith.addf %101, %104 : vector<8x256xf32>
    %106 = vector.extract_strided_slice %97 {offsets = [2, 0], sizes = [1, 256], strides = [1, 1]} : vector<8x256xf32> to vector<1x256xf32>
    %107 = vector.broadcast %106 : vector<1x256xf32> to vector<8x256xf32>
    %108 = arith.mulf %15, %107 : vector<8x256xf32>
    %109 = arith.addf %105, %108 : vector<8x256xf32>
    %110 = vector.extract_strided_slice %97 {offsets = [3, 0], sizes = [1, 256], strides = [1, 1]} : vector<8x256xf32> to vector<1x256xf32>
    %111 = vector.broadcast %110 : vector<1x256xf32> to vector<8x256xf32>
    %112 = arith.mulf %18, %111 : vector<8x256xf32>
    %113 = arith.addf %109, %112 : vector<8x256xf32>
    %114 = vector.extract_strided_slice %97 {offsets = [4, 0], sizes = [1, 256], strides = [1, 1]} : vector<8x256xf32> to vector<1x256xf32>
    %115 = vector.broadcast %114 : vector<1x256xf32> to vector<8x256xf32>
    %116 = arith.mulf %21, %115 : vector<8x256xf32>
    %117 = arith.addf %113, %116 : vector<8x256xf32>
    %118 = vector.extract_strided_slice %97 {offsets = [5, 0], sizes = [1, 256], strides = [1, 1]} : vector<8x256xf32> to vector<1x256xf32>
    %119 = vector.broadcast %118 : vector<1x256xf32> to vector<8x256xf32>
    %120 = arith.mulf %24, %119 : vector<8x256xf32>
    %121 = arith.addf %117, %120 : vector<8x256xf32>
    %122 = vector.extract_strided_slice %97 {offsets = [6, 0], sizes = [1, 256], strides = [1, 1]} : vector<8x256xf32> to vector<1x256xf32>
    %123 = vector.broadcast %122 : vector<1x256xf32> to vector<8x256xf32>
    %124 = arith.mulf %27, %123 : vector<8x256xf32>
    %125 = arith.addf %121, %124 : vector<8x256xf32>
    %126 = vector.extract_strided_slice %97 {offsets = [7, 0], sizes = [1, 256], strides = [1, 1]} : vector<8x256xf32> to vector<1x256xf32>
    %127 = vector.broadcast %126 : vector<1x256xf32> to vector<8x256xf32>
    %128 = arith.mulf %30, %127 : vector<8x256xf32>
    %129 = arith.addf %125, %128 : vector<8x256xf32>
    %130 = math.tanh %129 : vector<8x256xf32>
    %c3_i32 = arith.constant 3 : i32
    %131 = vector.extract_strided_slice %130 {offsets = [0, 0], sizes = [1, 256], strides = [1, 1]} : vector<8x256xf32> to vector<1x256xf32>
    %132 = vector.broadcast %131 : vector<1x256xf32> to vector<8x256xf32>
    %133 = arith.mulf %9, %132 : vector<8x256xf32>
    %134 = arith.addf %6, %133 : vector<8x256xf32>
    %135 = vector.extract_strided_slice %130 {offsets = [1, 0], sizes = [1, 256], strides = [1, 1]} : vector<8x256xf32> to vector<1x256xf32>
    %136 = vector.broadcast %135 : vector<1x256xf32> to vector<8x256xf32>
    %137 = arith.mulf %12, %136 : vector<8x256xf32>
    %138 = arith.addf %134, %137 : vector<8x256xf32>
    %139 = vector.extract_strided_slice %130 {offsets = [2, 0], sizes = [1, 256], strides = [1, 1]} : vector<8x256xf32> to vector<1x256xf32>
    %140 = vector.broadcast %139 : vector<1x256xf32> to vector<8x256xf32>
    %141 = arith.mulf %15, %140 : vector<8x256xf32>
    %142 = arith.addf %138, %141 : vector<8x256xf32>
    %143 = vector.extract_strided_slice %130 {offsets = [3, 0], sizes = [1, 256], strides = [1, 1]} : vector<8x256xf32> to vector<1x256xf32>
    %144 = vector.broadcast %143 : vector<1x256xf32> to vector<8x256xf32>
    %145 = arith.mulf %18, %144 : vector<8x256xf32>
    %146 = arith.addf %142, %145 : vector<8x256xf32>
    %147 = vector.extract_strided_slice %130 {offsets = [4, 0], sizes = [1, 256], strides = [1, 1]} : vector<8x256xf32> to vector<1x256xf32>
    %148 = vector.broadcast %147 : vector<1x256xf32> to vector<8x256xf32>
    %149 = arith.mulf %21, %148 : vector<8x256xf32>
    %150 = arith.addf %146, %149 : vector<8x256xf32>
    %151 = vector.extract_strided_slice %130 {offsets = [5, 0], sizes = [1, 256], strides = [1, 1]} : vector<8x256xf32> to vector<1x256xf32>
    %152 = vector.broadcast %151 : vector<1x256xf32> to vector<8x256xf32>
    %153 = arith.mulf %24, %152 : vector<8x256xf32>
    %154 = arith.addf %150, %153 : vector<8x256xf32>
    %155 = vector.extract_strided_slice %130 {offsets = [6, 0], sizes = [1, 256], strides = [1, 1]} : vector<8x256xf32> to vector<1x256xf32>
    %156 = vector.broadcast %155 : vector<1x256xf32> to vector<8x256xf32>
    %157 = arith.mulf %27, %156 : vector<8x256xf32>
    %158 = arith.addf %154, %157 : vector<8x256xf32>
    %159 = vector.extract_strided_slice %130 {offsets = [7, 0], sizes = [1, 256], strides = [1, 1]} : vector<8x256xf32> to vector<1x256xf32>
    %160 = vector.broadcast %159 : vector<1x256xf32> to vector<8x256xf32>
    %161 = arith.mulf %30, %160 : vector<8x256xf32>
    %162 = arith.addf %158, %161 : vector<8x256xf32>
    %163 = math.tanh %162 : vector<8x256xf32>
    %c4_i32 = arith.constant 4 : i32
    %164 = vector.extract_strided_slice %163 {offsets = [0, 0], sizes = [1, 256], strides = [1, 1]} : vector<8x256xf32> to vector<1x256xf32>
    %165 = vector.broadcast %164 : vector<1x256xf32> to vector<8x256xf32>
    %166 = arith.mulf %9, %165 : vector<8x256xf32>
    %167 = arith.addf %6, %166 : vector<8x256xf32>
    %168 = vector.extract_strided_slice %163 {offsets = [1, 0], sizes = [1, 256], strides = [1, 1]} : vector<8x256xf32> to vector<1x256xf32>
    %169 = vector.broadcast %168 : vector<1x256xf32> to vector<8x256xf32>
    %170 = arith.mulf %12, %169 : vector<8x256xf32>
    %171 = arith.addf %167, %170 : vector<8x256xf32>
    %172 = vector.extract_strided_slice %163 {offsets = [2, 0], sizes = [1, 256], strides = [1, 1]} : vector<8x256xf32> to vector<1x256xf32>
    %173 = vector.broadcast %172 : vector<1x256xf32> to vector<8x256xf32>
    %174 = arith.mulf %15, %173 : vector<8x256xf32>
    %175 = arith.addf %171, %174 : vector<8x256xf32>
    %176 = vector.extract_strided_slice %163 {offsets = [3, 0], sizes = [1, 256], strides = [1, 1]} : vector<8x256xf32> to vector<1x256xf32>
    %177 = vector.broadcast %176 : vector<1x256xf32> to vector<8x256xf32>
    %178 = arith.mulf %18, %177 : vector<8x256xf32>
    %179 = arith.addf %175, %178 : vector<8x256xf32>
    %180 = vector.extract_strided_slice %163 {offsets = [4, 0], sizes = [1, 256], strides = [1, 1]} : vector<8x256xf32> to vector<1x256xf32>
    %181 = vector.broadcast %180 : vector<1x256xf32> to vector<8x256xf32>
    %182 = arith.mulf %21, %181 : vector<8x256xf32>
    %183 = arith.addf %179, %182 : vector<8x256xf32>
    %184 = vector.extract_strided_slice %163 {offsets = [5, 0], sizes = [1, 256], strides = [1, 1]} : vector<8x256xf32> to vector<1x256xf32>
    %185 = vector.broadcast %184 : vector<1x256xf32> to vector<8x256xf32>
    %186 = arith.mulf %24, %185 : vector<8x256xf32>
    %187 = arith.addf %183, %186 : vector<8x256xf32>
    %188 = vector.extract_strided_slice %163 {offsets = [6, 0], sizes = [1, 256], strides = [1, 1]} : vector<8x256xf32> to vector<1x256xf32>
    %189 = vector.broadcast %188 : vector<1x256xf32> to vector<8x256xf32>
    %190 = arith.mulf %27, %189 : vector<8x256xf32>
    %191 = arith.addf %187, %190 : vector<8x256xf32>
    %192 = vector.extract_strided_slice %163 {offsets = [7, 0], sizes = [1, 256], strides = [1, 1]} : vector<8x256xf32> to vector<1x256xf32>
    %193 = vector.broadcast %192 : vector<1x256xf32> to vector<8x256xf32>
    %194 = arith.mulf %30, %193 : vector<8x256xf32>
    %195 = arith.addf %191, %194 : vector<8x256xf32>
    %196 = math.tanh %195 : vector<8x256xf32>
    %c5_i32 = arith.constant 5 : i32
    %197 = vector.extract_strided_slice %196 {offsets = [0, 0], sizes = [1, 256], strides = [1, 1]} : vector<8x256xf32> to vector<1x256xf32>
    %198 = vector.broadcast %197 : vector<1x256xf32> to vector<8x256xf32>
    %199 = arith.mulf %9, %198 : vector<8x256xf32>
    %200 = arith.addf %6, %199 : vector<8x256xf32>
    %201 = vector.extract_strided_slice %196 {offsets = [1, 0], sizes = [1, 256], strides = [1, 1]} : vector<8x256xf32> to vector<1x256xf32>
    %202 = vector.broadcast %201 : vector<1x256xf32> to vector<8x256xf32>
    %203 = arith.mulf %12, %202 : vector<8x256xf32>
    %204 = arith.addf %200, %203 : vector<8x256xf32>
    %205 = vector.extract_strided_slice %196 {offsets = [2, 0], sizes = [1, 256], strides = [1, 1]} : vector<8x256xf32> to vector<1x256xf32>
    %206 = vector.broadcast %205 : vector<1x256xf32> to vector<8x256xf32>
    %207 = arith.mulf %15, %206 : vector<8x256xf32>
    %208 = arith.addf %204, %207 : vector<8x256xf32>
    %209 = vector.extract_strided_slice %196 {offsets = [3, 0], sizes = [1, 256], strides = [1, 1]} : vector<8x256xf32> to vector<1x256xf32>
    %210 = vector.broadcast %209 : vector<1x256xf32> to vector<8x256xf32>
    %211 = arith.mulf %18, %210 : vector<8x256xf32>
    %212 = arith.addf %208, %211 : vector<8x256xf32>
    %213 = vector.extract_strided_slice %196 {offsets = [4, 0], sizes = [1, 256], strides = [1, 1]} : vector<8x256xf32> to vector<1x256xf32>
    %214 = vector.broadcast %213 : vector<1x256xf32> to vector<8x256xf32>
    %215 = arith.mulf %21, %214 : vector<8x256xf32>
    %216 = arith.addf %212, %215 : vector<8x256xf32>
    %217 = vector.extract_strided_slice %196 {offsets = [5, 0], sizes = [1, 256], strides = [1, 1]} : vector<8x256xf32> to vector<1x256xf32>
    %218 = vector.broadcast %217 : vector<1x256xf32> to vector<8x256xf32>
    %219 = arith.mulf %24, %218 : vector<8x256xf32>
    %220 = arith.addf %216, %219 : vector<8x256xf32>
    %221 = vector.extract_strided_slice %196 {offsets = [6, 0], sizes = [1, 256], strides = [1, 1]} : vector<8x256xf32> to vector<1x256xf32>
    %222 = vector.broadcast %221 : vector<1x256xf32> to vector<8x256xf32>
    %223 = arith.mulf %27, %222 : vector<8x256xf32>
    %224 = arith.addf %220, %223 : vector<8x256xf32>
    %225 = vector.extract_strided_slice %196 {offsets = [7, 0], sizes = [1, 256], strides = [1, 1]} : vector<8x256xf32> to vector<1x256xf32>
    %226 = vector.broadcast %225 : vector<1x256xf32> to vector<8x256xf32>
    %227 = arith.mulf %30, %226 : vector<8x256xf32>
    %228 = arith.addf %224, %227 : vector<8x256xf32>
    %229 = math.tanh %228 : vector<8x256xf32>
    %c6_i32 = arith.constant 6 : i32
    %230 = vector.extract_strided_slice %229 {offsets = [0, 0], sizes = [1, 256], strides = [1, 1]} : vector<8x256xf32> to vector<1x256xf32>
    %231 = vector.broadcast %230 : vector<1x256xf32> to vector<8x256xf32>
    %232 = arith.mulf %9, %231 : vector<8x256xf32>
    %233 = arith.addf %6, %232 : vector<8x256xf32>
    %234 = vector.extract_strided_slice %229 {offsets = [1, 0], sizes = [1, 256], strides = [1, 1]} : vector<8x256xf32> to vector<1x256xf32>
    %235 = vector.broadcast %234 : vector<1x256xf32> to vector<8x256xf32>
    %236 = arith.mulf %12, %235 : vector<8x256xf32>
    %237 = arith.addf %233, %236 : vector<8x256xf32>
    %238 = vector.extract_strided_slice %229 {offsets = [2, 0], sizes = [1, 256], strides = [1, 1]} : vector<8x256xf32> to vector<1x256xf32>
    %239 = vector.broadcast %238 : vector<1x256xf32> to vector<8x256xf32>
    %240 = arith.mulf %15, %239 : vector<8x256xf32>
    %241 = arith.addf %237, %240 : vector<8x256xf32>
    %242 = vector.extract_strided_slice %229 {offsets = [3, 0], sizes = [1, 256], strides = [1, 1]} : vector<8x256xf32> to vector<1x256xf32>
    %243 = vector.broadcast %242 : vector<1x256xf32> to vector<8x256xf32>
    %244 = arith.mulf %18, %243 : vector<8x256xf32>
    %245 = arith.addf %241, %244 : vector<8x256xf32>
    %246 = vector.extract_strided_slice %229 {offsets = [4, 0], sizes = [1, 256], strides = [1, 1]} : vector<8x256xf32> to vector<1x256xf32>
    %247 = vector.broadcast %246 : vector<1x256xf32> to vector<8x256xf32>
    %248 = arith.mulf %21, %247 : vector<8x256xf32>
    %249 = arith.addf %245, %248 : vector<8x256xf32>
    %250 = vector.extract_strided_slice %229 {offsets = [5, 0], sizes = [1, 256], strides = [1, 1]} : vector<8x256xf32> to vector<1x256xf32>
    %251 = vector.broadcast %250 : vector<1x256xf32> to vector<8x256xf32>
    %252 = arith.mulf %24, %251 : vector<8x256xf32>
    %253 = arith.addf %249, %252 : vector<8x256xf32>
    %254 = vector.extract_strided_slice %229 {offsets = [6, 0], sizes = [1, 256], strides = [1, 1]} : vector<8x256xf32> to vector<1x256xf32>
    %255 = vector.broadcast %254 : vector<1x256xf32> to vector<8x256xf32>
    %256 = arith.mulf %27, %255 : vector<8x256xf32>
    %257 = arith.addf %253, %256 : vector<8x256xf32>
    %258 = vector.extract_strided_slice %229 {offsets = [7, 0], sizes = [1, 256], strides = [1, 1]} : vector<8x256xf32> to vector<1x256xf32>
    %259 = vector.broadcast %258 : vector<1x256xf32> to vector<8x256xf32>
    %260 = arith.mulf %30, %259 : vector<8x256xf32>
    %261 = arith.addf %257, %260 : vector<8x256xf32>
    %262 = math.tanh %261 : vector<8x256xf32>
    %c7_i32 = arith.constant 7 : i32
    %263 = vector.extract_strided_slice %262 {offsets = [0, 0], sizes = [1, 256], strides = [1, 1]} : vector<8x256xf32> to vector<1x256xf32>
    %264 = vector.broadcast %263 : vector<1x256xf32> to vector<8x256xf32>
    %265 = arith.mulf %9, %264 : vector<8x256xf32>
    %266 = arith.addf %6, %265 : vector<8x256xf32>
    %267 = vector.extract_strided_slice %262 {offsets = [1, 0], sizes = [1, 256], strides = [1, 1]} : vector<8x256xf32> to vector<1x256xf32>
    %268 = vector.broadcast %267 : vector<1x256xf32> to vector<8x256xf32>
    %269 = arith.mulf %12, %268 : vector<8x256xf32>
    %270 = arith.addf %266, %269 : vector<8x256xf32>
    %271 = vector.extract_strided_slice %262 {offsets = [2, 0], sizes = [1, 256], strides = [1, 1]} : vector<8x256xf32> to vector<1x256xf32>
    %272 = vector.broadcast %271 : vector<1x256xf32> to vector<8x256xf32>
    %273 = arith.mulf %15, %272 : vector<8x256xf32>
    %274 = arith.addf %270, %273 : vector<8x256xf32>
    %275 = vector.extract_strided_slice %262 {offsets = [3, 0], sizes = [1, 256], strides = [1, 1]} : vector<8x256xf32> to vector<1x256xf32>
    %276 = vector.broadcast %275 : vector<1x256xf32> to vector<8x256xf32>
    %277 = arith.mulf %18, %276 : vector<8x256xf32>
    %278 = arith.addf %274, %277 : vector<8x256xf32>
    %279 = vector.extract_strided_slice %262 {offsets = [4, 0], sizes = [1, 256], strides = [1, 1]} : vector<8x256xf32> to vector<1x256xf32>
    %280 = vector.broadcast %279 : vector<1x256xf32> to vector<8x256xf32>
    %281 = arith.mulf %21, %280 : vector<8x256xf32>
    %282 = arith.addf %278, %281 : vector<8x256xf32>
    %283 = vector.extract_strided_slice %262 {offsets = [5, 0], sizes = [1, 256], strides = [1, 1]} : vector<8x256xf32> to vector<1x256xf32>
    %284 = vector.broadcast %283 : vector<1x256xf32> to vector<8x256xf32>
    %285 = arith.mulf %24, %284 : vector<8x256xf32>
    %286 = arith.addf %282, %285 : vector<8x256xf32>
    %287 = vector.extract_strided_slice %262 {offsets = [6, 0], sizes = [1, 256], strides = [1, 1]} : vector<8x256xf32> to vector<1x256xf32>
    %288 = vector.broadcast %287 : vector<1x256xf32> to vector<8x256xf32>
    %289 = arith.mulf %27, %288 : vector<8x256xf32>
    %290 = arith.addf %286, %289 : vector<8x256xf32>
    %291 = vector.extract_strided_slice %262 {offsets = [7, 0], sizes = [1, 256], strides = [1, 1]} : vector<8x256xf32> to vector<1x256xf32>
    %292 = vector.broadcast %291 : vector<1x256xf32> to vector<8x256xf32>
    %293 = arith.mulf %30, %292 : vector<8x256xf32>
    %294 = arith.addf %290, %293 : vector<8x256xf32>
    %295 = math.tanh %294 : vector<8x256xf32>
    %c8_i32 = arith.constant 8 : i32
    %296 = vector.extract_strided_slice %295 {offsets = [0, 0], sizes = [1, 256], strides = [1, 1]} : vector<8x256xf32> to vector<1x256xf32>
    %297 = vector.broadcast %296 : vector<1x256xf32> to vector<8x256xf32>
    %298 = arith.mulf %9, %297 : vector<8x256xf32>
    %299 = arith.addf %6, %298 : vector<8x256xf32>
    %300 = vector.extract_strided_slice %295 {offsets = [1, 0], sizes = [1, 256], strides = [1, 1]} : vector<8x256xf32> to vector<1x256xf32>
    %301 = vector.broadcast %300 : vector<1x256xf32> to vector<8x256xf32>
    %302 = arith.mulf %12, %301 : vector<8x256xf32>
    %303 = arith.addf %299, %302 : vector<8x256xf32>
    %304 = vector.extract_strided_slice %295 {offsets = [2, 0], sizes = [1, 256], strides = [1, 1]} : vector<8x256xf32> to vector<1x256xf32>
    %305 = vector.broadcast %304 : vector<1x256xf32> to vector<8x256xf32>
    %306 = arith.mulf %15, %305 : vector<8x256xf32>
    %307 = arith.addf %303, %306 : vector<8x256xf32>
    %308 = vector.extract_strided_slice %295 {offsets = [3, 0], sizes = [1, 256], strides = [1, 1]} : vector<8x256xf32> to vector<1x256xf32>
    %309 = vector.broadcast %308 : vector<1x256xf32> to vector<8x256xf32>
    %310 = arith.mulf %18, %309 : vector<8x256xf32>
    %311 = arith.addf %307, %310 : vector<8x256xf32>
    %312 = vector.extract_strided_slice %295 {offsets = [4, 0], sizes = [1, 256], strides = [1, 1]} : vector<8x256xf32> to vector<1x256xf32>
    %313 = vector.broadcast %312 : vector<1x256xf32> to vector<8x256xf32>
    %314 = arith.mulf %21, %313 : vector<8x256xf32>
    %315 = arith.addf %311, %314 : vector<8x256xf32>
    %316 = vector.extract_strided_slice %295 {offsets = [5, 0], sizes = [1, 256], strides = [1, 1]} : vector<8x256xf32> to vector<1x256xf32>
    %317 = vector.broadcast %316 : vector<1x256xf32> to vector<8x256xf32>
    %318 = arith.mulf %24, %317 : vector<8x256xf32>
    %319 = arith.addf %315, %318 : vector<8x256xf32>
    %320 = vector.extract_strided_slice %295 {offsets = [6, 0], sizes = [1, 256], strides = [1, 1]} : vector<8x256xf32> to vector<1x256xf32>
    %321 = vector.broadcast %320 : vector<1x256xf32> to vector<8x256xf32>
    %322 = arith.mulf %27, %321 : vector<8x256xf32>
    %323 = arith.addf %319, %322 : vector<8x256xf32>
    %324 = vector.extract_strided_slice %295 {offsets = [7, 0], sizes = [1, 256], strides = [1, 1]} : vector<8x256xf32> to vector<1x256xf32>
    %325 = vector.broadcast %324 : vector<1x256xf32> to vector<8x256xf32>
    %326 = arith.mulf %30, %325 : vector<8x256xf32>
    %327 = arith.addf %323, %326 : vector<8x256xf32>
    %328 = math.tanh %327 : vector<8x256xf32>
    %c9_i32 = arith.constant 9 : i32
    %329 = vector.extract_strided_slice %328 {offsets = [0, 0], sizes = [1, 256], strides = [1, 1]} : vector<8x256xf32> to vector<1x256xf32>
    %330 = vector.broadcast %329 : vector<1x256xf32> to vector<8x256xf32>
    %331 = arith.mulf %9, %330 : vector<8x256xf32>
    %332 = arith.addf %6, %331 : vector<8x256xf32>
    %333 = vector.extract_strided_slice %328 {offsets = [1, 0], sizes = [1, 256], strides = [1, 1]} : vector<8x256xf32> to vector<1x256xf32>
    %334 = vector.broadcast %333 : vector<1x256xf32> to vector<8x256xf32>
    %335 = arith.mulf %12, %334 : vector<8x256xf32>
    %336 = arith.addf %332, %335 : vector<8x256xf32>
    %337 = vector.extract_strided_slice %328 {offsets = [2, 0], sizes = [1, 256], strides = [1, 1]} : vector<8x256xf32> to vector<1x256xf32>
    %338 = vector.broadcast %337 : vector<1x256xf32> to vector<8x256xf32>
    %339 = arith.mulf %15, %338 : vector<8x256xf32>
    %340 = arith.addf %336, %339 : vector<8x256xf32>
    %341 = vector.extract_strided_slice %328 {offsets = [3, 0], sizes = [1, 256], strides = [1, 1]} : vector<8x256xf32> to vector<1x256xf32>
    %342 = vector.broadcast %341 : vector<1x256xf32> to vector<8x256xf32>
    %343 = arith.mulf %18, %342 : vector<8x256xf32>
    %344 = arith.addf %340, %343 : vector<8x256xf32>
    %345 = vector.extract_strided_slice %328 {offsets = [4, 0], sizes = [1, 256], strides = [1, 1]} : vector<8x256xf32> to vector<1x256xf32>
    %346 = vector.broadcast %345 : vector<1x256xf32> to vector<8x256xf32>
    %347 = arith.mulf %21, %346 : vector<8x256xf32>
    %348 = arith.addf %344, %347 : vector<8x256xf32>
    %349 = vector.extract_strided_slice %328 {offsets = [5, 0], sizes = [1, 256], strides = [1, 1]} : vector<8x256xf32> to vector<1x256xf32>
    %350 = vector.broadcast %349 : vector<1x256xf32> to vector<8x256xf32>
    %351 = arith.mulf %24, %350 : vector<8x256xf32>
    %352 = arith.addf %348, %351 : vector<8x256xf32>
    %353 = vector.extract_strided_slice %328 {offsets = [6, 0], sizes = [1, 256], strides = [1, 1]} : vector<8x256xf32> to vector<1x256xf32>
    %354 = vector.broadcast %353 : vector<1x256xf32> to vector<8x256xf32>
    %355 = arith.mulf %27, %354 : vector<8x256xf32>
    %356 = arith.addf %352, %355 : vector<8x256xf32>
    %357 = vector.extract_strided_slice %328 {offsets = [7, 0], sizes = [1, 256], strides = [1, 1]} : vector<8x256xf32> to vector<1x256xf32>
    %358 = vector.broadcast %357 : vector<1x256xf32> to vector<8x256xf32>
    %359 = arith.mulf %30, %358 : vector<8x256xf32>
    %360 = arith.addf %356, %359 : vector<8x256xf32>
    %361 = math.tanh %360 : vector<8x256xf32>
    %c10_i32 = arith.constant 10 : i32
    %362 = vector.extract_strided_slice %361 {offsets = [0, 0], sizes = [1, 256], strides = [1, 1]} : vector<8x256xf32> to vector<1x256xf32>
    %363 = vector.broadcast %362 : vector<1x256xf32> to vector<8x256xf32>
    %364 = arith.mulf %9, %363 : vector<8x256xf32>
    %365 = arith.addf %6, %364 : vector<8x256xf32>
    %366 = vector.extract_strided_slice %361 {offsets = [1, 0], sizes = [1, 256], strides = [1, 1]} : vector<8x256xf32> to vector<1x256xf32>
    %367 = vector.broadcast %366 : vector<1x256xf32> to vector<8x256xf32>
    %368 = arith.mulf %12, %367 : vector<8x256xf32>
    %369 = arith.addf %365, %368 : vector<8x256xf32>
    %370 = vector.extract_strided_slice %361 {offsets = [2, 0], sizes = [1, 256], strides = [1, 1]} : vector<8x256xf32> to vector<1x256xf32>
    %371 = vector.broadcast %370 : vector<1x256xf32> to vector<8x256xf32>
    %372 = arith.mulf %15, %371 : vector<8x256xf32>
    %373 = arith.addf %369, %372 : vector<8x256xf32>
    %374 = vector.extract_strided_slice %361 {offsets = [3, 0], sizes = [1, 256], strides = [1, 1]} : vector<8x256xf32> to vector<1x256xf32>
    %375 = vector.broadcast %374 : vector<1x256xf32> to vector<8x256xf32>
    %376 = arith.mulf %18, %375 : vector<8x256xf32>
    %377 = arith.addf %373, %376 : vector<8x256xf32>
    %378 = vector.extract_strided_slice %361 {offsets = [4, 0], sizes = [1, 256], strides = [1, 1]} : vector<8x256xf32> to vector<1x256xf32>
    %379 = vector.broadcast %378 : vector<1x256xf32> to vector<8x256xf32>
    %380 = arith.mulf %21, %379 : vector<8x256xf32>
    %381 = arith.addf %377, %380 : vector<8x256xf32>
    %382 = vector.extract_strided_slice %361 {offsets = [5, 0], sizes = [1, 256], strides = [1, 1]} : vector<8x256xf32> to vector<1x256xf32>
    %383 = vector.broadcast %382 : vector<1x256xf32> to vector<8x256xf32>
    %384 = arith.mulf %24, %383 : vector<8x256xf32>
    %385 = arith.addf %381, %384 : vector<8x256xf32>
    %386 = vector.extract_strided_slice %361 {offsets = [6, 0], sizes = [1, 256], strides = [1, 1]} : vector<8x256xf32> to vector<1x256xf32>
    %387 = vector.broadcast %386 : vector<1x256xf32> to vector<8x256xf32>
    %388 = arith.mulf %27, %387 : vector<8x256xf32>
    %389 = arith.addf %385, %388 : vector<8x256xf32>
    %390 = vector.extract_strided_slice %361 {offsets = [7, 0], sizes = [1, 256], strides = [1, 1]} : vector<8x256xf32> to vector<1x256xf32>
    %391 = vector.broadcast %390 : vector<1x256xf32> to vector<8x256xf32>
    %392 = arith.mulf %30, %391 : vector<8x256xf32>
    %393 = arith.addf %389, %392 : vector<8x256xf32>
    %394 = math.tanh %393 : vector<8x256xf32>
    %c11_i32 = arith.constant 11 : i32
    %395 = vector.extract_strided_slice %394 {offsets = [0, 0], sizes = [1, 256], strides = [1, 1]} : vector<8x256xf32> to vector<1x256xf32>
    %396 = vector.broadcast %395 : vector<1x256xf32> to vector<8x256xf32>
    %397 = arith.mulf %9, %396 : vector<8x256xf32>
    %398 = arith.addf %6, %397 : vector<8x256xf32>
    %399 = vector.extract_strided_slice %394 {offsets = [1, 0], sizes = [1, 256], strides = [1, 1]} : vector<8x256xf32> to vector<1x256xf32>
    %400 = vector.broadcast %399 : vector<1x256xf32> to vector<8x256xf32>
    %401 = arith.mulf %12, %400 : vector<8x256xf32>
    %402 = arith.addf %398, %401 : vector<8x256xf32>
    %403 = vector.extract_strided_slice %394 {offsets = [2, 0], sizes = [1, 256], strides = [1, 1]} : vector<8x256xf32> to vector<1x256xf32>
    %404 = vector.broadcast %403 : vector<1x256xf32> to vector<8x256xf32>
    %405 = arith.mulf %15, %404 : vector<8x256xf32>
    %406 = arith.addf %402, %405 : vector<8x256xf32>
    %407 = vector.extract_strided_slice %394 {offsets = [3, 0], sizes = [1, 256], strides = [1, 1]} : vector<8x256xf32> to vector<1x256xf32>
    %408 = vector.broadcast %407 : vector<1x256xf32> to vector<8x256xf32>
    %409 = arith.mulf %18, %408 : vector<8x256xf32>
    %410 = arith.addf %406, %409 : vector<8x256xf32>
    %411 = vector.extract_strided_slice %394 {offsets = [4, 0], sizes = [1, 256], strides = [1, 1]} : vector<8x256xf32> to vector<1x256xf32>
    %412 = vector.broadcast %411 : vector<1x256xf32> to vector<8x256xf32>
    %413 = arith.mulf %21, %412 : vector<8x256xf32>
    %414 = arith.addf %410, %413 : vector<8x256xf32>
    %415 = vector.extract_strided_slice %394 {offsets = [5, 0], sizes = [1, 256], strides = [1, 1]} : vector<8x256xf32> to vector<1x256xf32>
    %416 = vector.broadcast %415 : vector<1x256xf32> to vector<8x256xf32>
    %417 = arith.mulf %24, %416 : vector<8x256xf32>
    %418 = arith.addf %414, %417 : vector<8x256xf32>
    %419 = vector.extract_strided_slice %394 {offsets = [6, 0], sizes = [1, 256], strides = [1, 1]} : vector<8x256xf32> to vector<1x256xf32>
    %420 = vector.broadcast %419 : vector<1x256xf32> to vector<8x256xf32>
    %421 = arith.mulf %27, %420 : vector<8x256xf32>
    %422 = arith.addf %418, %421 : vector<8x256xf32>
    %423 = vector.extract_strided_slice %394 {offsets = [7, 0], sizes = [1, 256], strides = [1, 1]} : vector<8x256xf32> to vector<1x256xf32>
    %424 = vector.broadcast %423 : vector<1x256xf32> to vector<8x256xf32>
    %425 = arith.mulf %30, %424 : vector<8x256xf32>
    %426 = arith.addf %422, %425 : vector<8x256xf32>
    %427 = math.tanh %426 : vector<8x256xf32>
    %c12_i32 = arith.constant 12 : i32
    %428 = vector.extract_strided_slice %427 {offsets = [0, 0], sizes = [1, 256], strides = [1, 1]} : vector<8x256xf32> to vector<1x256xf32>
    %429 = vector.broadcast %428 : vector<1x256xf32> to vector<8x256xf32>
    %430 = arith.mulf %9, %429 : vector<8x256xf32>
    %431 = arith.addf %6, %430 : vector<8x256xf32>
    %432 = vector.extract_strided_slice %427 {offsets = [1, 0], sizes = [1, 256], strides = [1, 1]} : vector<8x256xf32> to vector<1x256xf32>
    %433 = vector.broadcast %432 : vector<1x256xf32> to vector<8x256xf32>
    %434 = arith.mulf %12, %433 : vector<8x256xf32>
    %435 = arith.addf %431, %434 : vector<8x256xf32>
    %436 = vector.extract_strided_slice %427 {offsets = [2, 0], sizes = [1, 256], strides = [1, 1]} : vector<8x256xf32> to vector<1x256xf32>
    %437 = vector.broadcast %436 : vector<1x256xf32> to vector<8x256xf32>
    %438 = arith.mulf %15, %437 : vector<8x256xf32>
    %439 = arith.addf %435, %438 : vector<8x256xf32>
    %440 = vector.extract_strided_slice %427 {offsets = [3, 0], sizes = [1, 256], strides = [1, 1]} : vector<8x256xf32> to vector<1x256xf32>
    %441 = vector.broadcast %440 : vector<1x256xf32> to vector<8x256xf32>
    %442 = arith.mulf %18, %441 : vector<8x256xf32>
    %443 = arith.addf %439, %442 : vector<8x256xf32>
    %444 = vector.extract_strided_slice %427 {offsets = [4, 0], sizes = [1, 256], strides = [1, 1]} : vector<8x256xf32> to vector<1x256xf32>
    %445 = vector.broadcast %444 : vector<1x256xf32> to vector<8x256xf32>
    %446 = arith.mulf %21, %445 : vector<8x256xf32>
    %447 = arith.addf %443, %446 : vector<8x256xf32>
    %448 = vector.extract_strided_slice %427 {offsets = [5, 0], sizes = [1, 256], strides = [1, 1]} : vector<8x256xf32> to vector<1x256xf32>
    %449 = vector.broadcast %448 : vector<1x256xf32> to vector<8x256xf32>
    %450 = arith.mulf %24, %449 : vector<8x256xf32>
    %451 = arith.addf %447, %450 : vector<8x256xf32>
    %452 = vector.extract_strided_slice %427 {offsets = [6, 0], sizes = [1, 256], strides = [1, 1]} : vector<8x256xf32> to vector<1x256xf32>
    %453 = vector.broadcast %452 : vector<1x256xf32> to vector<8x256xf32>
    %454 = arith.mulf %27, %453 : vector<8x256xf32>
    %455 = arith.addf %451, %454 : vector<8x256xf32>
    %456 = vector.extract_strided_slice %427 {offsets = [7, 0], sizes = [1, 256], strides = [1, 1]} : vector<8x256xf32> to vector<1x256xf32>
    %457 = vector.broadcast %456 : vector<1x256xf32> to vector<8x256xf32>
    %458 = arith.mulf %30, %457 : vector<8x256xf32>
    %459 = arith.addf %455, %458 : vector<8x256xf32>
    %460 = math.tanh %459 : vector<8x256xf32>
    %c13_i32 = arith.constant 13 : i32
    %461 = vector.extract_strided_slice %460 {offsets = [0, 0], sizes = [1, 256], strides = [1, 1]} : vector<8x256xf32> to vector<1x256xf32>
    %462 = vector.broadcast %461 : vector<1x256xf32> to vector<8x256xf32>
    %463 = arith.mulf %9, %462 : vector<8x256xf32>
    %464 = arith.addf %6, %463 : vector<8x256xf32>
    %465 = vector.extract_strided_slice %460 {offsets = [1, 0], sizes = [1, 256], strides = [1, 1]} : vector<8x256xf32> to vector<1x256xf32>
    %466 = vector.broadcast %465 : vector<1x256xf32> to vector<8x256xf32>
    %467 = arith.mulf %12, %466 : vector<8x256xf32>
    %468 = arith.addf %464, %467 : vector<8x256xf32>
    %469 = vector.extract_strided_slice %460 {offsets = [2, 0], sizes = [1, 256], strides = [1, 1]} : vector<8x256xf32> to vector<1x256xf32>
    %470 = vector.broadcast %469 : vector<1x256xf32> to vector<8x256xf32>
    %471 = arith.mulf %15, %470 : vector<8x256xf32>
    %472 = arith.addf %468, %471 : vector<8x256xf32>
    %473 = vector.extract_strided_slice %460 {offsets = [3, 0], sizes = [1, 256], strides = [1, 1]} : vector<8x256xf32> to vector<1x256xf32>
    %474 = vector.broadcast %473 : vector<1x256xf32> to vector<8x256xf32>
    %475 = arith.mulf %18, %474 : vector<8x256xf32>
    %476 = arith.addf %472, %475 : vector<8x256xf32>
    %477 = vector.extract_strided_slice %460 {offsets = [4, 0], sizes = [1, 256], strides = [1, 1]} : vector<8x256xf32> to vector<1x256xf32>
    %478 = vector.broadcast %477 : vector<1x256xf32> to vector<8x256xf32>
    %479 = arith.mulf %21, %478 : vector<8x256xf32>
    %480 = arith.addf %476, %479 : vector<8x256xf32>
    %481 = vector.extract_strided_slice %460 {offsets = [5, 0], sizes = [1, 256], strides = [1, 1]} : vector<8x256xf32> to vector<1x256xf32>
    %482 = vector.broadcast %481 : vector<1x256xf32> to vector<8x256xf32>
    %483 = arith.mulf %24, %482 : vector<8x256xf32>
    %484 = arith.addf %480, %483 : vector<8x256xf32>
    %485 = vector.extract_strided_slice %460 {offsets = [6, 0], sizes = [1, 256], strides = [1, 1]} : vector<8x256xf32> to vector<1x256xf32>
    %486 = vector.broadcast %485 : vector<1x256xf32> to vector<8x256xf32>
    %487 = arith.mulf %27, %486 : vector<8x256xf32>
    %488 = arith.addf %484, %487 : vector<8x256xf32>
    %489 = vector.extract_strided_slice %460 {offsets = [7, 0], sizes = [1, 256], strides = [1, 1]} : vector<8x256xf32> to vector<1x256xf32>
    %490 = vector.broadcast %489 : vector<1x256xf32> to vector<8x256xf32>
    %491 = arith.mulf %30, %490 : vector<8x256xf32>
    %492 = arith.addf %488, %491 : vector<8x256xf32>
    %493 = math.tanh %492 : vector<8x256xf32>
    %c14_i32 = arith.constant 14 : i32
    %494 = vector.extract_strided_slice %493 {offsets = [0, 0], sizes = [1, 256], strides = [1, 1]} : vector<8x256xf32> to vector<1x256xf32>
    %495 = vector.broadcast %494 : vector<1x256xf32> to vector<8x256xf32>
    %496 = arith.mulf %9, %495 : vector<8x256xf32>
    %497 = arith.addf %6, %496 : vector<8x256xf32>
    %498 = vector.extract_strided_slice %493 {offsets = [1, 0], sizes = [1, 256], strides = [1, 1]} : vector<8x256xf32> to vector<1x256xf32>
    %499 = vector.broadcast %498 : vector<1x256xf32> to vector<8x256xf32>
    %500 = arith.mulf %12, %499 : vector<8x256xf32>
    %501 = arith.addf %497, %500 : vector<8x256xf32>
    %502 = vector.extract_strided_slice %493 {offsets = [2, 0], sizes = [1, 256], strides = [1, 1]} : vector<8x256xf32> to vector<1x256xf32>
    %503 = vector.broadcast %502 : vector<1x256xf32> to vector<8x256xf32>
    %504 = arith.mulf %15, %503 : vector<8x256xf32>
    %505 = arith.addf %501, %504 : vector<8x256xf32>
    %506 = vector.extract_strided_slice %493 {offsets = [3, 0], sizes = [1, 256], strides = [1, 1]} : vector<8x256xf32> to vector<1x256xf32>
    %507 = vector.broadcast %506 : vector<1x256xf32> to vector<8x256xf32>
    %508 = arith.mulf %18, %507 : vector<8x256xf32>
    %509 = arith.addf %505, %508 : vector<8x256xf32>
    %510 = vector.extract_strided_slice %493 {offsets = [4, 0], sizes = [1, 256], strides = [1, 1]} : vector<8x256xf32> to vector<1x256xf32>
    %511 = vector.broadcast %510 : vector<1x256xf32> to vector<8x256xf32>
    %512 = arith.mulf %21, %511 : vector<8x256xf32>
    %513 = arith.addf %509, %512 : vector<8x256xf32>
    %514 = vector.extract_strided_slice %493 {offsets = [5, 0], sizes = [1, 256], strides = [1, 1]} : vector<8x256xf32> to vector<1x256xf32>
    %515 = vector.broadcast %514 : vector<1x256xf32> to vector<8x256xf32>
    %516 = arith.mulf %24, %515 : vector<8x256xf32>
    %517 = arith.addf %513, %516 : vector<8x256xf32>
    %518 = vector.extract_strided_slice %493 {offsets = [6, 0], sizes = [1, 256], strides = [1, 1]} : vector<8x256xf32> to vector<1x256xf32>
    %519 = vector.broadcast %518 : vector<1x256xf32> to vector<8x256xf32>
    %520 = arith.mulf %27, %519 : vector<8x256xf32>
    %521 = arith.addf %517, %520 : vector<8x256xf32>
    %522 = vector.extract_strided_slice %493 {offsets = [7, 0], sizes = [1, 256], strides = [1, 1]} : vector<8x256xf32> to vector<1x256xf32>
    %523 = vector.broadcast %522 : vector<1x256xf32> to vector<8x256xf32>
    %524 = arith.mulf %30, %523 : vector<8x256xf32>
    %525 = arith.addf %521, %524 : vector<8x256xf32>
    %526 = math.tanh %525 : vector<8x256xf32>
    %c15_i32 = arith.constant 15 : i32
    %527 = vector.extract_strided_slice %526 {offsets = [0, 0], sizes = [1, 256], strides = [1, 1]} : vector<8x256xf32> to vector<1x256xf32>
    %528 = vector.broadcast %527 : vector<1x256xf32> to vector<8x256xf32>
    %529 = arith.mulf %9, %528 : vector<8x256xf32>
    %530 = arith.addf %6, %529 : vector<8x256xf32>
    %531 = vector.extract_strided_slice %526 {offsets = [1, 0], sizes = [1, 256], strides = [1, 1]} : vector<8x256xf32> to vector<1x256xf32>
    %532 = vector.broadcast %531 : vector<1x256xf32> to vector<8x256xf32>
    %533 = arith.mulf %12, %532 : vector<8x256xf32>
    %534 = arith.addf %530, %533 : vector<8x256xf32>
    %535 = vector.extract_strided_slice %526 {offsets = [2, 0], sizes = [1, 256], strides = [1, 1]} : vector<8x256xf32> to vector<1x256xf32>
    %536 = vector.broadcast %535 : vector<1x256xf32> to vector<8x256xf32>
    %537 = arith.mulf %15, %536 : vector<8x256xf32>
    %538 = arith.addf %534, %537 : vector<8x256xf32>
    %539 = vector.extract_strided_slice %526 {offsets = [3, 0], sizes = [1, 256], strides = [1, 1]} : vector<8x256xf32> to vector<1x256xf32>
    %540 = vector.broadcast %539 : vector<1x256xf32> to vector<8x256xf32>
    %541 = arith.mulf %18, %540 : vector<8x256xf32>
    %542 = arith.addf %538, %541 : vector<8x256xf32>
    %543 = vector.extract_strided_slice %526 {offsets = [4, 0], sizes = [1, 256], strides = [1, 1]} : vector<8x256xf32> to vector<1x256xf32>
    %544 = vector.broadcast %543 : vector<1x256xf32> to vector<8x256xf32>
    %545 = arith.mulf %21, %544 : vector<8x256xf32>
    %546 = arith.addf %542, %545 : vector<8x256xf32>
    %547 = vector.extract_strided_slice %526 {offsets = [5, 0], sizes = [1, 256], strides = [1, 1]} : vector<8x256xf32> to vector<1x256xf32>
    %548 = vector.broadcast %547 : vector<1x256xf32> to vector<8x256xf32>
    %549 = arith.mulf %24, %548 : vector<8x256xf32>
    %550 = arith.addf %546, %549 : vector<8x256xf32>
    %551 = vector.extract_strided_slice %526 {offsets = [6, 0], sizes = [1, 256], strides = [1, 1]} : vector<8x256xf32> to vector<1x256xf32>
    %552 = vector.broadcast %551 : vector<1x256xf32> to vector<8x256xf32>
    %553 = arith.mulf %27, %552 : vector<8x256xf32>
    %554 = arith.addf %550, %553 : vector<8x256xf32>
    %555 = vector.extract_strided_slice %526 {offsets = [7, 0], sizes = [1, 256], strides = [1, 1]} : vector<8x256xf32> to vector<1x256xf32>
    %556 = vector.broadcast %555 : vector<1x256xf32> to vector<8x256xf32>
    %557 = arith.mulf %30, %556 : vector<8x256xf32>
    %558 = arith.addf %554, %557 : vector<8x256xf32>
    %559 = math.tanh %558 : vector<8x256xf32>
    %c16_i32 = arith.constant 16 : i32
    %560 = vector.extract_strided_slice %559 {offsets = [0, 0], sizes = [1, 256], strides = [1, 1]} : vector<8x256xf32> to vector<1x256xf32>
    %561 = vector.broadcast %560 : vector<1x256xf32> to vector<8x256xf32>
    %562 = arith.mulf %9, %561 : vector<8x256xf32>
    %563 = arith.addf %6, %562 : vector<8x256xf32>
    %564 = vector.extract_strided_slice %559 {offsets = [1, 0], sizes = [1, 256], strides = [1, 1]} : vector<8x256xf32> to vector<1x256xf32>
    %565 = vector.broadcast %564 : vector<1x256xf32> to vector<8x256xf32>
    %566 = arith.mulf %12, %565 : vector<8x256xf32>
    %567 = arith.addf %563, %566 : vector<8x256xf32>
    %568 = vector.extract_strided_slice %559 {offsets = [2, 0], sizes = [1, 256], strides = [1, 1]} : vector<8x256xf32> to vector<1x256xf32>
    %569 = vector.broadcast %568 : vector<1x256xf32> to vector<8x256xf32>
    %570 = arith.mulf %15, %569 : vector<8x256xf32>
    %571 = arith.addf %567, %570 : vector<8x256xf32>
    %572 = vector.extract_strided_slice %559 {offsets = [3, 0], sizes = [1, 256], strides = [1, 1]} : vector<8x256xf32> to vector<1x256xf32>
    %573 = vector.broadcast %572 : vector<1x256xf32> to vector<8x256xf32>
    %574 = arith.mulf %18, %573 : vector<8x256xf32>
    %575 = arith.addf %571, %574 : vector<8x256xf32>
    %576 = vector.extract_strided_slice %559 {offsets = [4, 0], sizes = [1, 256], strides = [1, 1]} : vector<8x256xf32> to vector<1x256xf32>
    %577 = vector.broadcast %576 : vector<1x256xf32> to vector<8x256xf32>
    %578 = arith.mulf %21, %577 : vector<8x256xf32>
    %579 = arith.addf %575, %578 : vector<8x256xf32>
    %580 = vector.extract_strided_slice %559 {offsets = [5, 0], sizes = [1, 256], strides = [1, 1]} : vector<8x256xf32> to vector<1x256xf32>
    %581 = vector.broadcast %580 : vector<1x256xf32> to vector<8x256xf32>
    %582 = arith.mulf %24, %581 : vector<8x256xf32>
    %583 = arith.addf %579, %582 : vector<8x256xf32>
    %584 = vector.extract_strided_slice %559 {offsets = [6, 0], sizes = [1, 256], strides = [1, 1]} : vector<8x256xf32> to vector<1x256xf32>
    %585 = vector.broadcast %584 : vector<1x256xf32> to vector<8x256xf32>
    %586 = arith.mulf %27, %585 : vector<8x256xf32>
    %587 = arith.addf %583, %586 : vector<8x256xf32>
    %588 = vector.extract_strided_slice %559 {offsets = [7, 0], sizes = [1, 256], strides = [1, 1]} : vector<8x256xf32> to vector<1x256xf32>
    %589 = vector.broadcast %588 : vector<1x256xf32> to vector<8x256xf32>
    %590 = arith.mulf %30, %589 : vector<8x256xf32>
    %591 = arith.addf %587, %590 : vector<8x256xf32>
    %592 = math.tanh %591 : vector<8x256xf32>
    %c17_i32 = arith.constant 17 : i32
    %593 = vector.extract_strided_slice %592 {offsets = [0, 0], sizes = [1, 256], strides = [1, 1]} : vector<8x256xf32> to vector<1x256xf32>
    %594 = vector.broadcast %593 : vector<1x256xf32> to vector<8x256xf32>
    %595 = arith.mulf %9, %594 : vector<8x256xf32>
    %596 = arith.addf %6, %595 : vector<8x256xf32>
    %597 = vector.extract_strided_slice %592 {offsets = [1, 0], sizes = [1, 256], strides = [1, 1]} : vector<8x256xf32> to vector<1x256xf32>
    %598 = vector.broadcast %597 : vector<1x256xf32> to vector<8x256xf32>
    %599 = arith.mulf %12, %598 : vector<8x256xf32>
    %600 = arith.addf %596, %599 : vector<8x256xf32>
    %601 = vector.extract_strided_slice %592 {offsets = [2, 0], sizes = [1, 256], strides = [1, 1]} : vector<8x256xf32> to vector<1x256xf32>
    %602 = vector.broadcast %601 : vector<1x256xf32> to vector<8x256xf32>
    %603 = arith.mulf %15, %602 : vector<8x256xf32>
    %604 = arith.addf %600, %603 : vector<8x256xf32>
    %605 = vector.extract_strided_slice %592 {offsets = [3, 0], sizes = [1, 256], strides = [1, 1]} : vector<8x256xf32> to vector<1x256xf32>
    %606 = vector.broadcast %605 : vector<1x256xf32> to vector<8x256xf32>
    %607 = arith.mulf %18, %606 : vector<8x256xf32>
    %608 = arith.addf %604, %607 : vector<8x256xf32>
    %609 = vector.extract_strided_slice %592 {offsets = [4, 0], sizes = [1, 256], strides = [1, 1]} : vector<8x256xf32> to vector<1x256xf32>
    %610 = vector.broadcast %609 : vector<1x256xf32> to vector<8x256xf32>
    %611 = arith.mulf %21, %610 : vector<8x256xf32>
    %612 = arith.addf %608, %611 : vector<8x256xf32>
    %613 = vector.extract_strided_slice %592 {offsets = [5, 0], sizes = [1, 256], strides = [1, 1]} : vector<8x256xf32> to vector<1x256xf32>
    %614 = vector.broadcast %613 : vector<1x256xf32> to vector<8x256xf32>
    %615 = arith.mulf %24, %614 : vector<8x256xf32>
    %616 = arith.addf %612, %615 : vector<8x256xf32>
    %617 = vector.extract_strided_slice %592 {offsets = [6, 0], sizes = [1, 256], strides = [1, 1]} : vector<8x256xf32> to vector<1x256xf32>
    %618 = vector.broadcast %617 : vector<1x256xf32> to vector<8x256xf32>
    %619 = arith.mulf %27, %618 : vector<8x256xf32>
    %620 = arith.addf %616, %619 : vector<8x256xf32>
    %621 = vector.extract_strided_slice %592 {offsets = [7, 0], sizes = [1, 256], strides = [1, 1]} : vector<8x256xf32> to vector<1x256xf32>
    %622 = vector.broadcast %621 : vector<1x256xf32> to vector<8x256xf32>
    %623 = arith.mulf %30, %622 : vector<8x256xf32>
    %624 = arith.addf %620, %623 : vector<8x256xf32>
    %625 = math.tanh %624 : vector<8x256xf32>
    %c18_i32 = arith.constant 18 : i32
    %626 = vector.extract_strided_slice %625 {offsets = [0, 0], sizes = [1, 256], strides = [1, 1]} : vector<8x256xf32> to vector<1x256xf32>
    %627 = vector.broadcast %626 : vector<1x256xf32> to vector<8x256xf32>
    %628 = arith.mulf %9, %627 : vector<8x256xf32>
    %629 = arith.addf %6, %628 : vector<8x256xf32>
    %630 = vector.extract_strided_slice %625 {offsets = [1, 0], sizes = [1, 256], strides = [1, 1]} : vector<8x256xf32> to vector<1x256xf32>
    %631 = vector.broadcast %630 : vector<1x256xf32> to vector<8x256xf32>
    %632 = arith.mulf %12, %631 : vector<8x256xf32>
    %633 = arith.addf %629, %632 : vector<8x256xf32>
    %634 = vector.extract_strided_slice %625 {offsets = [2, 0], sizes = [1, 256], strides = [1, 1]} : vector<8x256xf32> to vector<1x256xf32>
    %635 = vector.broadcast %634 : vector<1x256xf32> to vector<8x256xf32>
    %636 = arith.mulf %15, %635 : vector<8x256xf32>
    %637 = arith.addf %633, %636 : vector<8x256xf32>
    %638 = vector.extract_strided_slice %625 {offsets = [3, 0], sizes = [1, 256], strides = [1, 1]} : vector<8x256xf32> to vector<1x256xf32>
    %639 = vector.broadcast %638 : vector<1x256xf32> to vector<8x256xf32>
    %640 = arith.mulf %18, %639 : vector<8x256xf32>
    %641 = arith.addf %637, %640 : vector<8x256xf32>
    %642 = vector.extract_strided_slice %625 {offsets = [4, 0], sizes = [1, 256], strides = [1, 1]} : vector<8x256xf32> to vector<1x256xf32>
    %643 = vector.broadcast %642 : vector<1x256xf32> to vector<8x256xf32>
    %644 = arith.mulf %21, %643 : vector<8x256xf32>
    %645 = arith.addf %641, %644 : vector<8x256xf32>
    %646 = vector.extract_strided_slice %625 {offsets = [5, 0], sizes = [1, 256], strides = [1, 1]} : vector<8x256xf32> to vector<1x256xf32>
    %647 = vector.broadcast %646 : vector<1x256xf32> to vector<8x256xf32>
    %648 = arith.mulf %24, %647 : vector<8x256xf32>
    %649 = arith.addf %645, %648 : vector<8x256xf32>
    %650 = vector.extract_strided_slice %625 {offsets = [6, 0], sizes = [1, 256], strides = [1, 1]} : vector<8x256xf32> to vector<1x256xf32>
    %651 = vector.broadcast %650 : vector<1x256xf32> to vector<8x256xf32>
    %652 = arith.mulf %27, %651 : vector<8x256xf32>
    %653 = arith.addf %649, %652 : vector<8x256xf32>
    %654 = vector.extract_strided_slice %625 {offsets = [7, 0], sizes = [1, 256], strides = [1, 1]} : vector<8x256xf32> to vector<1x256xf32>
    %655 = vector.broadcast %654 : vector<1x256xf32> to vector<8x256xf32>
    %656 = arith.mulf %30, %655 : vector<8x256xf32>
    %657 = arith.addf %653, %656 : vector<8x256xf32>
    %658 = math.tanh %657 : vector<8x256xf32>
    %c19_i32 = arith.constant 19 : i32
    %659 = vector.extract_strided_slice %658 {offsets = [0, 0], sizes = [1, 256], strides = [1, 1]} : vector<8x256xf32> to vector<1x256xf32>
    %660 = vector.broadcast %659 : vector<1x256xf32> to vector<8x256xf32>
    %661 = arith.mulf %9, %660 : vector<8x256xf32>
    %662 = arith.addf %6, %661 : vector<8x256xf32>
    %663 = vector.extract_strided_slice %658 {offsets = [1, 0], sizes = [1, 256], strides = [1, 1]} : vector<8x256xf32> to vector<1x256xf32>
    %664 = vector.broadcast %663 : vector<1x256xf32> to vector<8x256xf32>
    %665 = arith.mulf %12, %664 : vector<8x256xf32>
    %666 = arith.addf %662, %665 : vector<8x256xf32>
    %667 = vector.extract_strided_slice %658 {offsets = [2, 0], sizes = [1, 256], strides = [1, 1]} : vector<8x256xf32> to vector<1x256xf32>
    %668 = vector.broadcast %667 : vector<1x256xf32> to vector<8x256xf32>
    %669 = arith.mulf %15, %668 : vector<8x256xf32>
    %670 = arith.addf %666, %669 : vector<8x256xf32>
    %671 = vector.extract_strided_slice %658 {offsets = [3, 0], sizes = [1, 256], strides = [1, 1]} : vector<8x256xf32> to vector<1x256xf32>
    %672 = vector.broadcast %671 : vector<1x256xf32> to vector<8x256xf32>
    %673 = arith.mulf %18, %672 : vector<8x256xf32>
    %674 = arith.addf %670, %673 : vector<8x256xf32>
    %675 = vector.extract_strided_slice %658 {offsets = [4, 0], sizes = [1, 256], strides = [1, 1]} : vector<8x256xf32> to vector<1x256xf32>
    %676 = vector.broadcast %675 : vector<1x256xf32> to vector<8x256xf32>
    %677 = arith.mulf %21, %676 : vector<8x256xf32>
    %678 = arith.addf %674, %677 : vector<8x256xf32>
    %679 = vector.extract_strided_slice %658 {offsets = [5, 0], sizes = [1, 256], strides = [1, 1]} : vector<8x256xf32> to vector<1x256xf32>
    %680 = vector.broadcast %679 : vector<1x256xf32> to vector<8x256xf32>
    %681 = arith.mulf %24, %680 : vector<8x256xf32>
    %682 = arith.addf %678, %681 : vector<8x256xf32>
    %683 = vector.extract_strided_slice %658 {offsets = [6, 0], sizes = [1, 256], strides = [1, 1]} : vector<8x256xf32> to vector<1x256xf32>
    %684 = vector.broadcast %683 : vector<1x256xf32> to vector<8x256xf32>
    %685 = arith.mulf %27, %684 : vector<8x256xf32>
    %686 = arith.addf %682, %685 : vector<8x256xf32>
    %687 = vector.extract_strided_slice %658 {offsets = [7, 0], sizes = [1, 256], strides = [1, 1]} : vector<8x256xf32> to vector<1x256xf32>
    %688 = vector.broadcast %687 : vector<1x256xf32> to vector<8x256xf32>
    %689 = arith.mulf %30, %688 : vector<8x256xf32>
    %690 = arith.addf %686, %689 : vector<8x256xf32>
    %691 = math.tanh %690 : vector<8x256xf32>
    %c20_i32 = arith.constant 20 : i32
    %692 = vector.extract_strided_slice %691 {offsets = [0, 0], sizes = [1, 256], strides = [1, 1]} : vector<8x256xf32> to vector<1x256xf32>
    %693 = vector.broadcast %692 : vector<1x256xf32> to vector<8x256xf32>
    %694 = arith.mulf %9, %693 : vector<8x256xf32>
    %695 = arith.addf %6, %694 : vector<8x256xf32>
    %696 = vector.extract_strided_slice %691 {offsets = [1, 0], sizes = [1, 256], strides = [1, 1]} : vector<8x256xf32> to vector<1x256xf32>
    %697 = vector.broadcast %696 : vector<1x256xf32> to vector<8x256xf32>
    %698 = arith.mulf %12, %697 : vector<8x256xf32>
    %699 = arith.addf %695, %698 : vector<8x256xf32>
    %700 = vector.extract_strided_slice %691 {offsets = [2, 0], sizes = [1, 256], strides = [1, 1]} : vector<8x256xf32> to vector<1x256xf32>
    %701 = vector.broadcast %700 : vector<1x256xf32> to vector<8x256xf32>
    %702 = arith.mulf %15, %701 : vector<8x256xf32>
    %703 = arith.addf %699, %702 : vector<8x256xf32>
    %704 = vector.extract_strided_slice %691 {offsets = [3, 0], sizes = [1, 256], strides = [1, 1]} : vector<8x256xf32> to vector<1x256xf32>
    %705 = vector.broadcast %704 : vector<1x256xf32> to vector<8x256xf32>
    %706 = arith.mulf %18, %705 : vector<8x256xf32>
    %707 = arith.addf %703, %706 : vector<8x256xf32>
    %708 = vector.extract_strided_slice %691 {offsets = [4, 0], sizes = [1, 256], strides = [1, 1]} : vector<8x256xf32> to vector<1x256xf32>
    %709 = vector.broadcast %708 : vector<1x256xf32> to vector<8x256xf32>
    %710 = arith.mulf %21, %709 : vector<8x256xf32>
    %711 = arith.addf %707, %710 : vector<8x256xf32>
    %712 = vector.extract_strided_slice %691 {offsets = [5, 0], sizes = [1, 256], strides = [1, 1]} : vector<8x256xf32> to vector<1x256xf32>
    %713 = vector.broadcast %712 : vector<1x256xf32> to vector<8x256xf32>
    %714 = arith.mulf %24, %713 : vector<8x256xf32>
    %715 = arith.addf %711, %714 : vector<8x256xf32>
    %716 = vector.extract_strided_slice %691 {offsets = [6, 0], sizes = [1, 256], strides = [1, 1]} : vector<8x256xf32> to vector<1x256xf32>
    %717 = vector.broadcast %716 : vector<1x256xf32> to vector<8x256xf32>
    %718 = arith.mulf %27, %717 : vector<8x256xf32>
    %719 = arith.addf %715, %718 : vector<8x256xf32>
    %720 = vector.extract_strided_slice %691 {offsets = [7, 0], sizes = [1, 256], strides = [1, 1]} : vector<8x256xf32> to vector<1x256xf32>
    %721 = vector.broadcast %720 : vector<1x256xf32> to vector<8x256xf32>
    %722 = arith.mulf %30, %721 : vector<8x256xf32>
    %723 = arith.addf %719, %722 : vector<8x256xf32>
    %724 = math.tanh %723 : vector<8x256xf32>
    %c21_i32 = arith.constant 21 : i32
    %725 = vector.extract_strided_slice %724 {offsets = [0, 0], sizes = [1, 256], strides = [1, 1]} : vector<8x256xf32> to vector<1x256xf32>
    %726 = vector.broadcast %725 : vector<1x256xf32> to vector<8x256xf32>
    %727 = arith.mulf %9, %726 : vector<8x256xf32>
    %728 = arith.addf %6, %727 : vector<8x256xf32>
    %729 = vector.extract_strided_slice %724 {offsets = [1, 0], sizes = [1, 256], strides = [1, 1]} : vector<8x256xf32> to vector<1x256xf32>
    %730 = vector.broadcast %729 : vector<1x256xf32> to vector<8x256xf32>
    %731 = arith.mulf %12, %730 : vector<8x256xf32>
    %732 = arith.addf %728, %731 : vector<8x256xf32>
    %733 = vector.extract_strided_slice %724 {offsets = [2, 0], sizes = [1, 256], strides = [1, 1]} : vector<8x256xf32> to vector<1x256xf32>
    %734 = vector.broadcast %733 : vector<1x256xf32> to vector<8x256xf32>
    %735 = arith.mulf %15, %734 : vector<8x256xf32>
    %736 = arith.addf %732, %735 : vector<8x256xf32>
    %737 = vector.extract_strided_slice %724 {offsets = [3, 0], sizes = [1, 256], strides = [1, 1]} : vector<8x256xf32> to vector<1x256xf32>
    %738 = vector.broadcast %737 : vector<1x256xf32> to vector<8x256xf32>
    %739 = arith.mulf %18, %738 : vector<8x256xf32>
    %740 = arith.addf %736, %739 : vector<8x256xf32>
    %741 = vector.extract_strided_slice %724 {offsets = [4, 0], sizes = [1, 256], strides = [1, 1]} : vector<8x256xf32> to vector<1x256xf32>
    %742 = vector.broadcast %741 : vector<1x256xf32> to vector<8x256xf32>
    %743 = arith.mulf %21, %742 : vector<8x256xf32>
    %744 = arith.addf %740, %743 : vector<8x256xf32>
    %745 = vector.extract_strided_slice %724 {offsets = [5, 0], sizes = [1, 256], strides = [1, 1]} : vector<8x256xf32> to vector<1x256xf32>
    %746 = vector.broadcast %745 : vector<1x256xf32> to vector<8x256xf32>
    %747 = arith.mulf %24, %746 : vector<8x256xf32>
    %748 = arith.addf %744, %747 : vector<8x256xf32>
    %749 = vector.extract_strided_slice %724 {offsets = [6, 0], sizes = [1, 256], strides = [1, 1]} : vector<8x256xf32> to vector<1x256xf32>
    %750 = vector.broadcast %749 : vector<1x256xf32> to vector<8x256xf32>
    %751 = arith.mulf %27, %750 : vector<8x256xf32>
    %752 = arith.addf %748, %751 : vector<8x256xf32>
    %753 = vector.extract_strided_slice %724 {offsets = [7, 0], sizes = [1, 256], strides = [1, 1]} : vector<8x256xf32> to vector<1x256xf32>
    %754 = vector.broadcast %753 : vector<1x256xf32> to vector<8x256xf32>
    %755 = arith.mulf %30, %754 : vector<8x256xf32>
    %756 = arith.addf %752, %755 : vector<8x256xf32>
    %757 = math.tanh %756 : vector<8x256xf32>
    %c22_i32 = arith.constant 22 : i32
    %758 = vector.extract_strided_slice %757 {offsets = [0, 0], sizes = [1, 256], strides = [1, 1]} : vector<8x256xf32> to vector<1x256xf32>
    %759 = vector.broadcast %758 : vector<1x256xf32> to vector<8x256xf32>
    %760 = arith.mulf %9, %759 : vector<8x256xf32>
    %761 = arith.addf %6, %760 : vector<8x256xf32>
    %762 = vector.extract_strided_slice %757 {offsets = [1, 0], sizes = [1, 256], strides = [1, 1]} : vector<8x256xf32> to vector<1x256xf32>
    %763 = vector.broadcast %762 : vector<1x256xf32> to vector<8x256xf32>
    %764 = arith.mulf %12, %763 : vector<8x256xf32>
    %765 = arith.addf %761, %764 : vector<8x256xf32>
    %766 = vector.extract_strided_slice %757 {offsets = [2, 0], sizes = [1, 256], strides = [1, 1]} : vector<8x256xf32> to vector<1x256xf32>
    %767 = vector.broadcast %766 : vector<1x256xf32> to vector<8x256xf32>
    %768 = arith.mulf %15, %767 : vector<8x256xf32>
    %769 = arith.addf %765, %768 : vector<8x256xf32>
    %770 = vector.extract_strided_slice %757 {offsets = [3, 0], sizes = [1, 256], strides = [1, 1]} : vector<8x256xf32> to vector<1x256xf32>
    %771 = vector.broadcast %770 : vector<1x256xf32> to vector<8x256xf32>
    %772 = arith.mulf %18, %771 : vector<8x256xf32>
    %773 = arith.addf %769, %772 : vector<8x256xf32>
    %774 = vector.extract_strided_slice %757 {offsets = [4, 0], sizes = [1, 256], strides = [1, 1]} : vector<8x256xf32> to vector<1x256xf32>
    %775 = vector.broadcast %774 : vector<1x256xf32> to vector<8x256xf32>
    %776 = arith.mulf %21, %775 : vector<8x256xf32>
    %777 = arith.addf %773, %776 : vector<8x256xf32>
    %778 = vector.extract_strided_slice %757 {offsets = [5, 0], sizes = [1, 256], strides = [1, 1]} : vector<8x256xf32> to vector<1x256xf32>
    %779 = vector.broadcast %778 : vector<1x256xf32> to vector<8x256xf32>
    %780 = arith.mulf %24, %779 : vector<8x256xf32>
    %781 = arith.addf %777, %780 : vector<8x256xf32>
    %782 = vector.extract_strided_slice %757 {offsets = [6, 0], sizes = [1, 256], strides = [1, 1]} : vector<8x256xf32> to vector<1x256xf32>
    %783 = vector.broadcast %782 : vector<1x256xf32> to vector<8x256xf32>
    %784 = arith.mulf %27, %783 : vector<8x256xf32>
    %785 = arith.addf %781, %784 : vector<8x256xf32>
    %786 = vector.extract_strided_slice %757 {offsets = [7, 0], sizes = [1, 256], strides = [1, 1]} : vector<8x256xf32> to vector<1x256xf32>
    %787 = vector.broadcast %786 : vector<1x256xf32> to vector<8x256xf32>
    %788 = arith.mulf %30, %787 : vector<8x256xf32>
    %789 = arith.addf %785, %788 : vector<8x256xf32>
    %790 = math.tanh %789 : vector<8x256xf32>
    %c23_i32 = arith.constant 23 : i32
    %791 = vector.extract_strided_slice %790 {offsets = [0, 0], sizes = [1, 256], strides = [1, 1]} : vector<8x256xf32> to vector<1x256xf32>
    %792 = vector.broadcast %791 : vector<1x256xf32> to vector<8x256xf32>
    %793 = arith.mulf %9, %792 : vector<8x256xf32>
    %794 = arith.addf %6, %793 : vector<8x256xf32>
    %795 = vector.extract_strided_slice %790 {offsets = [1, 0], sizes = [1, 256], strides = [1, 1]} : vector<8x256xf32> to vector<1x256xf32>
    %796 = vector.broadcast %795 : vector<1x256xf32> to vector<8x256xf32>
    %797 = arith.mulf %12, %796 : vector<8x256xf32>
    %798 = arith.addf %794, %797 : vector<8x256xf32>
    %799 = vector.extract_strided_slice %790 {offsets = [2, 0], sizes = [1, 256], strides = [1, 1]} : vector<8x256xf32> to vector<1x256xf32>
    %800 = vector.broadcast %799 : vector<1x256xf32> to vector<8x256xf32>
    %801 = arith.mulf %15, %800 : vector<8x256xf32>
    %802 = arith.addf %798, %801 : vector<8x256xf32>
    %803 = vector.extract_strided_slice %790 {offsets = [3, 0], sizes = [1, 256], strides = [1, 1]} : vector<8x256xf32> to vector<1x256xf32>
    %804 = vector.broadcast %803 : vector<1x256xf32> to vector<8x256xf32>
    %805 = arith.mulf %18, %804 : vector<8x256xf32>
    %806 = arith.addf %802, %805 : vector<8x256xf32>
    %807 = vector.extract_strided_slice %790 {offsets = [4, 0], sizes = [1, 256], strides = [1, 1]} : vector<8x256xf32> to vector<1x256xf32>
    %808 = vector.broadcast %807 : vector<1x256xf32> to vector<8x256xf32>
    %809 = arith.mulf %21, %808 : vector<8x256xf32>
    %810 = arith.addf %806, %809 : vector<8x256xf32>
    %811 = vector.extract_strided_slice %790 {offsets = [5, 0], sizes = [1, 256], strides = [1, 1]} : vector<8x256xf32> to vector<1x256xf32>
    %812 = vector.broadcast %811 : vector<1x256xf32> to vector<8x256xf32>
    %813 = arith.mulf %24, %812 : vector<8x256xf32>
    %814 = arith.addf %810, %813 : vector<8x256xf32>
    %815 = vector.extract_strided_slice %790 {offsets = [6, 0], sizes = [1, 256], strides = [1, 1]} : vector<8x256xf32> to vector<1x256xf32>
    %816 = vector.broadcast %815 : vector<1x256xf32> to vector<8x256xf32>
    %817 = arith.mulf %27, %816 : vector<8x256xf32>
    %818 = arith.addf %814, %817 : vector<8x256xf32>
    %819 = vector.extract_strided_slice %790 {offsets = [7, 0], sizes = [1, 256], strides = [1, 1]} : vector<8x256xf32> to vector<1x256xf32>
    %820 = vector.broadcast %819 : vector<1x256xf32> to vector<8x256xf32>
    %821 = arith.mulf %30, %820 : vector<8x256xf32>
    %822 = arith.addf %818, %821 : vector<8x256xf32>
    %823 = math.tanh %822 : vector<8x256xf32>
    %c24_i32 = arith.constant 24 : i32
    %824 = vector.extract_strided_slice %823 {offsets = [0, 0], sizes = [1, 256], strides = [1, 1]} : vector<8x256xf32> to vector<1x256xf32>
    %825 = vector.broadcast %824 : vector<1x256xf32> to vector<8x256xf32>
    %826 = arith.mulf %9, %825 : vector<8x256xf32>
    %827 = arith.addf %6, %826 : vector<8x256xf32>
    %828 = vector.extract_strided_slice %823 {offsets = [1, 0], sizes = [1, 256], strides = [1, 1]} : vector<8x256xf32> to vector<1x256xf32>
    %829 = vector.broadcast %828 : vector<1x256xf32> to vector<8x256xf32>
    %830 = arith.mulf %12, %829 : vector<8x256xf32>
    %831 = arith.addf %827, %830 : vector<8x256xf32>
    %832 = vector.extract_strided_slice %823 {offsets = [2, 0], sizes = [1, 256], strides = [1, 1]} : vector<8x256xf32> to vector<1x256xf32>
    %833 = vector.broadcast %832 : vector<1x256xf32> to vector<8x256xf32>
    %834 = arith.mulf %15, %833 : vector<8x256xf32>
    %835 = arith.addf %831, %834 : vector<8x256xf32>
    %836 = vector.extract_strided_slice %823 {offsets = [3, 0], sizes = [1, 256], strides = [1, 1]} : vector<8x256xf32> to vector<1x256xf32>
    %837 = vector.broadcast %836 : vector<1x256xf32> to vector<8x256xf32>
    %838 = arith.mulf %18, %837 : vector<8x256xf32>
    %839 = arith.addf %835, %838 : vector<8x256xf32>
    %840 = vector.extract_strided_slice %823 {offsets = [4, 0], sizes = [1, 256], strides = [1, 1]} : vector<8x256xf32> to vector<1x256xf32>
    %841 = vector.broadcast %840 : vector<1x256xf32> to vector<8x256xf32>
    %842 = arith.mulf %21, %841 : vector<8x256xf32>
    %843 = arith.addf %839, %842 : vector<8x256xf32>
    %844 = vector.extract_strided_slice %823 {offsets = [5, 0], sizes = [1, 256], strides = [1, 1]} : vector<8x256xf32> to vector<1x256xf32>
    %845 = vector.broadcast %844 : vector<1x256xf32> to vector<8x256xf32>
    %846 = arith.mulf %24, %845 : vector<8x256xf32>
    %847 = arith.addf %843, %846 : vector<8x256xf32>
    %848 = vector.extract_strided_slice %823 {offsets = [6, 0], sizes = [1, 256], strides = [1, 1]} : vector<8x256xf32> to vector<1x256xf32>
    %849 = vector.broadcast %848 : vector<1x256xf32> to vector<8x256xf32>
    %850 = arith.mulf %27, %849 : vector<8x256xf32>
    %851 = arith.addf %847, %850 : vector<8x256xf32>
    %852 = vector.extract_strided_slice %823 {offsets = [7, 0], sizes = [1, 256], strides = [1, 1]} : vector<8x256xf32> to vector<1x256xf32>
    %853 = vector.broadcast %852 : vector<1x256xf32> to vector<8x256xf32>
    %854 = arith.mulf %30, %853 : vector<8x256xf32>
    %855 = arith.addf %851, %854 : vector<8x256xf32>
    %856 = math.tanh %855 : vector<8x256xf32>
    %c25_i32 = arith.constant 25 : i32
    %857 = vector.extract_strided_slice %856 {offsets = [0, 0], sizes = [1, 256], strides = [1, 1]} : vector<8x256xf32> to vector<1x256xf32>
    %858 = vector.broadcast %857 : vector<1x256xf32> to vector<8x256xf32>
    %859 = arith.mulf %9, %858 : vector<8x256xf32>
    %860 = arith.addf %6, %859 : vector<8x256xf32>
    %861 = vector.extract_strided_slice %856 {offsets = [1, 0], sizes = [1, 256], strides = [1, 1]} : vector<8x256xf32> to vector<1x256xf32>
    %862 = vector.broadcast %861 : vector<1x256xf32> to vector<8x256xf32>
    %863 = arith.mulf %12, %862 : vector<8x256xf32>
    %864 = arith.addf %860, %863 : vector<8x256xf32>
    %865 = vector.extract_strided_slice %856 {offsets = [2, 0], sizes = [1, 256], strides = [1, 1]} : vector<8x256xf32> to vector<1x256xf32>
    %866 = vector.broadcast %865 : vector<1x256xf32> to vector<8x256xf32>
    %867 = arith.mulf %15, %866 : vector<8x256xf32>
    %868 = arith.addf %864, %867 : vector<8x256xf32>
    %869 = vector.extract_strided_slice %856 {offsets = [3, 0], sizes = [1, 256], strides = [1, 1]} : vector<8x256xf32> to vector<1x256xf32>
    %870 = vector.broadcast %869 : vector<1x256xf32> to vector<8x256xf32>
    %871 = arith.mulf %18, %870 : vector<8x256xf32>
    %872 = arith.addf %868, %871 : vector<8x256xf32>
    %873 = vector.extract_strided_slice %856 {offsets = [4, 0], sizes = [1, 256], strides = [1, 1]} : vector<8x256xf32> to vector<1x256xf32>
    %874 = vector.broadcast %873 : vector<1x256xf32> to vector<8x256xf32>
    %875 = arith.mulf %21, %874 : vector<8x256xf32>
    %876 = arith.addf %872, %875 : vector<8x256xf32>
    %877 = vector.extract_strided_slice %856 {offsets = [5, 0], sizes = [1, 256], strides = [1, 1]} : vector<8x256xf32> to vector<1x256xf32>
    %878 = vector.broadcast %877 : vector<1x256xf32> to vector<8x256xf32>
    %879 = arith.mulf %24, %878 : vector<8x256xf32>
    %880 = arith.addf %876, %879 : vector<8x256xf32>
    %881 = vector.extract_strided_slice %856 {offsets = [6, 0], sizes = [1, 256], strides = [1, 1]} : vector<8x256xf32> to vector<1x256xf32>
    %882 = vector.broadcast %881 : vector<1x256xf32> to vector<8x256xf32>
    %883 = arith.mulf %27, %882 : vector<8x256xf32>
    %884 = arith.addf %880, %883 : vector<8x256xf32>
    %885 = vector.extract_strided_slice %856 {offsets = [7, 0], sizes = [1, 256], strides = [1, 1]} : vector<8x256xf32> to vector<1x256xf32>
    %886 = vector.broadcast %885 : vector<1x256xf32> to vector<8x256xf32>
    %887 = arith.mulf %30, %886 : vector<8x256xf32>
    %888 = arith.addf %884, %887 : vector<8x256xf32>
    %889 = math.tanh %888 : vector<8x256xf32>
    %c26_i32 = arith.constant 26 : i32
    %890 = vector.extract_strided_slice %889 {offsets = [0, 0], sizes = [1, 256], strides = [1, 1]} : vector<8x256xf32> to vector<1x256xf32>
    %891 = vector.broadcast %890 : vector<1x256xf32> to vector<8x256xf32>
    %892 = arith.mulf %9, %891 : vector<8x256xf32>
    %893 = arith.addf %6, %892 : vector<8x256xf32>
    %894 = vector.extract_strided_slice %889 {offsets = [1, 0], sizes = [1, 256], strides = [1, 1]} : vector<8x256xf32> to vector<1x256xf32>
    %895 = vector.broadcast %894 : vector<1x256xf32> to vector<8x256xf32>
    %896 = arith.mulf %12, %895 : vector<8x256xf32>
    %897 = arith.addf %893, %896 : vector<8x256xf32>
    %898 = vector.extract_strided_slice %889 {offsets = [2, 0], sizes = [1, 256], strides = [1, 1]} : vector<8x256xf32> to vector<1x256xf32>
    %899 = vector.broadcast %898 : vector<1x256xf32> to vector<8x256xf32>
    %900 = arith.mulf %15, %899 : vector<8x256xf32>
    %901 = arith.addf %897, %900 : vector<8x256xf32>
    %902 = vector.extract_strided_slice %889 {offsets = [3, 0], sizes = [1, 256], strides = [1, 1]} : vector<8x256xf32> to vector<1x256xf32>
    %903 = vector.broadcast %902 : vector<1x256xf32> to vector<8x256xf32>
    %904 = arith.mulf %18, %903 : vector<8x256xf32>
    %905 = arith.addf %901, %904 : vector<8x256xf32>
    %906 = vector.extract_strided_slice %889 {offsets = [4, 0], sizes = [1, 256], strides = [1, 1]} : vector<8x256xf32> to vector<1x256xf32>
    %907 = vector.broadcast %906 : vector<1x256xf32> to vector<8x256xf32>
    %908 = arith.mulf %21, %907 : vector<8x256xf32>
    %909 = arith.addf %905, %908 : vector<8x256xf32>
    %910 = vector.extract_strided_slice %889 {offsets = [5, 0], sizes = [1, 256], strides = [1, 1]} : vector<8x256xf32> to vector<1x256xf32>
    %911 = vector.broadcast %910 : vector<1x256xf32> to vector<8x256xf32>
    %912 = arith.mulf %24, %911 : vector<8x256xf32>
    %913 = arith.addf %909, %912 : vector<8x256xf32>
    %914 = vector.extract_strided_slice %889 {offsets = [6, 0], sizes = [1, 256], strides = [1, 1]} : vector<8x256xf32> to vector<1x256xf32>
    %915 = vector.broadcast %914 : vector<1x256xf32> to vector<8x256xf32>
    %916 = arith.mulf %27, %915 : vector<8x256xf32>
    %917 = arith.addf %913, %916 : vector<8x256xf32>
    %918 = vector.extract_strided_slice %889 {offsets = [7, 0], sizes = [1, 256], strides = [1, 1]} : vector<8x256xf32> to vector<1x256xf32>
    %919 = vector.broadcast %918 : vector<1x256xf32> to vector<8x256xf32>
    %920 = arith.mulf %30, %919 : vector<8x256xf32>
    %921 = arith.addf %917, %920 : vector<8x256xf32>
    %922 = math.tanh %921 : vector<8x256xf32>
    %c27_i32 = arith.constant 27 : i32
    %923 = vector.extract_strided_slice %922 {offsets = [0, 0], sizes = [1, 256], strides = [1, 1]} : vector<8x256xf32> to vector<1x256xf32>
    %924 = vector.broadcast %923 : vector<1x256xf32> to vector<8x256xf32>
    %925 = arith.mulf %9, %924 : vector<8x256xf32>
    %926 = arith.addf %6, %925 : vector<8x256xf32>
    %927 = vector.extract_strided_slice %922 {offsets = [1, 0], sizes = [1, 256], strides = [1, 1]} : vector<8x256xf32> to vector<1x256xf32>
    %928 = vector.broadcast %927 : vector<1x256xf32> to vector<8x256xf32>
    %929 = arith.mulf %12, %928 : vector<8x256xf32>
    %930 = arith.addf %926, %929 : vector<8x256xf32>
    %931 = vector.extract_strided_slice %922 {offsets = [2, 0], sizes = [1, 256], strides = [1, 1]} : vector<8x256xf32> to vector<1x256xf32>
    %932 = vector.broadcast %931 : vector<1x256xf32> to vector<8x256xf32>
    %933 = arith.mulf %15, %932 : vector<8x256xf32>
    %934 = arith.addf %930, %933 : vector<8x256xf32>
    %935 = vector.extract_strided_slice %922 {offsets = [3, 0], sizes = [1, 256], strides = [1, 1]} : vector<8x256xf32> to vector<1x256xf32>
    %936 = vector.broadcast %935 : vector<1x256xf32> to vector<8x256xf32>
    %937 = arith.mulf %18, %936 : vector<8x256xf32>
    %938 = arith.addf %934, %937 : vector<8x256xf32>
    %939 = vector.extract_strided_slice %922 {offsets = [4, 0], sizes = [1, 256], strides = [1, 1]} : vector<8x256xf32> to vector<1x256xf32>
    %940 = vector.broadcast %939 : vector<1x256xf32> to vector<8x256xf32>
    %941 = arith.mulf %21, %940 : vector<8x256xf32>
    %942 = arith.addf %938, %941 : vector<8x256xf32>
    %943 = vector.extract_strided_slice %922 {offsets = [5, 0], sizes = [1, 256], strides = [1, 1]} : vector<8x256xf32> to vector<1x256xf32>
    %944 = vector.broadcast %943 : vector<1x256xf32> to vector<8x256xf32>
    %945 = arith.mulf %24, %944 : vector<8x256xf32>
    %946 = arith.addf %942, %945 : vector<8x256xf32>
    %947 = vector.extract_strided_slice %922 {offsets = [6, 0], sizes = [1, 256], strides = [1, 1]} : vector<8x256xf32> to vector<1x256xf32>
    %948 = vector.broadcast %947 : vector<1x256xf32> to vector<8x256xf32>
    %949 = arith.mulf %27, %948 : vector<8x256xf32>
    %950 = arith.addf %946, %949 : vector<8x256xf32>
    %951 = vector.extract_strided_slice %922 {offsets = [7, 0], sizes = [1, 256], strides = [1, 1]} : vector<8x256xf32> to vector<1x256xf32>
    %952 = vector.broadcast %951 : vector<1x256xf32> to vector<8x256xf32>
    %953 = arith.mulf %30, %952 : vector<8x256xf32>
    %954 = arith.addf %950, %953 : vector<8x256xf32>
    %955 = math.tanh %954 : vector<8x256xf32>
    %c28_i32 = arith.constant 28 : i32
    %956 = vector.extract_strided_slice %955 {offsets = [0, 0], sizes = [1, 256], strides = [1, 1]} : vector<8x256xf32> to vector<1x256xf32>
    %957 = vector.broadcast %956 : vector<1x256xf32> to vector<8x256xf32>
    %958 = arith.mulf %9, %957 : vector<8x256xf32>
    %959 = arith.addf %6, %958 : vector<8x256xf32>
    %960 = vector.extract_strided_slice %955 {offsets = [1, 0], sizes = [1, 256], strides = [1, 1]} : vector<8x256xf32> to vector<1x256xf32>
    %961 = vector.broadcast %960 : vector<1x256xf32> to vector<8x256xf32>
    %962 = arith.mulf %12, %961 : vector<8x256xf32>
    %963 = arith.addf %959, %962 : vector<8x256xf32>
    %964 = vector.extract_strided_slice %955 {offsets = [2, 0], sizes = [1, 256], strides = [1, 1]} : vector<8x256xf32> to vector<1x256xf32>
    %965 = vector.broadcast %964 : vector<1x256xf32> to vector<8x256xf32>
    %966 = arith.mulf %15, %965 : vector<8x256xf32>
    %967 = arith.addf %963, %966 : vector<8x256xf32>
    %968 = vector.extract_strided_slice %955 {offsets = [3, 0], sizes = [1, 256], strides = [1, 1]} : vector<8x256xf32> to vector<1x256xf32>
    %969 = vector.broadcast %968 : vector<1x256xf32> to vector<8x256xf32>
    %970 = arith.mulf %18, %969 : vector<8x256xf32>
    %971 = arith.addf %967, %970 : vector<8x256xf32>
    %972 = vector.extract_strided_slice %955 {offsets = [4, 0], sizes = [1, 256], strides = [1, 1]} : vector<8x256xf32> to vector<1x256xf32>
    %973 = vector.broadcast %972 : vector<1x256xf32> to vector<8x256xf32>
    %974 = arith.mulf %21, %973 : vector<8x256xf32>
    %975 = arith.addf %971, %974 : vector<8x256xf32>
    %976 = vector.extract_strided_slice %955 {offsets = [5, 0], sizes = [1, 256], strides = [1, 1]} : vector<8x256xf32> to vector<1x256xf32>
    %977 = vector.broadcast %976 : vector<1x256xf32> to vector<8x256xf32>
    %978 = arith.mulf %24, %977 : vector<8x256xf32>
    %979 = arith.addf %975, %978 : vector<8x256xf32>
    %980 = vector.extract_strided_slice %955 {offsets = [6, 0], sizes = [1, 256], strides = [1, 1]} : vector<8x256xf32> to vector<1x256xf32>
    %981 = vector.broadcast %980 : vector<1x256xf32> to vector<8x256xf32>
    %982 = arith.mulf %27, %981 : vector<8x256xf32>
    %983 = arith.addf %979, %982 : vector<8x256xf32>
    %984 = vector.extract_strided_slice %955 {offsets = [7, 0], sizes = [1, 256], strides = [1, 1]} : vector<8x256xf32> to vector<1x256xf32>
    %985 = vector.broadcast %984 : vector<1x256xf32> to vector<8x256xf32>
    %986 = arith.mulf %30, %985 : vector<8x256xf32>
    %987 = arith.addf %983, %986 : vector<8x256xf32>
    %988 = math.tanh %987 : vector<8x256xf32>
    %c29_i32 = arith.constant 29 : i32
    %989 = vector.extract_strided_slice %988 {offsets = [0, 0], sizes = [1, 256], strides = [1, 1]} : vector<8x256xf32> to vector<1x256xf32>
    %990 = vector.broadcast %989 : vector<1x256xf32> to vector<8x256xf32>
    %991 = arith.mulf %9, %990 : vector<8x256xf32>
    %992 = arith.addf %6, %991 : vector<8x256xf32>
    %993 = vector.extract_strided_slice %988 {offsets = [1, 0], sizes = [1, 256], strides = [1, 1]} : vector<8x256xf32> to vector<1x256xf32>
    %994 = vector.broadcast %993 : vector<1x256xf32> to vector<8x256xf32>
    %995 = arith.mulf %12, %994 : vector<8x256xf32>
    %996 = arith.addf %992, %995 : vector<8x256xf32>
    %997 = vector.extract_strided_slice %988 {offsets = [2, 0], sizes = [1, 256], strides = [1, 1]} : vector<8x256xf32> to vector<1x256xf32>
    %998 = vector.broadcast %997 : vector<1x256xf32> to vector<8x256xf32>
    %999 = arith.mulf %15, %998 : vector<8x256xf32>
    %1000 = arith.addf %996, %999 : vector<8x256xf32>
    %1001 = vector.extract_strided_slice %988 {offsets = [3, 0], sizes = [1, 256], strides = [1, 1]} : vector<8x256xf32> to vector<1x256xf32>
    %1002 = vector.broadcast %1001 : vector<1x256xf32> to vector<8x256xf32>
    %1003 = arith.mulf %18, %1002 : vector<8x256xf32>
    %1004 = arith.addf %1000, %1003 : vector<8x256xf32>
    %1005 = vector.extract_strided_slice %988 {offsets = [4, 0], sizes = [1, 256], strides = [1, 1]} : vector<8x256xf32> to vector<1x256xf32>
    %1006 = vector.broadcast %1005 : vector<1x256xf32> to vector<8x256xf32>
    %1007 = arith.mulf %21, %1006 : vector<8x256xf32>
    %1008 = arith.addf %1004, %1007 : vector<8x256xf32>
    %1009 = vector.extract_strided_slice %988 {offsets = [5, 0], sizes = [1, 256], strides = [1, 1]} : vector<8x256xf32> to vector<1x256xf32>
    %1010 = vector.broadcast %1009 : vector<1x256xf32> to vector<8x256xf32>
    %1011 = arith.mulf %24, %1010 : vector<8x256xf32>
    %1012 = arith.addf %1008, %1011 : vector<8x256xf32>
    %1013 = vector.extract_strided_slice %988 {offsets = [6, 0], sizes = [1, 256], strides = [1, 1]} : vector<8x256xf32> to vector<1x256xf32>
    %1014 = vector.broadcast %1013 : vector<1x256xf32> to vector<8x256xf32>
    %1015 = arith.mulf %27, %1014 : vector<8x256xf32>
    %1016 = arith.addf %1012, %1015 : vector<8x256xf32>
    %1017 = vector.extract_strided_slice %988 {offsets = [7, 0], sizes = [1, 256], strides = [1, 1]} : vector<8x256xf32> to vector<1x256xf32>
    %1018 = vector.broadcast %1017 : vector<1x256xf32> to vector<8x256xf32>
    %1019 = arith.mulf %30, %1018 : vector<8x256xf32>
    %1020 = arith.addf %1016, %1019 : vector<8x256xf32>
    %1021 = math.tanh %1020 : vector<8x256xf32>
    %c0_6 = arith.constant 0 : index
    %c0_7 = arith.constant 0 : index
    %c0_8 = arith.constant 0 : index
    %1022 = vector.load %arg5[%c0_6, %c0_7, %c0_8] : memref<1x8x256xf32, #tpu.memory_space<vmem>>, vector<1x8x256xf32>
    %1023 = vector.shape_cast %1022 : vector<1x8x256xf32> to vector<8x256xf32>
    %1024 = vector.shape_cast %1021 : vector<8x256xf32> to vector<1x8x256xf32>
    tpu.vector_store %arg5[%c0_6, %c0_7, %c0_8], %1024 {strides = array<i32>} : memref<1x8x256xf32, #tpu.memory_space<vmem>>, vector<1x8x256xf32>,
    return
  }
  func.func @transform_0(%arg0: i32, %arg1: i32) -> (i32, i32, i32) {
    %c0_i32 = arith.constant 0 : i32
    %c0_i32_0 = arith.constant 0 : i32
    return %arg0, %c0_i32, %arg1 : i32, i32, i32
  }
  func.func @transform_1(%arg0: i32, %arg1: i32) -> (i32, i32) {
    %c0_i32 = arith.constant 0 : i32
    %c0_i32_0 = arith.constant 0 : i32
    %c0_i32_1 = arith.constant 0 : i32
    return %c0_i32, %c0_i32_0 : i32, i32
  }
  func.func @transform_2(%arg0: i32, %arg1: i32) -> (i32, i32) {
    %c0_i32 = arith.constant 0 : i32
    %c0_i32_0 = arith.constant 0 : i32
    %c0_i32_1 = arith.constant 0 : i32
    return %c0_i32, %c0_i32_0 : i32, i32
  }
  func.func @transform_3(%arg0: i32, %arg1: i32) -> (i32, i32, i32) {
    %c0_i32 = arith.constant 0 : i32
    %c0_i32_0 = arith.constant 0 : i32
    return %arg0, %c0_i32, %arg1 : i32, i32, i32
  }
}

</mosaic_0001>

<llo_original>
// kernel: tpu_custom_call.1
$region0: #{tpu_custom_call.1}
  #allocation0 [shape = 'u32[]', space=smem, size = 0x4, offset = 0x4, fixed_abs, tag = 'smem constant byte address 0x4 - core index']
  #allocation1 [shape = 'u32[72,128]{1,0:T(1,128)}', space=vmem, size = 0x9000, scoped, tag = 'internal scratch']
  %s0 = inlined_call_operand.hbm [shape: f32[2,8,256], index: 0, kind: input, shape index: {}]
  %s1 = inlined_call_operand.vmem [shape: f32[8,8], index: 1, kind: input, shape index: {}]
  %s2 = inlined_call_operand.vmem [shape: f32[8,1], index: 2, kind: input, shape index: {}]
  %s3 = inlined_call_operand.hbm [shape: f32[2,8,256], index: 3, kind: output, shape index: {}]
  %s4 = sld [smem:[#allocation0]]
  $region49: #{tpu_custom_call.1} parent=0
    _
  %s6 = ssub.s32 1, %s4
  %s7 = scalar_select 0, %s6, %s4
  $region1: #{tpu_custom_call.1} parent=0
    #allocation2 [shape = 'u8[16384]{0}', space=vmem, size = 0x4000, scoped, tag = 'input window, operand 0']
    #allocation3 [shape = 's32[2]{0}', space=sflag, size = 0x8, scoped, tag = 'scoped memory for tpu_custom_call.1']
    #allocation4 [shape = 's32[2]{0}', space=sflag, size = 0x8, scoped, tag = 'scoped memory for tpu_custom_call.1']
    #allocation5 [shape = 'u8[16384]{0}', space=vmem, size = 0x4000, scoped, tag = 'output window, operand 0']
    %8 = vsyncpa [#allocation3], 0
    %s9 = scalar_lea.sflag [#allocation3], 1
    %10 = vsyncpa %s9, 0
    %11 = vsyncpa [#allocation4], 0
    %s12 = scalar_lea.sflag [#allocation4], 1
    %13 = vsyncpa %s12, 0
    loop: start=0, step=1, limit=4
    $region2: #{tpu_custom_call.1} parent=1 // loop_pre_header
      _
    $region3: #{tpu_custom_call.1} parent=1 // loop_header
      %s15 = sphi 0, %s19
      %p16 = scmp.ge.s32.totalorder %s15, 4
      %s22 = sphi 0, %s34
      %s23 = sphi 0, %s30
      %s24 = sphi 0, %s22
      %s25 = sphi 0, %s23
      %s26 = sphi 0, %s24
      %s27 = sphi 0, %s25
      %s39 = sphi 0, %s41
      %s42 = sphi 0, %s39
      %s43 = sphi 0, %s42
      %s59 = sphi 0, %s43
      %s63 = sphi 0, %s63
      %s65 = sphi 0, %s63
      %s66 = sphi 0, %s65
      %s80 = sphi 0, %s66
      %s84 = sphi 0, %s84
      %s86 = sphi 0, %s84
      %s87 = sphi 0, %s86
      %s101 = sphi 0, %s87
      %s109 = sphi 0, %s111
      %s112 = sphi 0, %s109
      %s113 = sphi 0, %s112
      %s129 = sphi 0, %s113
    $region4: #{tpu_custom_call.1} parent=1 // loop_header_branch
      %18 = sbr.rel (%p16) target = $region8
    $region5: #{tpu_custom_call.1} parent=1 // loop_body
      %s20 = ssub.s32 %s15, 1
      %s21 = ssub.s32 %s15, 2
      %s28 = sadd.s32 1, %s23
      %p29 = scmp.ge.s32.totalorder %s28, 1
      %s30 = scalar_select %p29, 0, %s28
      %s31 = sadd.s32 1, %s22
      %s32 = scalar_select %p29, %s31, %s22
      %p33 = scmp.ge.s32.totalorder %s32, 2
      %s34 = scalar_select %p33, 0, %s32
      %s35 = ssub.s32 %s22, %s34
      %s36 = ssub.s32 %s23, %s30
      %s37 = sor.u32 %s35, %s36
      %p38 = scmp.eq.s32.totalorder %s37, 0
      %s40 = sadd.s32 %s39, 1
      %s41 = scalar_select %p38, %s39, %s40
      %p44 = pneg %p38
      %p45 = scmp.eq.s32.totalorder %s15, 1
      %p46 = por %p44, %p45
      %p47 = scmp.ne.s32.totalorder %s39, %s42
      %p48 = scmp.eq.s32.totalorder %s15, 0
      %p49 = por %p47, %p48
      %p50 = scmp.ne.s32.totalorder %s39, %s42
      %p51 = scmp.eq.s32.totalorder %s20, 1
      %p52 = por %p50, %p51
      %p53 = scmp.ne.s32.totalorder %s42, %s43
      %p54 = scmp.eq.s32.totalorder %s20, 0
      %p55 = por %p53, %p54
      %p56 = scmp.ne.s32.totalorder %s42, %s43
      %p57 = scmp.eq.s32.totalorder %s21, 1
      %p58 = por %p56, %p57
      %p60 = scmp.ne.s32.totalorder %s43, %s59
      %p61 = scmp.eq.s32.totalorder %s21, 0
      %p62 = por %p60, %p61
      %s64 = sadd.s32 %s63, 1
      %p67 = scmp.eq.s32.totalorder %s15, 1
      %p68 = scmp.ne.s32.totalorder %s63, %s65
      %p69 = scmp.eq.s32.totalorder %s15, 0
      %p70 = por %p68, %p69
      %p71 = scmp.ne.s32.totalorder %s63, %s65
      %p72 = scmp.eq.s32.totalorder %s20, 1
      %p73 = por %p71, %p72
      %p74 = scmp.ne.s32.totalorder %s65, %s66
      %p75 = scmp.eq.s32.totalorder %s20, 0
      %p76 = por %p74, %p75
      %p77 = scmp.ne.s32.totalorder %s65, %s66
      %p78 = scmp.eq.s32.totalorder %s21, 1
      %p79 = por %p77, %p78
      %p81 = scmp.ne.s32.totalorder %s66, %s80
      %p82 = scmp.eq.s32.totalorder %s21, 0
      %p83 = por %p81, %p82
      %s85 = sadd.s32 %s84, 1
      %p88 = scmp.eq.s32.totalorder %s15, 1
      %p89 = scmp.ne.s32.totalorder %s84, %s86
      %p90 = scmp.eq.s32.totalorder %s15, 0
      %p91 = por %p89, %p90
      %p92 = scmp.ne.s32.totalorder %s84, %s86
      %p93 = scmp.eq.s32.totalorder %s20, 1
      %p94 = por %p92, %p93
      %p95 = scmp.ne.s32.totalorder %s86, %s87
      %p96 = scmp.eq.s32.totalorder %s20, 0
      %p97 = por %p95, %p96
      %p98 = scmp.ne.s32.totalorder %s86, %s87
      %p99 = scmp.eq.s32.totalorder %s21, 1
      %p100 = por %p98, %p99
      %p102 = scmp.ne.s32.totalorder %s87, %s101
      %p103 = scmp.eq.s32.totalorder %s21, 0
      %p104 = por %p102, %p103
      %s105 = ssub.s32 %s22, %s34
      %s106 = ssub.s32 %s23, %s30
      %s107 = sor.u32 %s105, %s106
      %p108 = scmp.eq.s32.totalorder %s107, 0
      %s110 = sadd.s32 %s109, 1
      %s111 = scalar_select %p108, %s109, %s110
      %p114 = pneg %p108
      %p115 = scmp.eq.s32.totalorder %s15, 1
      %p116 = por %p114, %p115
      %p117 = scmp.ne.s32.totalorder %s109, %s112
      %p118 = scmp.eq.s32.totalorder %s15, 0
      %p119 = por %p117, %p118
      %p120 = scmp.ne.s32.totalorder %s109, %s112
      %p121 = scmp.eq.s32.totalorder %s20, 1
      %p122 = por %p120, %p121
      %p123 = scmp.ne.s32.totalorder %s112, %s113
      %p124 = scmp.eq.s32.totalorder %s20, 0
      %p125 = por %p123, %p124
      %p126 = scmp.ne.s32.totalorder %s112, %s113
      %p127 = scmp.eq.s32.totalorder %s21, 1
      %p128 = por %p126, %p127
      %p130 = scmp.ne.s32.totalorder %s113, %s129
      %p131 = scmp.eq.s32.totalorder %s21, 0
      %p132 = por %p130, %p131
      %p133 = scmp.le.s32.totalorder 1, %s15
      %p134 = scmp.lt.s32.totalorder %s15, 3
      %p135 = pnand %p133, %p134
      %p136 = pneg %p135
      // Predicated region
      $region9: #{tpu_custom_call.1} parent=5 // pred_check
        _
      $region10: #{tpu_custom_call.1} parent=5 // pred_check_branch
        %138 = sbr.rel (%p135) target = $region12
      $region11: #{tpu_custom_call.1} parent=5 // pred_region
        %s139 = ssub.s32 %s15, 1
        // Predicated region
        $region13: #{tpu_custom_call.1} parent=11 // pred_check
          %p140 = pneg %p76
        $region14: #{tpu_custom_call.1} parent=11 // pred_check_branch
          %142 = sbr.rel (%p140) target = $region16
        $region15: #{tpu_custom_call.1} parent=11 // pred_region
          _
        $region16: #{tpu_custom_call.1} parent=11 // pred_fallthru
          _
        // Predicated region
        $region17: #{tpu_custom_call.1} parent=11 // pred_check
          %p143 = pneg %p97
        $region18: #{tpu_custom_call.1} parent=11 // pred_check_branch
          %145 = sbr.rel (%p143) target = $region20
        $region19: #{tpu_custom_call.1} parent=11 // pred_region
          _
        $region20: #{tpu_custom_call.1} parent=11 // pred_fallthru
          _
      $region12: #{tpu_custom_call.1} parent=5 // pred_fallthru
        _
      %p146 = scmp.lt.s32.totalorder %s15, 2
      // Predicated region
      $region21: #{tpu_custom_call.1} parent=5 // pred_check
        %p147 = pneg %p146
      $region22: #{tpu_custom_call.1} parent=5 // pred_check_branch
        %149 = sbr.rel (%p147) target = $region24
      $region23: #{tpu_custom_call.1} parent=5 // pred_region
        // Predicated region
        $region25: #{tpu_custom_call.1} parent=23 // pred_check
          %p150 = pneg %p49
        $region26: #{tpu_custom_call.1} parent=23 // pred_check_branch
          %152 = sbr.rel (%p150) target = $region28
        $region27: #{tpu_custom_call.1} parent=23 // pred_region
          %s153 = sand.u32 %s39, 1
          %s154 = scalar_lea.sflag [#allocation3], %s153
          %s155 = sand.u32 %s39, 1
          %s156 = smul.addr %s155, 16
          %s157 = scalar_lea.vmem [#allocation2], %s156
          %s158 = smul.u32 2, %s23
          %160 = vsyncadd %s154, 0
          %s161 = smul.addr %s22, 2
          %s162 = sadd.s32 %s158, %s161
          %s163 = smul.addr %s162, 8
          %s164 = scalar_lea.hbm %s0, %s163
          %s166 = sshll.u32 %s164, 4
          %s167 = int_to_ptr.hbm [resolvable:$true] %s166
          %s168 = sshll.u32 %s157, 4
          %s169 = int_to_ptr.vmem [resolvable:$true] %s168
          %171 = dma.hbm_to_vmem [thread:$0]  %s167, 256, %s169, %s154
        $region28: #{tpu_custom_call.1} parent=23 // pred_fallthru
          _
      $region24: #{tpu_custom_call.1} parent=5 // pred_fallthru
        _
      %p172 = scmp.le.s32.totalorder 1, %s15
      %p173 = scmp.lt.s32.totalorder %s15, 3
      %p174 = pnand %p172, %p173
      %p175 = pneg %p174
      // Predicated region
      $region29: #{tpu_custom_call.1} parent=5 // pred_check
        _
      $region30: #{tpu_custom_call.1} parent=5 // pred_check_branch
        %177 = sbr.rel (%p174) target = $region32
      $region31: #{tpu_custom_call.1} parent=5 // pred_region
        %s178 = ssub.s32 %s15, 1
        %s179 = sand.u32 %s42, 1
        %s180 = scalar_lea.sflag [#allocation3], %s179
        %s181 = sand.u32 %s42, 1
        %s182 = smul.addr %s181, 16
        %s183 = scalar_lea.vmem [#allocation2], %s182
        // Predicated region
        $region33: #{tpu_custom_call.1} parent=31 // pred_check
          %p184 = pneg %p55
        $region34: #{tpu_custom_call.1} parent=31 // pred_check_branch
          %186 = sbr.rel (%p184) target = $region36
        $region35: #{tpu_custom_call.1} parent=31 // pred_region
          %188 = dma.done %s180, 256
        $region36: #{tpu_custom_call.1} parent=31 // pred_fallthru
          _
        %s189 = sand.u32 %s42, 1
        %s190 = scalar_lea.sflag [#allocation3], %s189
        %s191 = sand.u32 %s42, 1
        %s192 = smul.addr %s191, 16
        %s193 = scalar_lea.vmem [#allocation2], %s192
        %p194 = pneg %p55
        %p195 = pneg %p52
        %p196 = pneg %p76
        %p197 = pneg %p73
        %p198 = pneg %p97
        %p199 = pneg %p94
        %p200 = pneg %p125
        %p201 = pneg %p122
        %s202 = sand.u32 %s112, 1
        %s203 = scalar_lea.sflag [#allocation4], %s202
        %s204 = sand.u32 %s112, 1
        %s205 = smul.addr %s204, 16
        %s206 = scalar_lea.vmem [#allocation5], %s205
        %s207 = smul.u32 2, %s25
        %s208 = smul.u32 2, %s25
        %v209 = vld [vmem:[%s1] sm:$0xff]
        %v210 = vld [vmem:[%s2] sm:$0xff]
        %v211 = vld [vmem:[%s183] sm:$0xff]
        %v212 = vld [vmem:[%s183 + $0x8] sm:$0xff]
        %214 = vset.pattern.permute.xlu0 0
        %215 = vperm.xlu0 %214, %v210
        %v216 = vpop.permute.xlu0 %215
        %v218 = vadd.f32 %v211, %v216
        %v219 = vadd.f32 %v212, %v216
        %221 = vset.pattern.permute.xlu0 0
        %222 = vperm.xlu0 %221, %v209
        %v223 = vpop.permute.xlu0 %222
        %225 = vset.pattern.permute.xlu0 1
        %226 = vperm.xlu0 %225, %v209
        %v227 = vpop.permute.xlu0 %226
        %229 = vset.pattern.permute.xlu0 2
        %230 = vperm.xlu0 %229, %v209
        %v231 = vpop.permute.xlu0 %230
        %233 = vset.pattern.permute.xlu0 3
        %234 = vperm.xlu0 %233, %v209
        %v235 = vpop.permute.xlu0 %234
        %237 = vset.pattern.permute.xlu0 4
        %238 = vperm.xlu0 %237, %v209
        %v239 = vpop.permute.xlu0 %238
        %241 = vset.pattern.permute.xlu0 5
        %242 = vperm.xlu0 %241, %v209
        %v243 = vpop.permute.xlu0 %242
        %245 = vset.pattern.permute.xlu0 6
        %246 = vperm.xlu0 %245, %v209
        %v247 = vpop.permute.xlu0 %246
        %249 = vset.pattern.permute.xlu0 7
        %250 = vperm.xlu0 %249, %v209
        %v251 = vpop.permute.xlu0 %250
        %v253 = vtanh.pop %v218
        %v254 = vtanh.pop %v219
        %v255 = vperm.slane %v253, 0
        %v256 = vperm.slane %v254, 0
        %v257 = vmul.f32 %v223, %v255
        %v258 = vmul.f32 %v223, %v256
        %v259 = vadd.f32 %v218, %v257
        %v260 = vadd.f32 %v219, %v258
        %v261 = vperm.slane %v253, 1
        %v262 = vperm.slane %v254, 1
        %v263 = vmul.f32 %v227, %v261
        %v264 = vmul.f32 %v227, %v262
        %v265 = vadd.f32 %v259, %v263
        %v266 = vadd.f32 %v260, %v264
        %v267 = vperm.slane %v253, 2
        %v268 = vperm.slane %v254, 2
        %v269 = vmul.f32 %v231, %v267
        %v270 = vmul.f32 %v231, %v268
        %v271 = vadd.f32 %v265, %v269
        %v272 = vadd.f32 %v266, %v270
        %v273 = vperm.slane %v253, 3
        %v274 = vperm.slane %v254, 3
        %v275 = vmul.f32 %v235, %v273
        %v276 = vmul.f32 %v235, %v274
        %v277 = vadd.f32 %v271, %v275
        %v278 = vadd.f32 %v272, %v276
        %v279 = vperm.slane %v253, 4
        %v280 = vperm.slane %v254, 4
        %v281 = vmul.f32 %v239, %v279
        %v282 = vmul.f32 %v239, %v280
        %v283 = vadd.f32 %v277, %v281
        %v284 = vadd.f32 %v278, %v282
        %v285 = vperm.slane %v253, 5
        %v286 = vperm.slane %v254, 5
        %v287 = vmul.f32 %v243, %v285
        %v288 = vmul.f32 %v243, %v286
        %v289 = vadd.f32 %v283, %v287
        %v290 = vadd.f32 %v284, %v288
        %v291 = vperm.slane %v253, 6
        %v292 = vperm.slane %v254, 6
        %v293 = vmul.f32 %v247, %v291
        %v294 = vmul.f32 %v247, %v292
        %v295 = vadd.f32 %v289, %v293
        %v296 = vadd.f32 %v290, %v294
        %v297 = vperm.slane %v253, 7
        %v298 = vperm.slane %v254, 7
        %v299 = vmul.f32 %v251, %v297
        %v300 = vmul.f32 %v251, %v298
        %v301 = vadd.f32 %v295, %v299
        %v302 = vadd.f32 %v296, %v300
        %v303 = vtanh.pop %v301
        %v304 = vtanh.pop %v302
        %v305 = vperm.slane %v303, 0
        %v306 = vperm.slane %v304, 0
        %v307 = vmul.f32 %v223, %v305
        %v308 = vmul.f32 %v223, %v306
        %v309 = vadd.f32 %v218, %v307
        %v310 = vadd.f32 %v219, %v308
        %v311 = vperm.slane %v303, 1
        %v312 = vperm.slane %v304, 1
        %v313 = vmul.f32 %v227, %v311
        %v314 = vmul.f32 %v227, %v312
        %v315 = vadd.f32 %v309, %v313
        %v316 = vadd.f32 %v310, %v314
        %v317 = vperm.slane %v303, 2
        %v318 = vperm.slane %v304, 2
        %v319 = vmul.f32 %v231, %v317
        %v320 = vmul.f32 %v231, %v318
        %v321 = vadd.f32 %v315, %v319
        %v322 = vadd.f32 %v316, %v320
        %v323 = vperm.slane %v303, 3
        %v324 = vperm.slane %v304, 3
        %v325 = vmul.f32 %v235, %v323
        %v326 = vmul.f32 %v235, %v324
        %v327 = vadd.f32 %v321, %v325
        %v328 = vadd.f32 %v322, %v326
        %v329 = vperm.slane %v303, 4
        %v330 = vperm.slane %v304, 4
        %v331 = vmul.f32 %v239, %v329
        %v332 = vmul.f32 %v239, %v330
        %v333 = vadd.f32 %v327, %v331
        %v334 = vadd.f32 %v328, %v332
        %v335 = vperm.slane %v303, 5
        %v336 = vperm.slane %v304, 5
        %v337 = vmul.f32 %v243, %v335
        %v338 = vmul.f32 %v243, %v336
        %v339 = vadd.f32 %v333, %v337
        %v340 = vadd.f32 %v334, %v338
        %v341 = vperm.slane %v303, 6
        %v342 = vperm.slane %v304, 6
        %v343 = vmul.f32 %v247, %v341
        %v344 = vmul.f32 %v247, %v342
        %v345 = vadd.f32 %v339, %v343
        %v346 = vadd.f32 %v340, %v344
        %v347 = vperm.slane %v303, 7
        %v348 = vperm.slane %v304, 7
        %v349 = vmul.f32 %v251, %v347
        %v350 = vmul.f32 %v251, %v348
        %v351 = vadd.f32 %v345, %v349
        %v352 = vadd.f32 %v346, %v350
        %v353 = vtanh.pop %v351
        %v354 = vtanh.pop %v352
        %v355 = vperm.slane %v353, 0
        %v356 = vperm.slane %v354, 0
        %v357 = vmul.f32 %v223, %v355
        %v358 = vmul.f32 %v223, %v356
        %v359 = vadd.f32 %v218, %v357
        %v360 = vadd.f32 %v219, %v358
        %v361 = vperm.slane %v353, 1
        %v362 = vperm.slane %v354, 1
        %v363 = vmul.f32 %v227, %v361
        %v364 = vmul.f32 %v227, %v362
        %v365 = vadd.f32 %v359, %v363
        %v366 = vadd.f32 %v360, %v364
        %v367 = vperm.slane %v353, 2
        %v368 = vperm.slane %v354, 2
        %v369 = vmul.f32 %v231, %v367
        %v370 = vmul.f32 %v231, %v368
        %v371 = vadd.f32 %v365, %v369
        %v372 = vadd.f32 %v366, %v370
        %v373 = vperm.slane %v353, 3
        %v374 = vperm.slane %v354, 3
        %v375 = vmul.f32 %v235, %v373
        %v376 = vmul.f32 %v235, %v374
        %v377 = vadd.f32 %v371, %v375
        %v378 = vadd.f32 %v372, %v376
        %v379 = vperm.slane %v353, 4
        %v380 = vperm.slane %v354, 4
        %v381 = vmul.f32 %v239, %v379
        %v382 = vmul.f32 %v239, %v380
        %v383 = vadd.f32 %v377, %v381
        %v384 = vadd.f32 %v378, %v382
        %v385 = vperm.slane %v353, 5
        %v386 = vperm.slane %v354, 5
        %v387 = vmul.f32 %v243, %v385
        %v388 = vmul.f32 %v243, %v386
        %v389 = vadd.f32 %v383, %v387
        %v390 = vadd.f32 %v384, %v388
        %v391 = vperm.slane %v353, 6
        %v392 = vperm.slane %v354, 6
        %v393 = vmul.f32 %v247, %v391
        %v394 = vmul.f32 %v247, %v392
        %v395 = vadd.f32 %v389, %v393
        %v396 = vadd.f32 %v390, %v394
        %v397 = vperm.slane %v353, 7
        %v398 = vperm.slane %v354, 7
        %v399 = vmul.f32 %v251, %v397
        %v400 = vmul.f32 %v251, %v398
        %v401 = vadd.f32 %v395, %v399
        %v402 = vadd.f32 %v396, %v400
        %v403 = vtanh.pop %v401
        %v404 = vtanh.pop %v402
        %v405 = vperm.slane %v403, 0
        %v406 = vperm.slane %v404, 0
        %v407 = vmul.f32 %v223, %v405
        %v408 = vmul.f32 %v223, %v406
        %v409 = vadd.f32 %v218, %v407
        %v410 = vadd.f32 %v219, %v408
        %v411 = vperm.slane %v403, 1
        %v412 = vperm.slane %v404, 1
        %v413 = vmul.f32 %v227, %v411
        %v414 = vmul.f32 %v227, %v412
        %v415 = vadd.f32 %v409, %v413
        %v416 = vadd.f32 %v410, %v414
        %v417 = vperm.slane %v403, 2
        %v418 = vperm.slane %v404, 2
        %v419 = vmul.f32 %v231, %v417
        %v420 = vmul.f32 %v231, %v418
        %v421 = vadd.f32 %v415, %v419
        %v422 = vadd.f32 %v416, %v420
        %v423 = vperm.slane %v403, 3
        %v424 = vperm.slane %v404, 3
        %v425 = vmul.f32 %v235, %v423
        %v426 = vmul.f32 %v235, %v424
        %v427 = vadd.f32 %v421, %v425
        %v428 = vadd.f32 %v422, %v426
        %v429 = vperm.slane %v403, 4
        %v430 = vperm.slane %v404, 4
        %v431 = vmul.f32 %v239, %v429
        %v432 = vmul.f32 %v239, %v430
        %v433 = vadd.f32 %v427, %v431
        %v434 = vadd.f32 %v428, %v432
        %v435 = vperm.slane %v403, 5
        %v436 = vperm.slane %v404, 5
        %v437 = vmul.f32 %v243, %v435
        %v438 = vmul.f32 %v243, %v436
        %v439 = vadd.f32 %v433, %v437
        %v440 = vadd.f32 %v434, %v438
        %v441 = vperm.slane %v403, 6
        %v442 = vperm.slane %v404, 6
        %v443 = vmul.f32 %v247, %v441
        %v444 = vmul.f32 %v247, %v442
        %v445 = vadd.f32 %v439, %v443
        %v446 = vadd.f32 %v440, %v444
        %v447 = vperm.slane %v403, 7
        %v448 = vperm.slane %v404, 7
        %v449 = vmul.f32 %v251, %v447
        %v450 = vmul.f32 %v251, %v448
        %v451 = vadd.f32 %v445, %v449
        %v452 = vadd.f32 %v446, %v450
        %v453 = vtanh.pop %v451
        %v454 = vtanh.pop %v452
        %v455 = vperm.slane %v453, 0
        %v456 = vperm.slane %v454, 0
        %v457 = vmul.f32 %v223, %v455
        %v458 = vmul.f32 %v223, %v456
        %v459 = vadd.f32 %v218, %v457
        %v460 = vadd.f32 %v219, %v458
        %v461 = vperm.slane %v453, 1
        %v462 = vperm.slane %v454, 1
        %v463 = vmul.f32 %v227, %v461
        %v464 = vmul.f32 %v227, %v462
        %v465 = vadd.f32 %v459, %v463
        %v466 = vadd.f32 %v460, %v464
        %v467 = vperm.slane %v453, 2
        %v468 = vperm.slane %v454, 2
        %v469 = vmul.f32 %v231, %v467
        %v470 = vmul.f32 %v231, %v468
        %v471 = vadd.f32 %v465, %v469
        %v472 = vadd.f32 %v466, %v470
        %v473 = vperm.slane %v453, 3
        %v474 = vperm.slane %v454, 3
        %v475 = vmul.f32 %v235, %v473
        %v476 = vmul.f32 %v235, %v474
        %v477 = vadd.f32 %v471, %v475
        %v478 = vadd.f32 %v472, %v476
        %v479 = vperm.slane %v453, 4
        %v480 = vperm.slane %v454, 4
        %v481 = vmul.f32 %v239, %v479
        %v482 = vmul.f32 %v239, %v480
        %v483 = vadd.f32 %v477, %v481
        %v484 = vadd.f32 %v478, %v482
        %v485 = vperm.slane %v453, 5
        %v486 = vperm.slane %v454, 5
        %v487 = vmul.f32 %v243, %v485
        %v488 = vmul.f32 %v243, %v486
        %v489 = vadd.f32 %v483, %v487
        %v490 = vadd.f32 %v484, %v488
        %v491 = vperm.slane %v453, 6
        %v492 = vperm.slane %v454, 6
        %v493 = vmul.f32 %v247, %v491
        %v494 = vmul.f32 %v247, %v492
        %v495 = vadd.f32 %v489, %v493
        %v496 = vadd.f32 %v490, %v494
        %v497 = vperm.slane %v453, 7
        %v498 = vperm.slane %v454, 7
        %v499 = vmul.f32 %v251, %v497
        %v500 = vmul.f32 %v251, %v498
        %v501 = vadd.f32 %v495, %v499
        %v502 = vadd.f32 %v496, %v500
        %v503 = vtanh.pop %v501
        %v504 = vtanh.pop %v502
        %v505 = vperm.slane %v503, 0
        %v506 = vperm.slane %v504, 0
        %v507 = vmul.f32 %v223, %v505
        %v508 = vmul.f32 %v223, %v506
        %v509 = vadd.f32 %v218, %v507
        %v510 = vadd.f32 %v219, %v508
        %v511 = vperm.slane %v503, 1
        %v512 = vperm.slane %v504, 1
        %v513 = vmul.f32 %v227, %v511
        %v514 = vmul.f32 %v227, %v512
        %v515 = vadd.f32 %v509, %v513
        %v516 = vadd.f32 %v510, %v514
        %v517 = vperm.slane %v503, 2
        %v518 = vperm.slane %v504, 2
        %v519 = vmul.f32 %v231, %v517
        %v520 = vmul.f32 %v231, %v518
        %v521 = vadd.f32 %v515, %v519
        %v522 = vadd.f32 %v516, %v520
        %v523 = vperm.slane %v503, 3
        %v524 = vperm.slane %v504, 3
        %v525 = vmul.f32 %v235, %v523
        %v526 = vmul.f32 %v235, %v524
        %v527 = vadd.f32 %v521, %v525
        %v528 = vadd.f32 %v522, %v526
        %v529 = vperm.slane %v503, 4
        %v530 = vperm.slane %v504, 4
        %v531 = vmul.f32 %v239, %v529
        %v532 = vmul.f32 %v239, %v530
        %v533 = vadd.f32 %v527, %v531
        %v534 = vadd.f32 %v528, %v532
        %v535 = vperm.slane %v503, 5
        %v536 = vperm.slane %v504, 5
        %v537 = vmul.f32 %v243, %v535
        %v538 = vmul.f32 %v243, %v536
        %v539 = vadd.f32 %v533, %v537
        %v540 = vadd.f32 %v534, %v538
        %v541 = vperm.slane %v503, 6
        %v542 = vperm.slane %v504, 6
        %v543 = vmul.f32 %v247, %v541
        %v544 = vmul.f32 %v247, %v542
        %v545 = vadd.f32 %v539, %v543
        %v546 = vadd.f32 %v540, %v544
        %v547 = vperm.slane %v503, 7
        %v548 = vperm.slane %v504, 7
        %v549 = vmul.f32 %v251, %v547
        %v550 = vmul.f32 %v251, %v548
        %v551 = vadd.f32 %v545, %v549
        %v552 = vadd.f32 %v546, %v550
        %v553 = vtanh.pop %v551
        %v554 = vtanh.pop %v552
        %v555 = vperm.slane %v553, 0
        %v556 = vperm.slane %v554, 0
        %v557 = vmul.f32 %v223, %v555
        %v558 = vmul.f32 %v223, %v556
        %v559 = vadd.f32 %v218, %v557
        %v560 = vadd.f32 %v219, %v558
        %v561 = vperm.slane %v553, 1
        %v562 = vperm.slane %v554, 1
        %v563 = vmul.f32 %v227, %v561
        %v564 = vmul.f32 %v227, %v562
        %v565 = vadd.f32 %v559, %v563
        %v566 = vadd.f32 %v560, %v564
        %v567 = vperm.slane %v553, 2
        %v568 = vperm.slane %v554, 2
        %v569 = vmul.f32 %v231, %v567
        %v570 = vmul.f32 %v231, %v568
        %v571 = vadd.f32 %v565, %v569
        %v572 = vadd.f32 %v566, %v570
        %v573 = vperm.slane %v553, 3
        %v574 = vperm.slane %v554, 3
        %v575 = vmul.f32 %v235, %v573
        %v576 = vmul.f32 %v235, %v574
        %v577 = vadd.f32 %v571, %v575
        %v578 = vadd.f32 %v572, %v576
        %v579 = vperm.slane %v553, 4
        %v580 = vperm.slane %v554, 4
        %v581 = vmul.f32 %v239, %v579
        %v582 = vmul.f32 %v239, %v580
        %v583 = vadd.f32 %v577, %v581
        %v584 = vadd.f32 %v578, %v582
        %v585 = vperm.slane %v553, 5
        %v586 = vperm.slane %v554, 5
        %v587 = vmul.f32 %v243, %v585
        %v588 = vmul.f32 %v243, %v586
        %v589 = vadd.f32 %v583, %v587
        %v590 = vadd.f32 %v584, %v588
        %v591 = vperm.slane %v553, 6
        %v592 = vperm.slane %v554, 6
        %v593 = vmul.f32 %v247, %v591
        %v594 = vmul.f32 %v247, %v592
        %v595 = vadd.f32 %v589, %v593
        %v596 = vadd.f32 %v590, %v594
        %v597 = vperm.slane %v553, 7
        %v598 = vperm.slane %v554, 7
        %v599 = vmul.f32 %v251, %v597
        %v600 = vmul.f32 %v251, %v598
        %v601 = vadd.f32 %v595, %v599
        %v602 = vadd.f32 %v596, %v600
        %v603 = vtanh.pop %v601
        %v604 = vtanh.pop %v602
        %v605 = vperm.slane %v603, 0
        %v606 = vperm.slane %v604, 0
        %v607 = vmul.f32 %v223, %v605
        %v608 = vmul.f32 %v223, %v606
        %v609 = vadd.f32 %v218, %v607
        %v610 = vadd.f32 %v219, %v608
        %v611 = vperm.slane %v603, 1
        %v612 = vperm.slane %v604, 1
        %v613 = vmul.f32 %v227, %v611
        %v614 = vmul.f32 %v227, %v612
        %v615 = vadd.f32 %v609, %v613
        %v616 = vadd.f32 %v610, %v614
        %v617 = vperm.slane %v603, 2
        %v618 = vperm.slane %v604, 2
        %v619 = vmul.f32 %v231, %v617
        %v620 = vmul.f32 %v231, %v618
        %v621 = vadd.f32 %v615, %v619
        %v622 = vadd.f32 %v616, %v620
        %v623 = vperm.slane %v603, 3
        %v624 = vperm.slane %v604, 3
        %v625 = vmul.f32 %v235, %v623
        %v626 = vmul.f32 %v235, %v624
        %v627 = vadd.f32 %v621, %v625
        %v628 = vadd.f32 %v622, %v626
        %v629 = vperm.slane %v603, 4
        %v630 = vperm.slane %v604, 4
        %v631 = vmul.f32 %v239, %v629
        %v632 = vmul.f32 %v239, %v630
        %v633 = vadd.f32 %v627, %v631
        %v634 = vadd.f32 %v628, %v632
        %v635 = vperm.slane %v603, 5
        %v636 = vperm.slane %v604, 5
        %v637 = vmul.f32 %v243, %v635
        %v638 = vmul.f32 %v243, %v636
        %v639 = vadd.f32 %v633, %v637
        %v640 = vadd.f32 %v634, %v638
        %v641 = vperm.slane %v603, 6
        %v642 = vperm.slane %v604, 6
        %v643 = vmul.f32 %v247, %v641
        %v644 = vmul.f32 %v247, %v642
        %v645 = vadd.f32 %v639, %v643
        %v646 = vadd.f32 %v640, %v644
        %v647 = vperm.slane %v603, 7
        %v648 = vperm.slane %v604, 7
        %v649 = vmul.f32 %v251, %v647
        %v650 = vmul.f32 %v251, %v648
        %v651 = vadd.f32 %v645, %v649
        %v652 = vadd.f32 %v646, %v650
        %v653 = vtanh.pop %v651
        %v654 = vtanh.pop %v652
        %v655 = vperm.slane %v653, 0
        %v656 = vperm.slane %v654, 0
        %v657 = vmul.f32 %v223, %v655
        %v658 = vmul.f32 %v223, %v656
        %v659 = vadd.f32 %v218, %v657
        %v660 = vadd.f32 %v219, %v658
        %v661 = vperm.slane %v653, 1
        %v662 = vperm.slane %v654, 1
        %v663 = vmul.f32 %v227, %v661
        %v664 = vmul.f32 %v227, %v662
        %v665 = vadd.f32 %v659, %v663
        %v666 = vadd.f32 %v660, %v664
        %v667 = vperm.slane %v653, 2
        %v668 = vperm.slane %v654, 2
        %v669 = vmul.f32 %v231, %v667
        %v670 = vmul.f32 %v231, %v668
        %v671 = vadd.f32 %v665, %v669
        %v672 = vadd.f32 %v666, %v670
        %v673 = vperm.slane %v653, 3
        %v674 = vperm.slane %v654, 3
        %v675 = vmul.f32 %v235, %v673
        %v676 = vmul.f32 %v235, %v674
        %v677 = vadd.f32 %v671, %v675
        %v678 = vadd.f32 %v672, %v676
        %v679 = vperm.slane %v653, 4
        %v680 = vperm.slane %v654, 4
        %v681 = vmul.f32 %v239, %v679
        %v682 = vmul.f32 %v239, %v680
        %v683 = vadd.f32 %v677, %v681
        %v684 = vadd.f32 %v678, %v682
        %v685 = vperm.slane %v653, 5
        %v686 = vperm.slane %v654, 5
        %v687 = vmul.f32 %v243, %v685
        %v688 = vmul.f32 %v243, %v686
        %v689 = vadd.f32 %v683, %v687
        %v690 = vadd.f32 %v684, %v688
        %v691 = vperm.slane %v653, 6
        %v692 = vperm.slane %v654, 6
        %v693 = vmul.f32 %v247, %v691
        %v694 = vmul.f32 %v247, %v692
        %v695 = vadd.f32 %v689, %v693
        %v696 = vadd.f32 %v690, %v694
        %v697 = vperm.slane %v653, 7
        %v698 = vperm.slane %v654, 7
        %v699 = vmul.f32 %v251, %v697
        %v700 = vmul.f32 %v251, %v698
        %v701 = vadd.f32 %v695, %v699
        %v702 = vadd.f32 %v696, %v700
        %v703 = vtanh.pop %v701
        %v704 = vtanh.pop %v702
        %v705 = vperm.slane %v703, 0
        %v706 = vperm.slane %v704, 0
        %v707 = vmul.f32 %v223, %v705
        %v708 = vmul.f32 %v223, %v706
        %v709 = vadd.f32 %v218, %v707
        %v710 = vadd.f32 %v219, %v708
        %v711 = vperm.slane %v703, 1
        %v712 = vperm.slane %v704, 1
        %v713 = vmul.f32 %v227, %v711
        %v714 = vmul.f32 %v227, %v712
        %v715 = vadd.f32 %v709, %v713
        %v716 = vadd.f32 %v710, %v714
        %v717 = vperm.slane %v703, 2
        %v718 = vperm.slane %v704, 2
        %v719 = vmul.f32 %v231, %v717
        %v720 = vmul.f32 %v231, %v718
        %v721 = vadd.f32 %v715, %v719
        %v722 = vadd.f32 %v716, %v720
        %v723 = vperm.slane %v703, 3
        %v724 = vperm.slane %v704, 3
        %v725 = vmul.f32 %v235, %v723
        %v726 = vmul.f32 %v235, %v724
        %v727 = vadd.f32 %v721, %v725
        %v728 = vadd.f32 %v722, %v726
        %v729 = vperm.slane %v703, 4
        %v730 = vperm.slane %v704, 4
        %v731 = vmul.f32 %v239, %v729
        %v732 = vmul.f32 %v239, %v730
        %v733 = vadd.f32 %v727, %v731
        %v734 = vadd.f32 %v728, %v732
        %v735 = vperm.slane %v703, 5
        %v736 = vperm.slane %v704, 5
        %v737 = vmul.f32 %v243, %v735
        %v738 = vmul.f32 %v243, %v736
        %v739 = vadd.f32 %v733, %v737
        %v740 = vadd.f32 %v734, %v738
        %v741 = vperm.slane %v703, 6
        %v742 = vperm.slane %v704, 6
        %v743 = vmul.f32 %v247, %v741
        %v744 = vmul.f32 %v247, %v742
        %v745 = vadd.f32 %v739, %v743
        %v746 = vadd.f32 %v740, %v744
        %v747 = vperm.slane %v703, 7
        %v748 = vperm.slane %v704, 7
        %v749 = vmul.f32 %v251, %v747
        %v750 = vmul.f32 %v251, %v748
        %v751 = vadd.f32 %v745, %v749
        %v752 = vadd.f32 %v746, %v750
        %v753 = vtanh.pop %v751
        %v754 = vtanh.pop %v752
        %v755 = vperm.slane %v753, 0
        %v756 = vperm.slane %v754, 0
        %v757 = vmul.f32 %v223, %v755
        %v758 = vmul.f32 %v223, %v756
        %v759 = vadd.f32 %v218, %v757
        %v760 = vadd.f32 %v219, %v758
        %v761 = vperm.slane %v753, 1
        %v762 = vperm.slane %v754, 1
        %v763 = vmul.f32 %v227, %v761
        %v764 = vmul.f32 %v227, %v762
        %v765 = vadd.f32 %v759, %v763
        %v766 = vadd.f32 %v760, %v764
        %v767 = vperm.slane %v753, 2
        %v768 = vperm.slane %v754, 2
        %v769 = vmul.f32 %v231, %v767
        %v770 = vmul.f32 %v231, %v768
        %v771 = vadd.f32 %v765, %v769
        %v772 = vadd.f32 %v766, %v770
        %v773 = vperm.slane %v753, 3
        %v774 = vperm.slane %v754, 3
        %v775 = vmul.f32 %v235, %v773
        %v776 = vmul.f32 %v235, %v774
        %v777 = vadd.f32 %v771, %v775
        %v778 = vadd.f32 %v772, %v776
        %v779 = vperm.slane %v753, 4
        %v780 = vperm.slane %v754, 4
        %v781 = vmul.f32 %v239, %v779
        %v782 = vmul.f32 %v239, %v780
        %v783 = vadd.f32 %v777, %v781
        %v784 = vadd.f32 %v778, %v782
        %v785 = vperm.slane %v753, 5
        %v786 = vperm.slane %v754, 5
        %v787 = vmul.f32 %v243, %v785
        %v788 = vmul.f32 %v243, %v786
        %v789 = vadd.f32 %v783, %v787
        %v790 = vadd.f32 %v784, %v788
        %v791 = vperm.slane %v753, 6
        %v792 = vperm.slane %v754, 6
        %v793 = vmul.f32 %v247, %v791
        %v794 = vmul.f32 %v247, %v792
        %v795 = vadd.f32 %v789, %v793
        %v796 = vadd.f32 %v790, %v794
        %v797 = vperm.slane %v753, 7
        %v798 = vperm.slane %v754, 7
        %v799 = vmul.f32 %v251, %v797
        %v800 = vmul.f32 %v251, %v798
        %v801 = vadd.f32 %v795, %v799
        %v802 = vadd.f32 %v796, %v800
        %v803 = vtanh.pop %v801
        %v804 = vtanh.pop %v802
        %v805 = vperm.slane %v803, 0
        %v806 = vperm.slane %v804, 0
        %v807 = vmul.f32 %v223, %v805
        %v808 = vmul.f32 %v223, %v806
        %v809 = vadd.f32 %v218, %v807
        %v810 = vadd.f32 %v219, %v808
        %v811 = vperm.slane %v803, 1
        %v812 = vperm.slane %v804, 1
        %v813 = vmul.f32 %v227, %v811
        %v814 = vmul.f32 %v227, %v812
        %v815 = vadd.f32 %v809, %v813
        %v816 = vadd.f32 %v810, %v814
        %v817 = vperm.slane %v803, 2
        %v818 = vperm.slane %v804, 2
        %v819 = vmul.f32 %v231, %v817
        %v820 = vmul.f32 %v231, %v818
        %v821 = vadd.f32 %v815, %v819
        %v822 = vadd.f32 %v816, %v820
        %v823 = vperm.slane %v803, 3
        %v824 = vperm.slane %v804, 3
        %v825 = vmul.f32 %v235, %v823
        %v826 = vmul.f32 %v235, %v824
        %v827 = vadd.f32 %v821, %v825
        %v828 = vadd.f32 %v822, %v826
        %v829 = vperm.slane %v803, 4
        %v830 = vperm.slane %v804, 4
        %v831 = vmul.f32 %v239, %v829
        %v832 = vmul.f32 %v239, %v830
        %v833 = vadd.f32 %v827, %v831
        %v834 = vadd.f32 %v828, %v832
        %v835 = vperm.slane %v803, 5
        %v836 = vperm.slane %v804, 5
        %v837 = vmul.f32 %v243, %v835
        %v838 = vmul.f32 %v243, %v836
        %v839 = vadd.f32 %v833, %v837
        %v840 = vadd.f32 %v834, %v838
        %v841 = vperm.slane %v803, 6
        %v842 = vperm.slane %v804, 6
        %v843 = vmul.f32 %v247, %v841
        %v844 = vmul.f32 %v247, %v842
        %v845 = vadd.f32 %v839, %v843
        %v846 = vadd.f32 %v840, %v844
        %v847 = vperm.slane %v803, 7
        %v848 = vperm.slane %v804, 7
        %v849 = vmul.f32 %v251, %v847
        %v850 = vmul.f32 %v251, %v848
        %v851 = vadd.f32 %v845, %v849
        %v852 = vadd.f32 %v846, %v850
        %v853 = vtanh.pop %v851
        %v854 = vtanh.pop %v852
        %v855 = vperm.slane %v853, 0
        %v856 = vperm.slane %v854, 0
        %v857 = vmul.f32 %v223, %v855
        %v858 = vmul.f32 %v223, %v856
        %v859 = vadd.f32 %v218, %v857
        %v860 = vadd.f32 %v219, %v858
        %v861 = vperm.slane %v853, 1
        %v862 = vperm.slane %v854, 1
        %v863 = vmul.f32 %v227, %v861
        %v864 = vmul.f32 %v227, %v862
        %v865 = vadd.f32 %v859, %v863
        %v866 = vadd.f32 %v860, %v864
        %v867 = vperm.slane %v853, 2
        %v868 = vperm.slane %v854, 2
        %v869 = vmul.f32 %v231, %v867
        %v870 = vmul.f32 %v231, %v868
        %v871 = vadd.f32 %v865, %v869
        %v872 = vadd.f32 %v866, %v870
        %v873 = vperm.slane %v853, 3
        %v874 = vperm.slane %v854, 3
        %v875 = vmul.f32 %v235, %v873
        %v876 = vmul.f32 %v235, %v874
        %v877 = vadd.f32 %v871, %v875
        %v878 = vadd.f32 %v872, %v876
        %v879 = vperm.slane %v853, 4
        %v880 = vperm.slane %v854, 4
        %v881 = vmul.f32 %v239, %v879
        %v882 = vmul.f32 %v239, %v880
        %v883 = vadd.f32 %v877, %v881
        %v884 = vadd.f32 %v878, %v882
        %v885 = vperm.slane %v853, 5
        %v886 = vperm.slane %v854, 5
        %v887 = vmul.f32 %v243, %v885
        %v888 = vmul.f32 %v243, %v886
        %v889 = vadd.f32 %v883, %v887
        %v890 = vadd.f32 %v884, %v888
        %v891 = vperm.slane %v853, 6
        %v892 = vperm.slane %v854, 6
        %v893 = vmul.f32 %v247, %v891
        %v894 = vmul.f32 %v247, %v892
        %v895 = vadd.f32 %v889, %v893
        %v896 = vadd.f32 %v890, %v894
        %v897 = vperm.slane %v853, 7
        %v898 = vperm.slane %v854, 7
        %v899 = vmul.f32 %v251, %v897
        %v900 = vmul.f32 %v251, %v898
        %v901 = vadd.f32 %v895, %v899
        %v902 = vadd.f32 %v896, %v900
        %v903 = vtanh.pop %v901
        %v904 = vtanh.pop %v902
        %v905 = vperm.slane %v903, 0
        %v906 = vperm.slane %v904, 0
        %v907 = vmul.f32 %v223, %v905
        %v908 = vmul.f32 %v223, %v906
        %v909 = vadd.f32 %v218, %v907
        %v910 = vadd.f32 %v219, %v908
        %v911 = vperm.slane %v903, 1
        %v912 = vperm.slane %v904, 1
        %v913 = vmul.f32 %v227, %v911
        %v914 = vmul.f32 %v227, %v912
        %v915 = vadd.f32 %v909, %v913
        %v916 = vadd.f32 %v910, %v914
        %v917 = vperm.slane %v903, 2
        %v918 = vperm.slane %v904, 2
        %v919 = vmul.f32 %v231, %v917
        %v920 = vmul.f32 %v231, %v918
        %v921 = vadd.f32 %v915, %v919
        %v922 = vadd.f32 %v916, %v920
        %v923 = vperm.slane %v903, 3
        %v924 = vperm.slane %v904, 3
        %v925 = vmul.f32 %v235, %v923
        %v926 = vmul.f32 %v235, %v924
        %v927 = vadd.f32 %v921, %v925
        %v928 = vadd.f32 %v922, %v926
        %v929 = vperm.slane %v903, 4
        %v930 = vperm.slane %v904, 4
        %v931 = vmul.f32 %v239, %v929
        %v932 = vmul.f32 %v239, %v930
        %v933 = vadd.f32 %v927, %v931
        %v934 = vadd.f32 %v928, %v932
        %v935 = vperm.slane %v903, 5
        %v936 = vperm.slane %v904, 5
        %v937 = vmul.f32 %v243, %v935
        %v938 = vmul.f32 %v243, %v936
        %v939 = vadd.f32 %v933, %v937
        %v940 = vadd.f32 %v934, %v938
        %v941 = vperm.slane %v903, 6
        %v942 = vperm.slane %v904, 6
        %v943 = vmul.f32 %v247, %v941
        %v944 = vmul.f32 %v247, %v942
        %v945 = vadd.f32 %v939, %v943
        %v946 = vadd.f32 %v940, %v944
        %v947 = vperm.slane %v903, 7
        %v948 = vperm.slane %v904, 7
        %v949 = vmul.f32 %v251, %v947
        %v950 = vmul.f32 %v251, %v948
        %v951 = vadd.f32 %v945, %v949
        %v952 = vadd.f32 %v946, %v950
        %v953 = vtanh.pop %v951
        %v954 = vtanh.pop %v952
        %v955 = vperm.slane %v953, 0
        %v956 = vperm.slane %v954, 0
        %v957 = vmul.f32 %v223, %v955
        %v958 = vmul.f32 %v223, %v956
        %v959 = vadd.f32 %v218, %v957
        %v960 = vadd.f32 %v219, %v958
        %v961 = vperm.slane %v953, 1
        %v962 = vperm.slane %v954, 1
        %v963 = vmul.f32 %v227, %v961
        %v964 = vmul.f32 %v227, %v962
        %v965 = vadd.f32 %v959, %v963
        %v966 = vadd.f32 %v960, %v964
        %v967 = vperm.slane %v953, 2
        %v968 = vperm.slane %v954, 2
        %v969 = vmul.f32 %v231, %v967
        %v970 = vmul.f32 %v231, %v968
        %v971 = vadd.f32 %v965, %v969
        %v972 = vadd.f32 %v966, %v970
        %v973 = vperm.slane %v953, 3
        %v974 = vperm.slane %v954, 3
        %v975 = vmul.f32 %v235, %v973
        %v976 = vmul.f32 %v235, %v974
        %v977 = vadd.f32 %v971, %v975
        %v978 = vadd.f32 %v972, %v976
        %v979 = vperm.slane %v953, 4
        %v980 = vperm.slane %v954, 4
        %v981 = vmul.f32 %v239, %v979
        %v982 = vmul.f32 %v239, %v980
        %v983 = vadd.f32 %v977, %v981
        %v984 = vadd.f32 %v978, %v982
        %v985 = vperm.slane %v953, 5
        %v986 = vperm.slane %v954, 5
        %v987 = vmul.f32 %v243, %v985
        %v988 = vmul.f32 %v243, %v986
        %v989 = vadd.f32 %v983, %v987
        %v990 = vadd.f32 %v984, %v988
        %v991 = vperm.slane %v953, 6
        %v992 = vperm.slane %v954, 6
        %v993 = vmul.f32 %v247, %v991
        %v994 = vmul.f32 %v247, %v992
        %v995 = vadd.f32 %v989, %v993
        %v996 = vadd.f32 %v990, %v994
        %v997 = vperm.slane %v953, 7
        %v998 = vperm.slane %v954, 7
        %v999 = vmul.f32 %v251, %v997
        %v1000 = vmul.f32 %v251, %v998
        %v1001 = vadd.f32 %v995, %v999
        %v1002 = vadd.f32 %v996, %v1000
        %v1003 = vtanh.pop %v1001
        %v1004 = vtanh.pop %v1002
        %v1005 = vperm.slane %v1003, 0
        %v1006 = vperm.slane %v1004, 0
        %v1007 = vmul.f32 %v223, %v1005
        %v1008 = vmul.f32 %v223, %v1006
        %v1009 = vadd.f32 %v218, %v1007
        %v1010 = vadd.f32 %v219, %v1008
        %v1011 = vperm.slane %v1003, 1
        %v1012 = vperm.slane %v1004, 1
        %v1013 = vmul.f32 %v227, %v1011
        %v1014 = vmul.f32 %v227, %v1012
        %v1015 = vadd.f32 %v1009, %v1013
        %v1016 = vadd.f32 %v1010, %v1014
        %v1017 = vperm.slane %v1003, 2
        %v1018 = vperm.slane %v1004, 2
        %v1019 = vmul.f32 %v231, %v1017
        %v1020 = vmul.f32 %v231, %v1018
        %v1021 = vadd.f32 %v1015, %v1019
        %v1022 = vadd.f32 %v1016, %v1020
        %v1023 = vperm.slane %v1003, 3
        %v1024 = vperm.slane %v1004, 3
        %v1025 = vmul.f32 %v235, %v1023
        %v1026 = vmul.f32 %v235, %v1024
        %v1027 = vadd.f32 %v1021, %v1025
        %v1028 = vadd.f32 %v1022, %v1026
        %v1029 = vperm.slane %v1003, 4
        %v1030 = vperm.slane %v1004, 4
        %v1031 = vmul.f32 %v239, %v1029
        %v1032 = vmul.f32 %v239, %v1030
        %v1033 = vadd.f32 %v1027, %v1031
        %v1034 = vadd.f32 %v1028, %v1032
        %v1035 = vperm.slane %v1003, 5
        %v1036 = vperm.slane %v1004, 5
        %v1037 = vmul.f32 %v243, %v1035
        %v1038 = vmul.f32 %v243, %v1036
        %v1039 = vadd.f32 %v1033, %v1037
        %v1040 = vadd.f32 %v1034, %v1038
        %v1041 = vperm.slane %v1003, 6
        %v1042 = vperm.slane %v1004, 6
        %v1043 = vmul.f32 %v247, %v1041
        %v1044 = vmul.f32 %v247, %v1042
        %v1045 = vadd.f32 %v1039, %v1043
        %v1046 = vadd.f32 %v1040, %v1044
        %v1047 = vperm.slane %v1003, 7
        %v1048 = vperm.slane %v1004, 7
        %v1049 = vmul.f32 %v251, %v1047
        %v1050 = vmul.f32 %v251, %v1048
        %v1051 = vadd.f32 %v1045, %v1049
        %v1052 = vadd.f32 %v1046, %v1050
        %v1053 = vtanh.pop %v1051
        %v1054 = vtanh.pop %v1052
        %v1055 = vperm.slane %v1053, 0
        %v1056 = vperm.slane %v1054, 0
        %v1057 = vmul.f32 %v223, %v1055
        %v1058 = vmul.f32 %v223, %v1056
        %v1059 = vadd.f32 %v218, %v1057
        %v1060 = vadd.f32 %v219, %v1058
        %v1061 = vperm.slane %v1053, 1
        %v1062 = vperm.slane %v1054, 1
        %v1063 = vmul.f32 %v227, %v1061
        %v1064 = vmul.f32 %v227, %v1062
        %v1065 = vadd.f32 %v1059, %v1063
        %v1066 = vadd.f32 %v1060, %v1064
        %v1067 = vperm.slane %v1053, 2
        %v1068 = vperm.slane %v1054, 2
        %v1069 = vmul.f32 %v231, %v1067
        %v1070 = vmul.f32 %v231, %v1068
        %v1071 = vadd.f32 %v1065, %v1069
        %v1072 = vadd.f32 %v1066, %v1070
        %v1073 = vperm.slane %v1053, 3
        %v1074 = vperm.slane %v1054, 3
        %v1075 = vmul.f32 %v235, %v1073
        %v1076 = vmul.f32 %v235, %v1074
        %v1077 = vadd.f32 %v1071, %v1075
        %v1078 = vadd.f32 %v1072, %v1076
        %v1079 = vperm.slane %v1053, 4
        %v1080 = vperm.slane %v1054, 4
        %v1081 = vmul.f32 %v239, %v1079
        %v1082 = vmul.f32 %v239, %v1080
        %v1083 = vadd.f32 %v1077, %v1081
        %v1084 = vadd.f32 %v1078, %v1082
        %v1085 = vperm.slane %v1053, 5
        %v1086 = vperm.slane %v1054, 5
        %v1087 = vmul.f32 %v243, %v1085
        %v1088 = vmul.f32 %v243, %v1086
        %v1089 = vadd.f32 %v1083, %v1087
        %v1090 = vadd.f32 %v1084, %v1088
        %v1091 = vperm.slane %v1053, 6
        %v1092 = vperm.slane %v1054, 6
        %v1093 = vmul.f32 %v247, %v1091
        %v1094 = vmul.f32 %v247, %v1092
        %v1095 = vadd.f32 %v1089, %v1093
        %v1096 = vadd.f32 %v1090, %v1094
        %v1097 = vperm.slane %v1053, 7
        %v1098 = vperm.slane %v1054, 7
        %v1099 = vmul.f32 %v251, %v1097
        %v1100 = vmul.f32 %v251, %v1098
        %v1101 = vadd.f32 %v1095, %v1099
        %v1102 = vadd.f32 %v1096, %v1100
        %v1103 = vtanh.pop %v1101
        %v1104 = vtanh.pop %v1102
        %v1105 = vperm.slane %v1103, 0
        %v1106 = vperm.slane %v1104, 0
        %v1107 = vmul.f32 %v223, %v1105
        %v1108 = vmul.f32 %v223, %v1106
        %v1109 = vadd.f32 %v218, %v1107
        %v1110 = vadd.f32 %v219, %v1108
        %v1111 = vperm.slane %v1103, 1
        %v1112 = vperm.slane %v1104, 1
        %v1113 = vmul.f32 %v227, %v1111
        %v1114 = vmul.f32 %v227, %v1112
        %v1115 = vadd.f32 %v1109, %v1113
        %v1116 = vadd.f32 %v1110, %v1114
        %v1117 = vperm.slane %v1103, 2
        %v1118 = vperm.slane %v1104, 2
        %v1119 = vmul.f32 %v231, %v1117
        %v1120 = vmul.f32 %v231, %v1118
        %v1121 = vadd.f32 %v1115, %v1119
        %v1122 = vadd.f32 %v1116, %v1120
        %v1123 = vperm.slane %v1103, 3
        %v1124 = vperm.slane %v1104, 3
        %v1125 = vmul.f32 %v235, %v1123
        %v1126 = vmul.f32 %v235, %v1124
        %v1127 = vadd.f32 %v1121, %v1125
        %v1128 = vadd.f32 %v1122, %v1126
        %v1129 = vperm.slane %v1103, 4
        %v1130 = vperm.slane %v1104, 4
        %v1131 = vmul.f32 %v239, %v1129
        %v1132 = vmul.f32 %v239, %v1130
        %v1133 = vadd.f32 %v1127, %v1131
        %v1134 = vadd.f32 %v1128, %v1132
        %v1135 = vperm.slane %v1103, 5
        %v1136 = vperm.slane %v1104, 5
        %v1137 = vmul.f32 %v243, %v1135
        %v1138 = vmul.f32 %v243, %v1136
        %v1139 = vadd.f32 %v1133, %v1137
        %v1140 = vadd.f32 %v1134, %v1138
        %v1141 = vperm.slane %v1103, 6
        %v1142 = vperm.slane %v1104, 6
        %v1143 = vmul.f32 %v247, %v1141
        %v1144 = vmul.f32 %v247, %v1142
        %v1145 = vadd.f32 %v1139, %v1143
        %v1146 = vadd.f32 %v1140, %v1144
        %v1147 = vperm.slane %v1103, 7
        %v1148 = vperm.slane %v1104, 7
        %v1149 = vmul.f32 %v251, %v1147
        %v1150 = vmul.f32 %v251, %v1148
        %v1151 = vadd.f32 %v1145, %v1149
        %v1152 = vadd.f32 %v1146, %v1150
        %v1153 = vtanh.pop %v1151
        %v1154 = vtanh.pop %v1152
        %v1155 = vperm.slane %v1153, 0
        %v1156 = vperm.slane %v1154, 0
        %v1157 = vmul.f32 %v223, %v1155
        %v1158 = vmul.f32 %v223, %v1156
        %v1159 = vadd.f32 %v218, %v1157
        %v1160 = vadd.f32 %v219, %v1158
        %v1161 = vperm.slane %v1153, 1
        %v1162 = vperm.slane %v1154, 1
        %v1163 = vmul.f32 %v227, %v1161
        %v1164 = vmul.f32 %v227, %v1162
        %v1165 = vadd.f32 %v1159, %v1163
        %v1166 = vadd.f32 %v1160, %v1164
        %v1167 = vperm.slane %v1153, 2
        %v1168 = vperm.slane %v1154, 2
        %v1169 = vmul.f32 %v231, %v1167
        %v1170 = vmul.f32 %v231, %v1168
        %v1171 = vadd.f32 %v1165, %v1169
        %v1172 = vadd.f32 %v1166, %v1170
        %v1173 = vperm.slane %v1153, 3
        %v1174 = vperm.slane %v1154, 3
        %v1175 = vmul.f32 %v235, %v1173
        %v1176 = vmul.f32 %v235, %v1174
        %v1177 = vadd.f32 %v1171, %v1175
        %v1178 = vadd.f32 %v1172, %v1176
        %v1179 = vperm.slane %v1153, 4
        %v1180 = vperm.slane %v1154, 4
        %v1181 = vmul.f32 %v239, %v1179
        %v1182 = vmul.f32 %v239, %v1180
        %v1183 = vadd.f32 %v1177, %v1181
        %v1184 = vadd.f32 %v1178, %v1182
        %v1185 = vperm.slane %v1153, 5
        %v1186 = vperm.slane %v1154, 5
        %v1187 = vmul.f32 %v243, %v1185
        %v1188 = vmul.f32 %v243, %v1186
        %v1189 = vadd.f32 %v1183, %v1187
        %v1190 = vadd.f32 %v1184, %v1188
        %v1191 = vperm.slane %v1153, 6
        %v1192 = vperm.slane %v1154, 6
        %v1193 = vmul.f32 %v247, %v1191
        %v1194 = vmul.f32 %v247, %v1192
        %v1195 = vadd.f32 %v1189, %v1193
        %v1196 = vadd.f32 %v1190, %v1194
        %v1197 = vperm.slane %v1153, 7
        %v1198 = vperm.slane %v1154, 7
        %v1199 = vmul.f32 %v251, %v1197
        %v1200 = vmul.f32 %v251, %v1198
        %v1201 = vadd.f32 %v1195, %v1199
        %v1202 = vadd.f32 %v1196, %v1200
        %v1203 = vtanh.pop %v1201
        %v1204 = vtanh.pop %v1202
        %v1205 = vperm.slane %v1203, 0
        %v1206 = vperm.slane %v1204, 0
        %v1207 = vmul.f32 %v223, %v1205
        %v1208 = vmul.f32 %v223, %v1206
        %v1209 = vadd.f32 %v218, %v1207
        %v1210 = vadd.f32 %v219, %v1208
        %v1211 = vperm.slane %v1203, 1
        %v1212 = vperm.slane %v1204, 1
        %v1213 = vmul.f32 %v227, %v1211
        %v1214 = vmul.f32 %v227, %v1212
        %v1215 = vadd.f32 %v1209, %v1213
        %v1216 = vadd.f32 %v1210, %v1214
        %v1217 = vperm.slane %v1203, 2
        %v1218 = vperm.slane %v1204, 2
        %v1219 = vmul.f32 %v231, %v1217
        %v1220 = vmul.f32 %v231, %v1218
        %v1221 = vadd.f32 %v1215, %v1219
        %v1222 = vadd.f32 %v1216, %v1220
        %v1223 = vperm.slane %v1203, 3
        %v1224 = vperm.slane %v1204, 3
        %v1225 = vmul.f32 %v235, %v1223
        %v1226 = vmul.f32 %v235, %v1224
        %v1227 = vadd.f32 %v1221, %v1225
        %v1228 = vadd.f32 %v1222, %v1226
        %v1229 = vperm.slane %v1203, 4
        %v1230 = vperm.slane %v1204, 4
        %v1231 = vmul.f32 %v239, %v1229
        %v1232 = vmul.f32 %v239, %v1230
        %v1233 = vadd.f32 %v1227, %v1231
        %v1234 = vadd.f32 %v1228, %v1232
        %v1235 = vperm.slane %v1203, 5
        %v1236 = vperm.slane %v1204, 5
        %v1237 = vmul.f32 %v243, %v1235
        %v1238 = vmul.f32 %v243, %v1236
        %v1239 = vadd.f32 %v1233, %v1237
        %v1240 = vadd.f32 %v1234, %v1238
        %v1241 = vperm.slane %v1203, 6
        %v1242 = vperm.slane %v1204, 6
        %v1243 = vmul.f32 %v247, %v1241
        %v1244 = vmul.f32 %v247, %v1242
        %v1245 = vadd.f32 %v1239, %v1243
        %v1246 = vadd.f32 %v1240, %v1244
        %v1247 = vperm.slane %v1203, 7
        %v1248 = vperm.slane %v1204, 7
        %v1249 = vmul.f32 %v251, %v1247
        %v1250 = vmul.f32 %v251, %v1248
        %v1251 = vadd.f32 %v1245, %v1249
        %v1252 = vadd.f32 %v1246, %v1250
        %v1253 = vtanh.pop %v1251
        %v1254 = vtanh.pop %v1252
        %v1255 = vperm.slane %v1253, 0
        %v1256 = vperm.slane %v1254, 0
        %v1257 = vmul.f32 %v223, %v1255
        %v1258 = vmul.f32 %v223, %v1256
        %v1259 = vadd.f32 %v218, %v1257
        %v1260 = vadd.f32 %v219, %v1258
        %v1261 = vperm.slane %v1253, 1
        %v1262 = vperm.slane %v1254, 1
        %v1263 = vmul.f32 %v227, %v1261
        %v1264 = vmul.f32 %v227, %v1262
        %v1265 = vadd.f32 %v1259, %v1263
        %v1266 = vadd.f32 %v1260, %v1264
        %v1267 = vperm.slane %v1253, 2
        %v1268 = vperm.slane %v1254, 2
        %v1269 = vmul.f32 %v231, %v1267
        %v1270 = vmul.f32 %v231, %v1268
        %v1271 = vadd.f32 %v1265, %v1269
        %v1272 = vadd.f32 %v1266, %v1270
        %v1273 = vperm.slane %v1253, 3
        %v1274 = vperm.slane %v1254, 3
        %v1275 = vmul.f32 %v235, %v1273
        %v1276 = vmul.f32 %v235, %v1274
        %v1277 = vadd.f32 %v1271, %v1275
        %v1278 = vadd.f32 %v1272, %v1276
        %v1279 = vperm.slane %v1253, 4
        %v1280 = vperm.slane %v1254, 4
        %v1281 = vmul.f32 %v239, %v1279
        %v1282 = vmul.f32 %v239, %v1280
        %v1283 = vadd.f32 %v1277, %v1281
        %v1284 = vadd.f32 %v1278, %v1282
        %v1285 = vperm.slane %v1253, 5
        %v1286 = vperm.slane %v1254, 5
        %v1287 = vmul.f32 %v243, %v1285
        %v1288 = vmul.f32 %v243, %v1286
        %v1289 = vadd.f32 %v1283, %v1287
        %v1290 = vadd.f32 %v1284, %v1288
        %v1291 = vperm.slane %v1253, 6
        %v1292 = vperm.slane %v1254, 6
        %v1293 = vmul.f32 %v247, %v1291
        %v1294 = vmul.f32 %v247, %v1292
        %v1295 = vadd.f32 %v1289, %v1293
        %v1296 = vadd.f32 %v1290, %v1294
        %v1297 = vperm.slane %v1253, 7
        %v1298 = vperm.slane %v1254, 7
        %v1299 = vmul.f32 %v251, %v1297
        %v1300 = vmul.f32 %v251, %v1298
        %v1301 = vadd.f32 %v1295, %v1299
        %v1302 = vadd.f32 %v1296, %v1300
        %v1303 = vtanh.pop %v1301
        %v1304 = vtanh.pop %v1302
        %v1305 = vperm.slane %v1303, 0
        %v1306 = vperm.slane %v1304, 0
        %v1307 = vmul.f32 %v223, %v1305
        %v1308 = vmul.f32 %v223, %v1306
        %v1309 = vadd.f32 %v218, %v1307
        %v1310 = vadd.f32 %v219, %v1308
        %v1311 = vperm.slane %v1303, 1
        %v1312 = vperm.slane %v1304, 1
        %v1313 = vmul.f32 %v227, %v1311
        %v1314 = vmul.f32 %v227, %v1312
        %v1315 = vadd.f32 %v1309, %v1313
        %v1316 = vadd.f32 %v1310, %v1314
        %v1317 = vperm.slane %v1303, 2
        %v1318 = vperm.slane %v1304, 2
        %v1319 = vmul.f32 %v231, %v1317
        %v1320 = vmul.f32 %v231, %v1318
        %v1321 = vadd.f32 %v1315, %v1319
        %v1322 = vadd.f32 %v1316, %v1320
        %v1323 = vperm.slane %v1303, 3
        %v1324 = vperm.slane %v1304, 3
        %v1325 = vmul.f32 %v235, %v1323
        %v1326 = vmul.f32 %v235, %v1324
        %v1327 = vadd.f32 %v1321, %v1325
        %v1328 = vadd.f32 %v1322, %v1326
        %v1329 = vperm.slane %v1303, 4
        %v1330 = vperm.slane %v1304, 4
        %v1331 = vmul.f32 %v239, %v1329
        %v1332 = vmul.f32 %v239, %v1330
        %v1333 = vadd.f32 %v1327, %v1331
        %v1334 = vadd.f32 %v1328, %v1332
        %v1335 = vperm.slane %v1303, 5
        %v1336 = vperm.slane %v1304, 5
        %v1337 = vmul.f32 %v243, %v1335
        %v1338 = vmul.f32 %v243, %v1336
        %v1339 = vadd.f32 %v1333, %v1337
        %v1340 = vadd.f32 %v1334, %v1338
        %v1341 = vperm.slane %v1303, 6
        %v1342 = vperm.slane %v1304, 6
        %v1343 = vmul.f32 %v247, %v1341
        %v1344 = vmul.f32 %v247, %v1342
        %v1345 = vadd.f32 %v1339, %v1343
        %v1346 = vadd.f32 %v1340, %v1344
        %v1347 = vperm.slane %v1303, 7
        %v1348 = vperm.slane %v1304, 7
        %v1349 = vmul.f32 %v251, %v1347
        %v1350 = vmul.f32 %v251, %v1348
        %v1351 = vadd.f32 %v1345, %v1349
        %v1352 = vadd.f32 %v1346, %v1350
        %v1353 = vtanh.pop %v1351
        %v1354 = vtanh.pop %v1352
        %v1355 = vperm.slane %v1353, 0
        %v1356 = vperm.slane %v1354, 0
        %v1357 = vmul.f32 %v223, %v1355
        %v1358 = vmul.f32 %v223, %v1356
        %v1359 = vadd.f32 %v218, %v1357
        %v1360 = vadd.f32 %v219, %v1358
        %v1361 = vperm.slane %v1353, 1
        %v1362 = vperm.slane %v1354, 1
        %v1363 = vmul.f32 %v227, %v1361
        %v1364 = vmul.f32 %v227, %v1362
        %v1365 = vadd.f32 %v1359, %v1363
        %v1366 = vadd.f32 %v1360, %v1364
        %v1367 = vperm.slane %v1353, 2
        %v1368 = vperm.slane %v1354, 2
        %v1369 = vmul.f32 %v231, %v1367
        %v1370 = vmul.f32 %v231, %v1368
        %v1371 = vadd.f32 %v1365, %v1369
        %v1372 = vadd.f32 %v1366, %v1370
        %v1373 = vperm.slane %v1353, 3
        %v1374 = vperm.slane %v1354, 3
        %v1375 = vmul.f32 %v235, %v1373
        %v1376 = vmul.f32 %v235, %v1374
        %v1377 = vadd.f32 %v1371, %v1375
        %v1378 = vadd.f32 %v1372, %v1376
        %v1379 = vperm.slane %v1353, 4
        %v1380 = vperm.slane %v1354, 4
        %v1381 = vmul.f32 %v239, %v1379
        %v1382 = vmul.f32 %v239, %v1380
        %v1383 = vadd.f32 %v1377, %v1381
        %v1384 = vadd.f32 %v1378, %v1382
        %v1385 = vperm.slane %v1353, 5
        %v1386 = vperm.slane %v1354, 5
        %v1387 = vmul.f32 %v243, %v1385
        %v1388 = vmul.f32 %v243, %v1386
        %v1389 = vadd.f32 %v1383, %v1387
        %v1390 = vadd.f32 %v1384, %v1388
        %v1391 = vperm.slane %v1353, 6
        %v1392 = vperm.slane %v1354, 6
        %v1393 = vmul.f32 %v247, %v1391
        %v1394 = vmul.f32 %v247, %v1392
        %v1395 = vadd.f32 %v1389, %v1393
        %v1396 = vadd.f32 %v1390, %v1394
        %v1397 = vperm.slane %v1353, 7
        %v1398 = vperm.slane %v1354, 7
        %v1399 = vmul.f32 %v251, %v1397
        %v1400 = vmul.f32 %v251, %v1398
        %v1401 = vadd.f32 %v1395, %v1399
        %v1402 = vadd.f32 %v1396, %v1400
        %v1403 = vtanh.pop %v1401
        %v1404 = vtanh.pop %v1402
        %v1405 = vperm.slane %v1403, 0
        %v1406 = vperm.slane %v1404, 0
        %v1407 = vmul.f32 %v223, %v1405
        %v1408 = vmul.f32 %v223, %v1406
        %v1409 = vadd.f32 %v218, %v1407
        %v1410 = vadd.f32 %v219, %v1408
        %v1411 = vperm.slane %v1403, 1
        %v1412 = vperm.slane %v1404, 1
        %v1413 = vmul.f32 %v227, %v1411
        %v1414 = vmul.f32 %v227, %v1412
        %v1415 = vadd.f32 %v1409, %v1413
        %v1416 = vadd.f32 %v1410, %v1414
        %v1417 = vperm.slane %v1403, 2
        %v1418 = vperm.slane %v1404, 2
        %v1419 = vmul.f32 %v231, %v1417
        %v1420 = vmul.f32 %v231, %v1418
        %v1421 = vadd.f32 %v1415, %v1419
        %v1422 = vadd.f32 %v1416, %v1420
        %v1423 = vperm.slane %v1403, 3
        %v1424 = vperm.slane %v1404, 3
        %v1425 = vmul.f32 %v235, %v1423
        %v1426 = vmul.f32 %v235, %v1424
        %v1427 = vadd.f32 %v1421, %v1425
        %v1428 = vadd.f32 %v1422, %v1426
        %v1429 = vperm.slane %v1403, 4
        %v1430 = vperm.slane %v1404, 4
        %v1431 = vmul.f32 %v239, %v1429
        %v1432 = vmul.f32 %v239, %v1430
        %v1433 = vadd.f32 %v1427, %v1431
        %v1434 = vadd.f32 %v1428, %v1432
        %v1435 = vperm.slane %v1403, 5
        %v1436 = vperm.slane %v1404, 5
        %v1437 = vmul.f32 %v243, %v1435
        %v1438 = vmul.f32 %v243, %v1436
        %v1439 = vadd.f32 %v1433, %v1437
        %v1440 = vadd.f32 %v1434, %v1438
        %v1441 = vperm.slane %v1403, 6
        %v1442 = vperm.slane %v1404, 6
        %v1443 = vmul.f32 %v247, %v1441
        %v1444 = vmul.f32 %v247, %v1442
        %v1445 = vadd.f32 %v1439, %v1443
        %v1446 = vadd.f32 %v1440, %v1444
        %v1447 = vperm.slane %v1403, 7
        %v1448 = vperm.slane %v1404, 7
        %v1449 = vmul.f32 %v251, %v1447
        %v1450 = vmul.f32 %v251, %v1448
        %v1451 = vadd.f32 %v1445, %v1449
        %v1452 = vadd.f32 %v1446, %v1450
        %v1453 = vtanh.pop %v1451
        %v1454 = vtanh.pop %v1452
        %v1455 = vperm.slane %v1453, 0
        %v1456 = vperm.slane %v1454, 0
        %v1457 = vmul.f32 %v223, %v1455
        %v1458 = vmul.f32 %v223, %v1456
        %v1459 = vadd.f32 %v218, %v1457
        %v1460 = vadd.f32 %v219, %v1458
        %v1461 = vperm.slane %v1453, 1
        %v1462 = vperm.slane %v1454, 1
        %v1463 = vmul.f32 %v227, %v1461
        %v1464 = vmul.f32 %v227, %v1462
        %v1465 = vadd.f32 %v1459, %v1463
        %v1466 = vadd.f32 %v1460, %v1464
        %v1467 = vperm.slane %v1453, 2
        %v1468 = vperm.slane %v1454, 2
        %v1469 = vmul.f32 %v231, %v1467
        %v1470 = vmul.f32 %v231, %v1468
        %v1471 = vadd.f32 %v1465, %v1469
        %v1472 = vadd.f32 %v1466, %v1470
        %v1473 = vperm.slane %v1453, 3
        %v1474 = vperm.slane %v1454, 3
        %v1475 = vmul.f32 %v235, %v1473
        %v1476 = vmul.f32 %v235, %v1474
        %v1477 = vadd.f32 %v1471, %v1475
        %v1478 = vadd.f32 %v1472, %v1476
        %v1479 = vperm.slane %v1453, 4
        %v1480 = vperm.slane %v1454, 4
        %v1481 = vmul.f32 %v239, %v1479
        %v1482 = vmul.f32 %v239, %v1480
        %v1483 = vadd.f32 %v1477, %v1481
        %v1484 = vadd.f32 %v1478, %v1482
        %v1485 = vperm.slane %v1453, 5
        %v1486 = vperm.slane %v1454, 5
        %v1487 = vmul.f32 %v243, %v1485
        %v1488 = vmul.f32 %v243, %v1486
        %v1489 = vadd.f32 %v1483, %v1487
        %v1490 = vadd.f32 %v1484, %v1488
        %v1491 = vperm.slane %v1453, 6
        %v1492 = vperm.slane %v1454, 6
        %v1493 = vmul.f32 %v247, %v1491
        %v1494 = vmul.f32 %v247, %v1492
        %v1495 = vadd.f32 %v1489, %v1493
        %v1496 = vadd.f32 %v1490, %v1494
        %v1497 = vperm.slane %v1453, 7
        %v1498 = vperm.slane %v1454, 7
        %v1499 = vmul.f32 %v251, %v1497
        %v1500 = vmul.f32 %v251, %v1498
        %v1501 = vadd.f32 %v1495, %v1499
        %v1502 = vadd.f32 %v1496, %v1500
        %v1503 = vtanh.pop %v1501
        %v1504 = vtanh.pop %v1502
        %v1505 = vperm.slane %v1503, 0
        %v1506 = vperm.slane %v1504, 0
        %v1507 = vmul.f32 %v223, %v1505
        %v1508 = vmul.f32 %v223, %v1506
        %v1509 = vadd.f32 %v218, %v1507
        %v1510 = vadd.f32 %v219, %v1508
        %v1511 = vperm.slane %v1503, 1
        %v1512 = vperm.slane %v1504, 1
        %v1513 = vmul.f32 %v227, %v1511
        %v1514 = vmul.f32 %v227, %v1512
        %v1515 = vadd.f32 %v1509, %v1513
        %v1516 = vadd.f32 %v1510, %v1514
        %v1517 = vperm.slane %v1503, 2
        %v1518 = vperm.slane %v1504, 2
        %v1519 = vmul.f32 %v231, %v1517
        %v1520 = vmul.f32 %v231, %v1518
        %v1521 = vadd.f32 %v1515, %v1519
        %v1522 = vadd.f32 %v1516, %v1520
        %v1523 = vperm.slane %v1503, 3
        %v1524 = vperm.slane %v1504, 3
        %v1525 = vmul.f32 %v235, %v1523
        %v1526 = vmul.f32 %v235, %v1524
        %v1527 = vadd.f32 %v1521, %v1525
        %v1528 = vadd.f32 %v1522, %v1526
        %v1529 = vperm.slane %v1503, 4
        %v1530 = vperm.slane %v1504, 4
        %v1531 = vmul.f32 %v239, %v1529
        %v1532 = vmul.f32 %v239, %v1530
        %v1533 = vadd.f32 %v1527, %v1531
        %v1534 = vadd.f32 %v1528, %v1532
        %v1535 = vperm.slane %v1503, 5
        %v1536 = vperm.slane %v1504, 5
        %v1537 = vmul.f32 %v243, %v1535
        %v1538 = vmul.f32 %v243, %v1536
        %v1539 = vadd.f32 %v1533, %v1537
        %v1540 = vadd.f32 %v1534, %v1538
        %v1541 = vperm.slane %v1503, 6
        %v1542 = vperm.slane %v1504, 6
        %v1543 = vmul.f32 %v247, %v1541
        %v1544 = vmul.f32 %v247, %v1542
        %v1545 = vadd.f32 %v1539, %v1543
        %v1546 = vadd.f32 %v1540, %v1544
        %v1547 = vperm.slane %v1503, 7
        %v1548 = vperm.slane %v1504, 7
        %v1549 = vmul.f32 %v251, %v1547
        %v1550 = vmul.f32 %v251, %v1548
        %v1551 = vadd.f32 %v1545, %v1549
        %v1552 = vadd.f32 %v1546, %v1550
        %v1553 = vtanh.pop %v1551
        %v1554 = vtanh.pop %v1552
        %v1555 = vperm.slane %v1553, 0
        %v1556 = vperm.slane %v1554, 0
        %v1557 = vmul.f32 %v223, %v1555
        %v1558 = vmul.f32 %v223, %v1556
        %v1559 = vadd.f32 %v218, %v1557
        %v1560 = vadd.f32 %v219, %v1558
        %v1561 = vperm.slane %v1553, 1
        %v1562 = vperm.slane %v1554, 1
        %v1563 = vmul.f32 %v227, %v1561
        %v1564 = vmul.f32 %v227, %v1562
        %v1565 = vadd.f32 %v1559, %v1563
        %v1566 = vadd.f32 %v1560, %v1564
        %v1567 = vperm.slane %v1553, 2
        %v1568 = vperm.slane %v1554, 2
        %v1569 = vmul.f32 %v231, %v1567
        %v1570 = vmul.f32 %v231, %v1568
        %v1571 = vadd.f32 %v1565, %v1569
        %v1572 = vadd.f32 %v1566, %v1570
        %v1573 = vperm.slane %v1553, 3
        %v1574 = vperm.slane %v1554, 3
        %v1575 = vmul.f32 %v235, %v1573
        %v1576 = vmul.f32 %v235, %v1574
        %v1577 = vadd.f32 %v1571, %v1575
        %v1578 = vadd.f32 %v1572, %v1576
        %v1579 = vperm.slane %v1553, 4
        %v1580 = vperm.slane %v1554, 4
        %v1581 = vmul.f32 %v239, %v1579
        %v1582 = vmul.f32 %v239, %v1580
        %v1583 = vadd.f32 %v1577, %v1581
        %v1584 = vadd.f32 %v1578, %v1582
        %v1585 = vperm.slane %v1553, 5
        %v1586 = vperm.slane %v1554, 5
        %v1587 = vmul.f32 %v243, %v1585
        %v1588 = vmul.f32 %v243, %v1586
        %v1589 = vadd.f32 %v1583, %v1587
        %v1590 = vadd.f32 %v1584, %v1588
        %v1591 = vperm.slane %v1553, 6
        %v1592 = vperm.slane %v1554, 6
        %v1593 = vmul.f32 %v247, %v1591
        %v1594 = vmul.f32 %v247, %v1592
        %v1595 = vadd.f32 %v1589, %v1593
        %v1596 = vadd.f32 %v1590, %v1594
        %v1597 = vperm.slane %v1553, 7
        %v1598 = vperm.slane %v1554, 7
        %v1599 = vmul.f32 %v251, %v1597
        %v1600 = vmul.f32 %v251, %v1598
        %v1601 = vadd.f32 %v1595, %v1599
        %v1602 = vadd.f32 %v1596, %v1600
        %v1603 = vtanh.pop %v1601
        %v1604 = vtanh.pop %v1602
        %v1605 = vperm.slane %v1603, 0
        %v1606 = vperm.slane %v1604, 0
        %v1607 = vmul.f32 %v223, %v1605
        %v1608 = vmul.f32 %v223, %v1606
        %v1609 = vadd.f32 %v218, %v1607
        %v1610 = vadd.f32 %v219, %v1608
        %v1611 = vperm.slane %v1603, 1
        %v1612 = vperm.slane %v1604, 1
        %v1613 = vmul.f32 %v227, %v1611
        %v1614 = vmul.f32 %v227, %v1612
        %v1615 = vadd.f32 %v1609, %v1613
        %v1616 = vadd.f32 %v1610, %v1614
        %v1617 = vperm.slane %v1603, 2
        %v1618 = vperm.slane %v1604, 2
        %v1619 = vmul.f32 %v231, %v1617
        %v1620 = vmul.f32 %v231, %v1618
        %v1621 = vadd.f32 %v1615, %v1619
        %v1622 = vadd.f32 %v1616, %v1620
        %v1623 = vperm.slane %v1603, 3
        %v1624 = vperm.slane %v1604, 3
        %v1625 = vmul.f32 %v235, %v1623
        %v1626 = vmul.f32 %v235, %v1624
        %v1627 = vadd.f32 %v1621, %v1625
        %v1628 = vadd.f32 %v1622, %v1626
        %v1629 = vperm.slane %v1603, 4
        %v1630 = vperm.slane %v1604, 4
        %v1631 = vmul.f32 %v239, %v1629
        %v1632 = vmul.f32 %v239, %v1630
        %v1633 = vadd.f32 %v1627, %v1631
        %v1634 = vadd.f32 %v1628, %v1632
        %v1635 = vperm.slane %v1603, 5
        %v1636 = vperm.slane %v1604, 5
        %v1637 = vmul.f32 %v243, %v1635
        %v1638 = vmul.f32 %v243, %v1636
        %v1639 = vadd.f32 %v1633, %v1637
        %v1640 = vadd.f32 %v1634, %v1638
        %v1641 = vperm.slane %v1603, 6
        %v1642 = vperm.slane %v1604, 6
        %v1643 = vmul.f32 %v247, %v1641
        %v1644 = vmul.f32 %v247, %v1642
        %v1645 = vadd.f32 %v1639, %v1643
        %v1646 = vadd.f32 %v1640, %v1644
        %v1647 = vperm.slane %v1603, 7
        %v1648 = vperm.slane %v1604, 7
        %v1649 = vmul.f32 %v251, %v1647
        %v1650 = vmul.f32 %v251, %v1648
        %v1651 = vadd.f32 %v1645, %v1649
        %v1652 = vadd.f32 %v1646, %v1650
        %v1653 = vtanh.pop %v1651
        %v1654 = vtanh.pop %v1652
        %v1655 = vperm.slane %v1653, 0
        %v1656 = vperm.slane %v1654, 0
        %v1657 = vmul.f32 %v223, %v1655
        %v1658 = vmul.f32 %v223, %v1656
        %v1659 = vadd.f32 %v218, %v1657
        %v1660 = vadd.f32 %v219, %v1658
        %v1661 = vperm.slane %v1653, 1
        %v1662 = vperm.slane %v1654, 1
        %v1663 = vmul.f32 %v227, %v1661
        %v1664 = vmul.f32 %v227, %v1662
        %v1665 = vadd.f32 %v1659, %v1663
        %v1666 = vadd.f32 %v1660, %v1664
        %v1667 = vperm.slane %v1653, 2
        %v1668 = vperm.slane %v1654, 2
        %v1669 = vmul.f32 %v231, %v1667
        %v1670 = vmul.f32 %v231, %v1668
        %v1671 = vadd.f32 %v1665, %v1669
        %v1672 = vadd.f32 %v1666, %v1670
        %v1673 = vperm.slane %v1653, 3
        %v1674 = vperm.slane %v1654, 3
        %v1675 = vmul.f32 %v235, %v1673
        %v1676 = vmul.f32 %v235, %v1674
        %v1677 = vadd.f32 %v1671, %v1675
        %v1678 = vadd.f32 %v1672, %v1676
        %v1679 = vperm.slane %v1653, 4
        %v1680 = vperm.slane %v1654, 4
        %v1681 = vmul.f32 %v239, %v1679
        %v1682 = vmul.f32 %v239, %v1680
        %v1683 = vadd.f32 %v1677, %v1681
        %v1684 = vadd.f32 %v1678, %v1682
        %v1685 = vperm.slane %v1653, 5
        %v1686 = vperm.slane %v1654, 5
        %v1687 = vmul.f32 %v243, %v1685
        %v1688 = vmul.f32 %v243, %v1686
        %v1689 = vadd.f32 %v1683, %v1687
        %v1690 = vadd.f32 %v1684, %v1688
        %v1691 = vperm.slane %v1653, 6
        %v1692 = vperm.slane %v1654, 6
        %v1693 = vmul.f32 %v247, %v1691
        %v1694 = vmul.f32 %v247, %v1692
        %v1695 = vadd.f32 %v1689, %v1693
        %v1696 = vadd.f32 %v1690, %v1694
        %v1697 = vperm.slane %v1653, 7
        %v1698 = vperm.slane %v1654, 7
        %v1699 = vmul.f32 %v251, %v1697
        %v1700 = vmul.f32 %v251, %v1698
        %v1701 = vadd.f32 %v1695, %v1699
        %v1702 = vadd.f32 %v1696, %v1700
        %v1703 = vtanh.pop %v1701
        %v1704 = vtanh.pop %v1702
        %v1705 = vperm.slane %v1703, 0
        %v1706 = vperm.slane %v1704, 0
        %v1707 = vmul.f32 %v223, %v1705
        %v1708 = vmul.f32 %v223, %v1706
        %v1709 = vadd.f32 %v218, %v1707
        %v1710 = vadd.f32 %v219, %v1708
        %v1711 = vperm.slane %v1703, 1
        %v1712 = vperm.slane %v1704, 1
        %v1713 = vmul.f32 %v227, %v1711
        %v1714 = vmul.f32 %v227, %v1712
        %v1715 = vadd.f32 %v1709, %v1713
        %v1716 = vadd.f32 %v1710, %v1714
        %v1717 = vperm.slane %v1703, 2
        %v1718 = vperm.slane %v1704, 2
        %v1719 = vmul.f32 %v231, %v1717
        %v1720 = vmul.f32 %v231, %v1718
        %v1721 = vadd.f32 %v1715, %v1719
        %v1722 = vadd.f32 %v1716, %v1720
        %v1723 = vperm.slane %v1703, 3
        %v1724 = vperm.slane %v1704, 3
        %v1725 = vmul.f32 %v235, %v1723
        %v1726 = vmul.f32 %v235, %v1724
        %v1727 = vadd.f32 %v1721, %v1725
        %v1728 = vadd.f32 %v1722, %v1726
        %v1729 = vperm.slane %v1703, 4
        %v1730 = vperm.slane %v1704, 4
        %v1731 = vmul.f32 %v239, %v1729
        %v1732 = vmul.f32 %v239, %v1730
        %v1733 = vadd.f32 %v1727, %v1731
        %v1734 = vadd.f32 %v1728, %v1732
        %v1735 = vperm.slane %v1703, 5
        %v1736 = vperm.slane %v1704, 5
        %v1737 = vmul.f32 %v243, %v1735
        %v1738 = vmul.f32 %v243, %v1736
        %v1739 = vadd.f32 %v1733, %v1737
        %v1740 = vadd.f32 %v1734, %v1738
        %v1741 = vperm.slane %v1703, 6
        %v1742 = vperm.slane %v1704, 6
        %v1743 = vmul.f32 %v247, %v1741
        %v1744 = vmul.f32 %v247, %v1742
        %v1745 = vadd.f32 %v1739, %v1743
        %v1746 = vadd.f32 %v1740, %v1744
        %v1747 = vperm.slane %v1703, 7
        %v1748 = vperm.slane %v1704, 7
        %v1749 = vmul.f32 %v251, %v1747
        %v1750 = vmul.f32 %v251, %v1748
        %v1751 = vadd.f32 %v1745, %v1749
        %v1752 = vadd.f32 %v1746, %v1750
        %v1753 = vtanh.pop %v1751
        %v1754 = vtanh.pop %v1752
        %1755 = vst [vmem:[%s206] sm:$0xff] %v1753
        %1756 = vst [vmem:[%s206 + $0x8] sm:$0xff] %v1754
        %s1757 = sand.u32 %s112, 1
        %s1758 = scalar_lea.sflag [#allocation4], %s1757
        %s1759 = sand.u32 %s112, 1
        %s1760 = smul.addr %s1759, 16
        %s1761 = scalar_lea.vmem [#allocation5], %s1760
        // Predicated region
        $region37: #{tpu_custom_call.1} parent=31 // pred_check
          %p1762 = pneg %p122
        $region38: #{tpu_custom_call.1} parent=31 // pred_check_branch
          %1764 = sbr.rel (%p1762) target = $region40
        $region39: #{tpu_custom_call.1} parent=31 // pred_region
          %s1765 = smul.u32 2, %s25
          %1767 = vsyncadd %s1758, 0
          %s1768 = smul.addr %s24, 2
          %s1769 = sadd.s32 %s1765, %s1768
          %s1770 = smul.addr %s1769, 8
          %s1771 = scalar_lea.hbm %s3, %s1770
          %s1773 = sshll.u32 %s1761, 4
          %s1774 = int_to_ptr.vmem [resolvable:$true] %s1773
          %s1775 = sshll.u32 %s1771, 4
          %s1776 = int_to_ptr.hbm [resolvable:$true] %s1775
          %1778 = dma.vmem_to_hbm [thread:$0]  %s1774, 256, %s1776, %s1758
        $region40: #{tpu_custom_call.1} parent=31 // pred_fallthru
          _
      $region32: #{tpu_custom_call.1} parent=5 // pred_fallthru
        _
      %p1779 = scmp.le.s32.totalorder 2, %s15
      // Predicated region
      $region41: #{tpu_custom_call.1} parent=5 // pred_check
        %p1780 = pneg %p1779
      $region42: #{tpu_custom_call.1} parent=5 // pred_check_branch
        %1782 = sbr.rel (%p1780) target = $region44
      $region43: #{tpu_custom_call.1} parent=5 // pred_region
        %s1783 = ssub.s32 %s15, 2
        // Predicated region
        $region45: #{tpu_custom_call.1} parent=43 // pred_check
          %p1784 = pneg %p128
        $region46: #{tpu_custom_call.1} parent=43 // pred_check_branch
          %1786 = sbr.rel (%p1784) target = $region48
        $region47: #{tpu_custom_call.1} parent=43 // pred_region
          %s1787 = sand.u32 %s113, 1
          %s1788 = scalar_lea.sflag [#allocation4], %s1787
          %s1789 = sand.u32 %s113, 1
          %s1790 = smul.addr %s1789, 16
          %s1791 = scalar_lea.vmem [#allocation5], %s1790
          %1793 = dma.done %s1788, 256
        $region48: #{tpu_custom_call.1} parent=43 // pred_fallthru
          _
      $region44: #{tpu_custom_call.1} parent=5 // pred_fallthru
        _
    $region6: #{tpu_custom_call.1} parent=1 // loop_footer
      %s19 = sadd.s32 1, %s15
    $region7: #{tpu_custom_call.1} parent=1 // loop_footer_branch
      %14 = sbr.rel target = $region3
    $region8: #{tpu_custom_call.1} parent=1 // loop_exit
      _
    %1794 = vsyncpa [#allocation3], 1
    %s1795 = scalar_lea.sflag [#allocation3], 1
    %1796 = vsyncpa %s1795, 1
    %1797 = vsyncpa [#allocation4], 1
    %s1798 = scalar_lea.sflag [#allocation4], 1
    %1799 = vsyncpa %s1798, 1

</llo_original>
